<compile_context>
chip_gen: v7x
topology: tpu7x:2x2x1
jax: 0.10.0
libtpu: 0.0.40
codegen_flags: <defaults>
</compile_context>

<pallas_src>
import jax
import jax.numpy as jnp
from jax.experimental import pallas as pl
from jax.experimental.pallas import tpu as pltpu

ACT_DIM = 7 * 14         # 98
STATE_DIM = 14 * 14      # 196
INPUT_DIM = ACT_DIM + STATE_DIM   # 294
HIDDEN = 256
OUT_DIM = 19
OUT_PAD = 128            # lane-dense padded logits width


def _dominion_kernel(a_ref, s_ref, h0_ref, c0_ref,
                     wih_a_ref, wih_s_ref, whh_ref, b_ref,
                     wout_ref, bout_ref,
                     logits_ref, hn_ref):
    """LSTM over the B rows (treated as a sequence), then output layer.

    Gate column order in all weight/bias tensors is (i, f, o, g) -- permuted
    at prepare time -- so a single contiguous sigmoid covers i/f/o and a
    single tanh covers g.

    a_ref:      (B, 98)    flattened action features (f32)
    s_ref:      (B, 196)   flattened state features (f32)
    h0/c0_ref:  (1, 256)   initial hidden / cell (f32)
    wih_a_ref:  (98, 1024) action rows of W_ih^T (bf16, gate order i,f,o,g)
    wih_s_ref:  (196,1024) state rows of W_ih^T (bf16)
    whh_ref:    (256,1024) W_hh^T (bf16)
    b_ref:      (1, 1024)  b_ih + b_hh (f32)
    wout_ref:   (256, 128) W_out^T zero-padded to lane width (bf16)
    bout_ref:   (1, 128)   b_out zero-padded (f32)
    logits_ref: (1, 128)   padded output logits
    hn_ref:     (1, 256)   final hidden state
    """
    B = a_ref.shape[0]
    H = HIDDEN

    # Input projection for all timesteps at once (off the serial chain):
    # two bf16 MXU matmuls (split W_ih avoids a wrapper-side concat of
    # action/state), f32 accumulate, bias folded in.
    a_bf = a_ref[...].astype(jnp.bfloat16)
    s_bf = s_ref[...].astype(jnp.bfloat16)
    gates_all = (
        jnp.dot(a_bf, wih_a_ref[...], preferred_element_type=jnp.float32)
        + jnp.dot(s_bf, wih_s_ref[...], preferred_element_type=jnp.float32)
        + b_ref[...]
    )                                                       # (B, 4H) f32

    whh_t = whh_ref[...]                                    # (256, 1024) bf16
    h = h0_ref[...]                                         # (1, 256) f32
    c = c0_ref[...]                                         # (1, 256) f32

    # Fully unrolled recurrence: B is a small static trip count, so all slices
    # below are static and the scheduler sees the whole serial chain.
    # (Guard: for large B switch to lax.fori_loop(..., unroll=k).)
    for t in range(B):
        gx = gates_all[t:t + 1, :]                          # (1, 4H) static slice
        gates = gx + jnp.dot(h.astype(jnp.bfloat16), whh_t,
                             preferred_element_type=jnp.float32)
        # Gate order (i, f, o, g): one sigmoid over 3H, one tanh over H.
        ifo = jax.nn.sigmoid(gates[:, 0:3 * H])             # (1, 3H)
        g = jnp.tanh(gates[:, 3 * H:4 * H])                 # (1, H)
        i = ifo[:, 0:H]
        f = ifo[:, H:2 * H]
        o = ifo[:, 2 * H:3 * H]
        c = f * c + i * g
        h = o * jnp.tanh(c)

    # Output head: bf16 x bf16 -> f32 into a lane-dense (1, 128) buffer.
    logits_ref[...] = (
        jnp.dot(h.astype(jnp.bfloat16), wout_ref[...],
                preferred_element_type=jnp.float32)
        + bout_ref[...]
    )
    hn_ref[...] = h


def prepare_params(params):
    """One-time parameter plumbing (transpose, gate permutation, bias-sum,
    bf16 cast, output padding).

    Call this once at parameter-load time; pass the result to dominion_forward.
    """
    w_ih, w_hh, b_ih, b_hh, w_out, b_out = params
    H = HIDDEN

    def permute_gates_cols(w_t):
        # Columns in PyTorch order (i, f, g, o) -> (i, f, o, g).
        return jnp.concatenate(
            [w_t[:, 0:H], w_t[:, H:2 * H], w_t[:, 3 * H:4 * H],
             w_t[:, 2 * H:3 * H]], axis=1)

    wih_t = permute_gates_cols(jnp.transpose(w_ih)).astype(jnp.bfloat16)  # (294,1024)
    wih_a_t = wih_t[:ACT_DIM]                               # (98, 1024)
    wih_s_t = wih_t[ACT_DIM:]                               # (196, 1024)
    whh_t = permute_gates_cols(jnp.transpose(w_hh)).astype(jnp.bfloat16)  # (256,1024)

    bias_pt = (b_ih + b_hh).astype(jnp.float32)             # (1024,) torch order
    bias = jnp.concatenate(
        [bias_pt[0:H], bias_pt[H:2 * H], bias_pt[3 * H:4 * H],
         bias_pt[2 * H:3 * H]]).reshape(1, 4 * H)           # (1, 1024) i,f,o,g

    wout_t = jnp.transpose(w_out)                           # (256, 19)
    wout_t_pad = (jnp.zeros((HIDDEN, OUT_PAD), jnp.float32)
                  .at[:, :OUT_DIM].set(wout_t.astype(jnp.float32))
                  .astype(jnp.bfloat16))                    # (256, 128) bf16
    bout_pad = jnp.zeros((1, OUT_PAD), jnp.float32).at[:, :OUT_DIM].set(
        b_out.astype(jnp.float32))
    return (wih_a_t, wih_s_t, whh_t, bias, wout_t_pad, bout_pad)


@jax.jit
def dominion_forward(action, state, hidden, prepped_params):
    """Pallas-backed equivalent of DominionNet.forward (B != 128 path)."""
    h0, c0 = hidden                                         # each (1, 256)
    wih_a_t, wih_s_t, whh_t, bias, wout_t_pad, bout_pad = prepped_params

    B = action.shape[0]
    a_flat = action.reshape(B, ACT_DIM).astype(jnp.float32)   # (B, 98)
    s_flat = state.reshape(B, STATE_DIM).astype(jnp.float32)  # (B, 196)

    vmem = pl.BlockSpec(memory_space=pltpu.MemorySpace.VMEM)

    logits, h_n = pl.pallas_call(
        _dominion_kernel,
        out_shape=(
            jax.ShapeDtypeStruct((1, OUT_PAD), jnp.float32),
            jax.ShapeDtypeStruct((1, HIDDEN), jnp.float32),
        ),
        in_specs=[vmem] * 10,
        out_specs=(vmem, vmem),
    )(a_flat, s_flat, h0, c0, wih_a_t, wih_s_t, whh_t, bias,
      wout_t_pad, bout_pad)

    pol = logits[:, :18]                                    # (1, 18)
    val = logits[:, 18:19]                                  # (1, 1)
    # The torch module returns only the LSTM h tensor as 'hidden'; the cell
    # state is intentionally dropped (matches the reference behavior), and is
    # no longer even emitted by the kernel.
    return {'policy': pol, 'value': val, 'hidden': h_n}


def _reference_forward(hf, h0, c0, w_ih, w_hh, b_ih, b_hh, w_out, b_out):
    """Pure-JAX f32 reference (same math as torch.nn.LSTM, unbatched path)."""
    h, c = h0, c0
    H = HIDDEN
    for t in range(hf.shape[0]):
        gates = hf[t:t + 1] @ w_ih.T + b_ih + h @ w_hh.T + b_hh
        i = jax.nn.sigmoid(gates[:, 0:H])
        f = jax.nn.sigmoid(gates[:, H:2 * H])
        g = jnp.tanh(gates[:, 2 * H:3 * H])
        o = jax.nn.sigmoid(gates[:, 3 * H:4 * H])
        c = f * c + i * g
        h = o * jnp.tanh(c)
    logits = h @ w_out.T + b_out
    return logits, h


def _init_params(key):
    """Deterministic synthetic parameters, torch-style uniform(-k, k) init."""
    k = 1.0 / jnp.sqrt(jnp.float32(HIDDEN))
    ks = jax.random.split(key, 6)
    u = lambda kk, shape: jax.random.uniform(kk, shape, jnp.float32, -k, k)
    w_ih = u(ks[0], (4 * HIDDEN, INPUT_DIM))    # (1024, 294)
    w_hh = u(ks[1], (4 * HIDDEN, HIDDEN))       # (1024, 256)
    b_ih = u(ks[2], (4 * HIDDEN,))              # (1024,)
    b_hh = u(ks[3], (4 * HIDDEN,))              # (1024,)
    w_out = u(ks[4], (OUT_DIM, HIDDEN))         # (19, 256)
    b_out = u(ks[5], (OUT_DIM,))                # (19,)
    return (w_ih, w_hh, b_ih, b_hh, w_out, b_out)


if __name__ == "__main__":
    key = jax.random.PRNGKey(0)
    k_act, k_state, k_params = jax.random.split(key, 3)

    B = 8                                             # small, != 128 path
    action = jax.random.normal(k_act, (B, 7, 14), jnp.float32)
    state = jax.random.normal(k_state, (B, 14, 14), jnp.float32)

    params = _init_params(k_params)
    prepped = prepare_params(params)                  # one-time plumbing
    hidden = (jnp.zeros((1, HIDDEN), jnp.float32),    # init_hidden()
              jnp.zeros((1, HIDDEN), jnp.float32))

    out = dominion_forward(action, state, hidden, prepped)
    jax.block_until_ready(out)

    assert out['policy'].shape == (1, 18)
    assert out['value'].shape == (1, 1)
    assert out['hidden'].shape == (1, HIDDEN)

    # Correctness check against a pure-JAX f32 reference.  Tolerance 5e-2 is
    # intentional: weights are stored/multiplied in bfloat16 on the MXU.
    hf = jnp.concatenate([action, state], axis=1).reshape(B, -1)
    ref_logits, ref_h = _reference_forward(hf, hidden[0], hidden[1], *params)
    assert jnp.allclose(out['policy'], ref_logits[:, :18], rtol=5e-2, atol=5e-2)
    assert jnp.allclose(out['value'], ref_logits[:, 18:19], rtol=5e-2, atol=5e-2)
    assert jnp.allclose(out['hidden'], ref_h, rtol=5e-2, atol=5e-2)

    print("KERNEL_OK")
</pallas_src>

<mosaic_0001>
module attributes {stable_mosaic.version = 11 : i64} {
  func.func @_dominion_kernel(%arg0: memref<8x98xf32, #tpu.memory_space<vmem>>, %arg1: memref<8x196xf32, #tpu.memory_space<vmem>>, %arg2: memref<1x256xf32, #tpu.memory_space<vmem>>, %arg3: memref<1x256xf32, #tpu.memory_space<vmem>>, %arg4: memref<98x1024xbf16, #tpu.memory_space<vmem>>, %arg5: memref<196x1024xbf16, #tpu.memory_space<vmem>>, %arg6: memref<256x1024xbf16, #tpu.memory_space<vmem>>, %arg7: memref<1x1024xf32, #tpu.memory_space<vmem>>, %arg8: memref<256x128xbf16, #tpu.memory_space<vmem>>, %arg9: memref<1x128xf32, #tpu.memory_space<vmem>>, %arg10: memref<1x128xf32, #tpu.memory_space<vmem>>, %arg11: memref<1x256xf32, #tpu.memory_space<vmem>>) attributes {dimension_semantics = [], scalar_prefetch = 0 : i64, scratch_operands = 0 : i64, tpu.core_type = #tpu.core_type<tc>} {
    %c0 = arith.constant 0 : index
    %c0_0 = arith.constant 0 : index
    %0 = vector.load %arg0[%c0, %c0_0] : memref<8x98xf32, #tpu.memory_space<vmem>>, vector<8x98xf32>
    %1 = arith.truncf %0 : vector<8x98xf32> to vector<8x98xbf16>
    %c0_1 = arith.constant 0 : index
    %c0_2 = arith.constant 0 : index
    %2 = vector.load %arg1[%c0_1, %c0_2] : memref<8x196xf32, #tpu.memory_space<vmem>>, vector<8x196xf32>
    %3 = arith.truncf %2 : vector<8x196xf32> to vector<8x196xbf16>
    %c0_3 = arith.constant 0 : index
    %c0_4 = arith.constant 0 : index
    %4 = vector.load %arg4[%c0_3, %c0_4] : memref<98x1024xbf16, #tpu.memory_space<vmem>>, vector<98x1024xbf16>
    %cst = arith.constant dense<0.000000e+00> : vector<8x1024xf32>
    %5 = tpu.matmul %1, %4, %cst {dimension_numbers = #tpu.dot_dimension_numbers<[1], [0], [0], [1], [0, 0, 1, 1], [], []>} : vector<8x98xbf16>, vector<98x1024xbf16>, vector<8x1024xf32> -> vector<8x1024xf32>
    %c0_5 = arith.constant 0 : index
    %c0_6 = arith.constant 0 : index
    %6 = vector.load %arg5[%c0_5, %c0_6] : memref<196x1024xbf16, #tpu.memory_space<vmem>>, vector<196x1024xbf16>
    %cst_7 = arith.constant dense<0.000000e+00> : vector<8x1024xf32>
    %7 = tpu.matmul %3, %6, %cst_7 {dimension_numbers = #tpu.dot_dimension_numbers<[1], [0], [0], [1], [0, 0, 1, 1], [], []>} : vector<8x196xbf16>, vector<196x1024xbf16>, vector<8x1024xf32> -> vector<8x1024xf32>
    %8 = arith.addf %5, %7 : vector<8x1024xf32>
    %c0_8 = arith.constant 0 : index
    %c0_9 = arith.constant 0 : index
    %9 = vector.load %arg7[%c0_8, %c0_9] : memref<1x1024xf32, #tpu.memory_space<vmem>>, vector<1x1024xf32>
    %10 = vector.broadcast %9 : vector<1x1024xf32> to vector<8x1024xf32>
    %11 = arith.addf %8, %10 : vector<8x1024xf32>
    %c0_10 = arith.constant 0 : index
    %c0_11 = arith.constant 0 : index
    %12 = vector.load %arg6[%c0_10, %c0_11] : memref<256x1024xbf16, #tpu.memory_space<vmem>>, vector<256x1024xbf16>
    %c0_12 = arith.constant 0 : index
    %c0_13 = arith.constant 0 : index
    %13 = vector.load %arg2[%c0_12, %c0_13] : memref<1x256xf32, #tpu.memory_space<vmem>>, vector<1x256xf32>
    %c0_14 = arith.constant 0 : index
    %c0_15 = arith.constant 0 : index
    %14 = vector.load %arg3[%c0_14, %c0_15] : memref<1x256xf32, #tpu.memory_space<vmem>>, vector<1x256xf32>
    %15 = vector.extract_strided_slice %11 {offsets = [0, 0], sizes = [1, 1024], strides = [1, 1]} : vector<8x1024xf32> to vector<1x1024xf32>
    %16 = arith.truncf %13 : vector<1x256xf32> to vector<1x256xbf16>
    %cst_16 = arith.constant dense<0.000000e+00> : vector<1x1024xf32>
    %17 = tpu.matmul %16, %12, %cst_16 {dimension_numbers = #tpu.dot_dimension_numbers<[1], [0], [0], [1], [0, 0, 1, 1], [], []>} : vector<1x256xbf16>, vector<256x1024xbf16>, vector<1x1024xf32> -> vector<1x1024xf32>
    %18 = arith.addf %15, %17 : vector<1x1024xf32>
    %19 = vector.extract_strided_slice %18 {offsets = [0, 0], sizes = [1, 768], strides = [1, 1]} : vector<1x1024xf32> to vector<1x768xf32>
    %20 = arith.negf %19 : vector<1x768xf32>
    %21 = math.exp %20 : vector<1x768xf32>
    %cst_17 = arith.constant 1.000000e+00 : f32
    %22 = vector.broadcast %cst_17 : f32 to vector<1x768xf32>
    %23 = arith.addf %22, %21 : vector<1x768xf32>
    %24 = arith.divf %22, %23 : vector<1x768xf32>
    %25 = vector.extract_strided_slice %18 {offsets = [0, 768], sizes = [1, 256], strides = [1, 1]} : vector<1x1024xf32> to vector<1x256xf32>
    %26 = math.tanh %25 : vector<1x256xf32>
    %27 = vector.extract_strided_slice %24 {offsets = [0, 0], sizes = [1, 256], strides = [1, 1]} : vector<1x768xf32> to vector<1x256xf32>
    %28 = vector.extract_strided_slice %24 {offsets = [0, 256], sizes = [1, 256], strides = [1, 1]} : vector<1x768xf32> to vector<1x256xf32>
    %29 = vector.extract_strided_slice %24 {offsets = [0, 512], sizes = [1, 256], strides = [1, 1]} : vector<1x768xf32> to vector<1x256xf32>
    %30 = arith.mulf %28, %14 : vector<1x256xf32>
    %31 = arith.mulf %27, %26 : vector<1x256xf32>
    %32 = arith.addf %30, %31 : vector<1x256xf32>
    %33 = math.tanh %32 : vector<1x256xf32>
    %34 = arith.mulf %29, %33 : vector<1x256xf32>
    %35 = vector.extract_strided_slice %11 {offsets = [1, 0], sizes = [1, 1024], strides = [1, 1]} : vector<8x1024xf32> to vector<1x1024xf32>
    %36 = arith.truncf %34 : vector<1x256xf32> to vector<1x256xbf16>
    %cst_18 = arith.constant dense<0.000000e+00> : vector<1x1024xf32>
    %37 = tpu.matmul %36, %12, %cst_18 {dimension_numbers = #tpu.dot_dimension_numbers<[1], [0], [0], [1], [0, 0, 1, 1], [], []>} : vector<1x256xbf16>, vector<256x1024xbf16>, vector<1x1024xf32> -> vector<1x1024xf32>
    %38 = arith.addf %35, %37 : vector<1x1024xf32>
    %39 = vector.extract_strided_slice %38 {offsets = [0, 0], sizes = [1, 768], strides = [1, 1]} : vector<1x1024xf32> to vector<1x768xf32>
    %40 = arith.negf %39 : vector<1x768xf32>
    %41 = math.exp %40 : vector<1x768xf32>
    %cst_19 = arith.constant 1.000000e+00 : f32
    %42 = vector.broadcast %cst_19 : f32 to vector<1x768xf32>
    %43 = arith.addf %42, %41 : vector<1x768xf32>
    %44 = arith.divf %42, %43 : vector<1x768xf32>
    %45 = vector.extract_strided_slice %38 {offsets = [0, 768], sizes = [1, 256], strides = [1, 1]} : vector<1x1024xf32> to vector<1x256xf32>
    %46 = math.tanh %45 : vector<1x256xf32>
    %47 = vector.extract_strided_slice %44 {offsets = [0, 0], sizes = [1, 256], strides = [1, 1]} : vector<1x768xf32> to vector<1x256xf32>
    %48 = vector.extract_strided_slice %44 {offsets = [0, 256], sizes = [1, 256], strides = [1, 1]} : vector<1x768xf32> to vector<1x256xf32>
    %49 = vector.extract_strided_slice %44 {offsets = [0, 512], sizes = [1, 256], strides = [1, 1]} : vector<1x768xf32> to vector<1x256xf32>
    %50 = arith.mulf %48, %32 : vector<1x256xf32>
    %51 = arith.mulf %47, %46 : vector<1x256xf32>
    %52 = arith.addf %50, %51 : vector<1x256xf32>
    %53 = math.tanh %52 : vector<1x256xf32>
    %54 = arith.mulf %49, %53 : vector<1x256xf32>
    %55 = vector.extract_strided_slice %11 {offsets = [2, 0], sizes = [1, 1024], strides = [1, 1]} : vector<8x1024xf32> to vector<1x1024xf32>
    %56 = arith.truncf %54 : vector<1x256xf32> to vector<1x256xbf16>
    %cst_20 = arith.constant dense<0.000000e+00> : vector<1x1024xf32>
    %57 = tpu.matmul %56, %12, %cst_20 {dimension_numbers = #tpu.dot_dimension_numbers<[1], [0], [0], [1], [0, 0, 1, 1], [], []>} : vector<1x256xbf16>, vector<256x1024xbf16>, vector<1x1024xf32> -> vector<1x1024xf32>
    %58 = arith.addf %55, %57 : vector<1x1024xf32>
    %59 = vector.extract_strided_slice %58 {offsets = [0, 0], sizes = [1, 768], strides = [1, 1]} : vector<1x1024xf32> to vector<1x768xf32>
    %60 = arith.negf %59 : vector<1x768xf32>
    %61 = math.exp %60 : vector<1x768xf32>
    %cst_21 = arith.constant 1.000000e+00 : f32
    %62 = vector.broadcast %cst_21 : f32 to vector<1x768xf32>
    %63 = arith.addf %62, %61 : vector<1x768xf32>
    %64 = arith.divf %62, %63 : vector<1x768xf32>
    %65 = vector.extract_strided_slice %58 {offsets = [0, 768], sizes = [1, 256], strides = [1, 1]} : vector<1x1024xf32> to vector<1x256xf32>
    %66 = math.tanh %65 : vector<1x256xf32>
    %67 = vector.extract_strided_slice %64 {offsets = [0, 0], sizes = [1, 256], strides = [1, 1]} : vector<1x768xf32> to vector<1x256xf32>
    %68 = vector.extract_strided_slice %64 {offsets = [0, 256], sizes = [1, 256], strides = [1, 1]} : vector<1x768xf32> to vector<1x256xf32>
    %69 = vector.extract_strided_slice %64 {offsets = [0, 512], sizes = [1, 256], strides = [1, 1]} : vector<1x768xf32> to vector<1x256xf32>
    %70 = arith.mulf %68, %52 : vector<1x256xf32>
    %71 = arith.mulf %67, %66 : vector<1x256xf32>
    %72 = arith.addf %70, %71 : vector<1x256xf32>
    %73 = math.tanh %72 : vector<1x256xf32>
    %74 = arith.mulf %69, %73 : vector<1x256xf32>
    %75 = vector.extract_strided_slice %11 {offsets = [3, 0], sizes = [1, 1024], strides = [1, 1]} : vector<8x1024xf32> to vector<1x1024xf32>
    %76 = arith.truncf %74 : vector<1x256xf32> to vector<1x256xbf16>
    %cst_22 = arith.constant dense<0.000000e+00> : vector<1x1024xf32>
    %77 = tpu.matmul %76, %12, %cst_22 {dimension_numbers = #tpu.dot_dimension_numbers<[1], [0], [0], [1], [0, 0, 1, 1], [], []>} : vector<1x256xbf16>, vector<256x1024xbf16>, vector<1x1024xf32> -> vector<1x1024xf32>
    %78 = arith.addf %75, %77 : vector<1x1024xf32>
    %79 = vector.extract_strided_slice %78 {offsets = [0, 0], sizes = [1, 768], strides = [1, 1]} : vector<1x1024xf32> to vector<1x768xf32>
    %80 = arith.negf %79 : vector<1x768xf32>
    %81 = math.exp %80 : vector<1x768xf32>
    %cst_23 = arith.constant 1.000000e+00 : f32
    %82 = vector.broadcast %cst_23 : f32 to vector<1x768xf32>
    %83 = arith.addf %82, %81 : vector<1x768xf32>
    %84 = arith.divf %82, %83 : vector<1x768xf32>
    %85 = vector.extract_strided_slice %78 {offsets = [0, 768], sizes = [1, 256], strides = [1, 1]} : vector<1x1024xf32> to vector<1x256xf32>
    %86 = math.tanh %85 : vector<1x256xf32>
    %87 = vector.extract_strided_slice %84 {offsets = [0, 0], sizes = [1, 256], strides = [1, 1]} : vector<1x768xf32> to vector<1x256xf32>
    %88 = vector.extract_strided_slice %84 {offsets = [0, 256], sizes = [1, 256], strides = [1, 1]} : vector<1x768xf32> to vector<1x256xf32>
    %89 = vector.extract_strided_slice %84 {offsets = [0, 512], sizes = [1, 256], strides = [1, 1]} : vector<1x768xf32> to vector<1x256xf32>
    %90 = arith.mulf %88, %72 : vector<1x256xf32>
    %91 = arith.mulf %87, %86 : vector<1x256xf32>
    %92 = arith.addf %90, %91 : vector<1x256xf32>
    %93 = math.tanh %92 : vector<1x256xf32>
    %94 = arith.mulf %89, %93 : vector<1x256xf32>
    %95 = vector.extract_strided_slice %11 {offsets = [4, 0], sizes = [1, 1024], strides = [1, 1]} : vector<8x1024xf32> to vector<1x1024xf32>
    %96 = arith.truncf %94 : vector<1x256xf32> to vector<1x256xbf16>
    %cst_24 = arith.constant dense<0.000000e+00> : vector<1x1024xf32>
    %97 = tpu.matmul %96, %12, %cst_24 {dimension_numbers = #tpu.dot_dimension_numbers<[1], [0], [0], [1], [0, 0, 1, 1], [], []>} : vector<1x256xbf16>, vector<256x1024xbf16>, vector<1x1024xf32> -> vector<1x1024xf32>
    %98 = arith.addf %95, %97 : vector<1x1024xf32>
    %99 = vector.extract_strided_slice %98 {offsets = [0, 0], sizes = [1, 768], strides = [1, 1]} : vector<1x1024xf32> to vector<1x768xf32>
    %100 = arith.negf %99 : vector<1x768xf32>
    %101 = math.exp %100 : vector<1x768xf32>
    %cst_25 = arith.constant 1.000000e+00 : f32
    %102 = vector.broadcast %cst_25 : f32 to vector<1x768xf32>
    %103 = arith.addf %102, %101 : vector<1x768xf32>
    %104 = arith.divf %102, %103 : vector<1x768xf32>
    %105 = vector.extract_strided_slice %98 {offsets = [0, 768], sizes = [1, 256], strides = [1, 1]} : vector<1x1024xf32> to vector<1x256xf32>
    %106 = math.tanh %105 : vector<1x256xf32>
    %107 = vector.extract_strided_slice %104 {offsets = [0, 0], sizes = [1, 256], strides = [1, 1]} : vector<1x768xf32> to vector<1x256xf32>
    %108 = vector.extract_strided_slice %104 {offsets = [0, 256], sizes = [1, 256], strides = [1, 1]} : vector<1x768xf32> to vector<1x256xf32>
    %109 = vector.extract_strided_slice %104 {offsets = [0, 512], sizes = [1, 256], strides = [1, 1]} : vector<1x768xf32> to vector<1x256xf32>
    %110 = arith.mulf %108, %92 : vector<1x256xf32>
    %111 = arith.mulf %107, %106 : vector<1x256xf32>
    %112 = arith.addf %110, %111 : vector<1x256xf32>
    %113 = math.tanh %112 : vector<1x256xf32>
    %114 = arith.mulf %109, %113 : vector<1x256xf32>
    %115 = vector.extract_strided_slice %11 {offsets = [5, 0], sizes = [1, 1024], strides = [1, 1]} : vector<8x1024xf32> to vector<1x1024xf32>
    %116 = arith.truncf %114 : vector<1x256xf32> to vector<1x256xbf16>
    %cst_26 = arith.constant dense<0.000000e+00> : vector<1x1024xf32>
    %117 = tpu.matmul %116, %12, %cst_26 {dimension_numbers = #tpu.dot_dimension_numbers<[1], [0], [0], [1], [0, 0, 1, 1], [], []>} : vector<1x256xbf16>, vector<256x1024xbf16>, vector<1x1024xf32> -> vector<1x1024xf32>
    %118 = arith.addf %115, %117 : vector<1x1024xf32>
    %119 = vector.extract_strided_slice %118 {offsets = [0, 0], sizes = [1, 768], strides = [1, 1]} : vector<1x1024xf32> to vector<1x768xf32>
    %120 = arith.negf %119 : vector<1x768xf32>
    %121 = math.exp %120 : vector<1x768xf32>
    %cst_27 = arith.constant 1.000000e+00 : f32
    %122 = vector.broadcast %cst_27 : f32 to vector<1x768xf32>
    %123 = arith.addf %122, %121 : vector<1x768xf32>
    %124 = arith.divf %122, %123 : vector<1x768xf32>
    %125 = vector.extract_strided_slice %118 {offsets = [0, 768], sizes = [1, 256], strides = [1, 1]} : vector<1x1024xf32> to vector<1x256xf32>
    %126 = math.tanh %125 : vector<1x256xf32>
    %127 = vector.extract_strided_slice %124 {offsets = [0, 0], sizes = [1, 256], strides = [1, 1]} : vector<1x768xf32> to vector<1x256xf32>
    %128 = vector.extract_strided_slice %124 {offsets = [0, 256], sizes = [1, 256], strides = [1, 1]} : vector<1x768xf32> to vector<1x256xf32>
    %129 = vector.extract_strided_slice %124 {offsets = [0, 512], sizes = [1, 256], strides = [1, 1]} : vector<1x768xf32> to vector<1x256xf32>
    %130 = arith.mulf %128, %112 : vector<1x256xf32>
    %131 = arith.mulf %127, %126 : vector<1x256xf32>
    %132 = arith.addf %130, %131 : vector<1x256xf32>
    %133 = math.tanh %132 : vector<1x256xf32>
    %134 = arith.mulf %129, %133 : vector<1x256xf32>
    %135 = vector.extract_strided_slice %11 {offsets = [6, 0], sizes = [1, 1024], strides = [1, 1]} : vector<8x1024xf32> to vector<1x1024xf32>
    %136 = arith.truncf %134 : vector<1x256xf32> to vector<1x256xbf16>
    %cst_28 = arith.constant dense<0.000000e+00> : vector<1x1024xf32>
    %137 = tpu.matmul %136, %12, %cst_28 {dimension_numbers = #tpu.dot_dimension_numbers<[1], [0], [0], [1], [0, 0, 1, 1], [], []>} : vector<1x256xbf16>, vector<256x1024xbf16>, vector<1x1024xf32> -> vector<1x1024xf32>
    %138 = arith.addf %135, %137 : vector<1x1024xf32>
    %139 = vector.extract_strided_slice %138 {offsets = [0, 0], sizes = [1, 768], strides = [1, 1]} : vector<1x1024xf32> to vector<1x768xf32>
    %140 = arith.negf %139 : vector<1x768xf32>
    %141 = math.exp %140 : vector<1x768xf32>
    %cst_29 = arith.constant 1.000000e+00 : f32
    %142 = vector.broadcast %cst_29 : f32 to vector<1x768xf32>
    %143 = arith.addf %142, %141 : vector<1x768xf32>
    %144 = arith.divf %142, %143 : vector<1x768xf32>
    %145 = vector.extract_strided_slice %138 {offsets = [0, 768], sizes = [1, 256], strides = [1, 1]} : vector<1x1024xf32> to vector<1x256xf32>
    %146 = math.tanh %145 : vector<1x256xf32>
    %147 = vector.extract_strided_slice %144 {offsets = [0, 0], sizes = [1, 256], strides = [1, 1]} : vector<1x768xf32> to vector<1x256xf32>
    %148 = vector.extract_strided_slice %144 {offsets = [0, 256], sizes = [1, 256], strides = [1, 1]} : vector<1x768xf32> to vector<1x256xf32>
    %149 = vector.extract_strided_slice %144 {offsets = [0, 512], sizes = [1, 256], strides = [1, 1]} : vector<1x768xf32> to vector<1x256xf32>
    %150 = arith.mulf %148, %132 : vector<1x256xf32>
    %151 = arith.mulf %147, %146 : vector<1x256xf32>
    %152 = arith.addf %150, %151 : vector<1x256xf32>
    %153 = math.tanh %152 : vector<1x256xf32>
    %154 = arith.mulf %149, %153 : vector<1x256xf32>
    %155 = vector.extract_strided_slice %11 {offsets = [7, 0], sizes = [1, 1024], strides = [1, 1]} : vector<8x1024xf32> to vector<1x1024xf32>
    %156 = arith.truncf %154 : vector<1x256xf32> to vector<1x256xbf16>
    %cst_30 = arith.constant dense<0.000000e+00> : vector<1x1024xf32>
    %157 = tpu.matmul %156, %12, %cst_30 {dimension_numbers = #tpu.dot_dimension_numbers<[1], [0], [0], [1], [0, 0, 1, 1], [], []>} : vector<1x256xbf16>, vector<256x1024xbf16>, vector<1x1024xf32> -> vector<1x1024xf32>
    %158 = arith.addf %155, %157 : vector<1x1024xf32>
    %159 = vector.extract_strided_slice %158 {offsets = [0, 0], sizes = [1, 768], strides = [1, 1]} : vector<1x1024xf32> to vector<1x768xf32>
    %160 = arith.negf %159 : vector<1x768xf32>
    %161 = math.exp %160 : vector<1x768xf32>
    %cst_31 = arith.constant 1.000000e+00 : f32
    %162 = vector.broadcast %cst_31 : f32 to vector<1x768xf32>
    %163 = arith.addf %162, %161 : vector<1x768xf32>
    %164 = arith.divf %162, %163 : vector<1x768xf32>
    %165 = vector.extract_strided_slice %158 {offsets = [0, 768], sizes = [1, 256], strides = [1, 1]} : vector<1x1024xf32> to vector<1x256xf32>
    %166 = math.tanh %165 : vector<1x256xf32>
    %167 = vector.extract_strided_slice %164 {offsets = [0, 0], sizes = [1, 256], strides = [1, 1]} : vector<1x768xf32> to vector<1x256xf32>
    %168 = vector.extract_strided_slice %164 {offsets = [0, 256], sizes = [1, 256], strides = [1, 1]} : vector<1x768xf32> to vector<1x256xf32>
    %169 = vector.extract_strided_slice %164 {offsets = [0, 512], sizes = [1, 256], strides = [1, 1]} : vector<1x768xf32> to vector<1x256xf32>
    %170 = arith.mulf %168, %152 : vector<1x256xf32>
    %171 = arith.mulf %167, %166 : vector<1x256xf32>
    %172 = arith.addf %170, %171 : vector<1x256xf32>
    %173 = math.tanh %172 : vector<1x256xf32>
    %174 = arith.mulf %169, %173 : vector<1x256xf32>
    %175 = arith.truncf %174 : vector<1x256xf32> to vector<1x256xbf16>
    %c0_32 = arith.constant 0 : index
    %c0_33 = arith.constant 0 : index
    %176 = vector.load %arg8[%c0_32, %c0_33] : memref<256x128xbf16, #tpu.memory_space<vmem>>, vector<256x128xbf16>
    %cst_34 = arith.constant dense<0.000000e+00> : vector<1x128xf32>
    %177 = tpu.matmul %175, %176, %cst_34 {dimension_numbers = #tpu.dot_dimension_numbers<[1], [0], [0], [1], [0, 0, 1, 1], [], []>} : vector<1x256xbf16>, vector<256x128xbf16>, vector<1x128xf32> -> vector<1x128xf32>
    %c0_35 = arith.constant 0 : index
    %c0_36 = arith.constant 0 : index
    %178 = vector.load %arg9[%c0_35, %c0_36] : memref<1x128xf32, #tpu.memory_space<vmem>>, vector<1x128xf32>
    %179 = arith.addf %177, %178 : vector<1x128xf32>
    %c0_37 = arith.constant 0 : index
    %c0_38 = arith.constant 0 : index
    %180 = vector.load %arg10[%c0_37, %c0_38] : memref<1x128xf32, #tpu.memory_space<vmem>>, vector<1x128xf32>
    tpu.vector_store %arg10[%c0_37, %c0_38], %179 {strides = array<i32>} : memref<1x128xf32, #tpu.memory_space<vmem>>, vector<1x128xf32>,
    %c0_39 = arith.constant 0 : index
    %c0_40 = arith.constant 0 : index
    %181 = vector.load %arg11[%c0_39, %c0_40] : memref<1x256xf32, #tpu.memory_space<vmem>>, vector<1x256xf32>
    tpu.vector_store %arg11[%c0_39, %c0_40], %174 {strides = array<i32>} : memref<1x256xf32, #tpu.memory_space<vmem>>, vector<1x256xf32>,
    return
  }
}

</mosaic_0001>

<llo_original>
// kernel: dominion_forward.1
$region0: #{dominion_forward.1}
  #allocation0 [shape = 'u32[]', space=smem, size = 0x4, offset = 0x4, fixed_abs, tag = 'smem constant byte address 0x4 - core index']
  #allocation1 [shape = 'u32[144,128]{1,0:T(1,128)}', space=vmem, size = 0x12000, scoped, tag = 'internal scratch']
  %s0 = inlined_call_operand.vmem [shape: f32[8,98], index: 0, kind: input, shape index: {}]
  %s1 = inlined_call_operand.vmem [shape: f32[8,196], index: 1, kind: input, shape index: {}]
  %s2 = inlined_call_operand.vmem [shape: f32[1,256], index: 2, kind: input, shape index: {}]
  %s3 = inlined_call_operand.vmem [shape: f32[1,256], index: 3, kind: input, shape index: {}]
  %s4 = inlined_call_operand.vmem [shape: bf16[98,1024], index: 4, kind: input, shape index: {}]
  %s5 = inlined_call_operand.hbm [shape: bf16[196,1024], index: 5, kind: input, shape index: {}]
  %s6 = inlined_call_operand.hbm [shape: bf16[256,1024], index: 6, kind: input, shape index: {}]
  %s7 = inlined_call_operand.hbm [shape: f32[1,1024], index: 7, kind: input, shape index: {}]
  %s8 = inlined_call_operand.vmem [shape: bf16[256,128], index: 8, kind: input, shape index: {}]
  %s9 = inlined_call_operand.vmem [shape: f32[1,128], index: 9, kind: input, shape index: {}]
  %s10 = inlined_call_operand.vmem [shape: f32[1,128], index: 10, kind: output, shape index: {0}]
  %s11 = inlined_call_operand.hbm [shape: f32[1,256], index: 11, kind: output, shape index: {1}]
  %12 = xla_tuple %s10, %s11
  %s13 = sld [smem:[#allocation0]]
  $region70: #{dominion_forward.1} parent=0
    _
  %s15 = ssub.s32 1, %s13
  %s16 = scalar_select 0, %s15, %s13
  $region1: #{dominion_forward.1} parent=0
    #allocation2 [shape = 'u8[409600]{0}', space=vmem, size = 0x64000, scoped, tag = 'input window, operand 5, single buffered']
    #allocation3 [shape = 's32[1]{0}', space=sflag, size = 0x4, scoped, tag = 'scoped memory for dominion_forward.1']
    #allocation4 [shape = 's32[1]{0}', space=sflag, size = 0x4, scoped, tag = 'scoped memory for dominion_forward.1']
    #allocation5 [shape = 'u8[524288]{0}', space=vmem, size = 0x80000, scoped, tag = 'input window, operand 6, single buffered']
    #allocation6 [shape = 's32[1]{0}', space=sflag, size = 0x4, scoped, tag = 'scoped memory for dominion_forward.1']
    #allocation7 [shape = 'u8[4096]{0}', space=vmem, size = 0x1000, scoped, tag = 'input window, operand 7, single buffered']
    #allocation8 [shape = 'u8[1024]{0}', space=vmem, size = 0x400, scoped, tag = 'output window, operand 1, single buffered']
    %17 = vsyncpa [#allocation3], 0
    %18 = vsyncpa [#allocation6], 0
    %19 = vsyncpa [#allocation4], 0
    // Predicated region
    $region2: #{dominion_forward.1} parent=1 // pred_check
      _
    $region3: #{dominion_forward.1} parent=1 // pred_check_branch
      %21 = sbr.rel (0) target = $region5
    $region4: #{dominion_forward.1} parent=1 // pred_region
      _
    $region5: #{dominion_forward.1} parent=1 // pred_fallthru
      _
    // Predicated region
    $region6: #{dominion_forward.1} parent=1 // pred_check
      _
    $region7: #{dominion_forward.1} parent=1 // pred_check_branch
      %23 = sbr.rel (0) target = $region9
    $region8: #{dominion_forward.1} parent=1 // pred_region
      _
    $region9: #{dominion_forward.1} parent=1 // pred_fallthru
      _
    // Predicated region
    $region10: #{dominion_forward.1} parent=1 // pred_check
      _
    $region11: #{dominion_forward.1} parent=1 // pred_check_branch
      %25 = sbr.rel (0) target = $region13
    $region12: #{dominion_forward.1} parent=1 // pred_region
      _
    $region13: #{dominion_forward.1} parent=1 // pred_fallthru
      _
    // Predicated region
    $region14: #{dominion_forward.1} parent=1 // pred_check
      _
    $region15: #{dominion_forward.1} parent=1 // pred_check_branch
      %27 = sbr.rel (0) target = $region17
    $region16: #{dominion_forward.1} parent=1 // pred_region
      _
    $region17: #{dominion_forward.1} parent=1 // pred_fallthru
      _
    // Predicated region
    $region18: #{dominion_forward.1} parent=1 // pred_check
      _
    $region19: #{dominion_forward.1} parent=1 // pred_check_branch
      %29 = sbr.rel (0) target = $region21
    $region20: #{dominion_forward.1} parent=1 // pred_region
      _
    $region21: #{dominion_forward.1} parent=1 // pred_fallthru
      _
    // Predicated region
    $region22: #{dominion_forward.1} parent=1 // pred_check
      _
    $region23: #{dominion_forward.1} parent=1 // pred_check_branch
      %31 = sbr.rel (0) target = $region25
    $region24: #{dominion_forward.1} parent=1 // pred_region
      %s33 = ssub.s32 12800, 12800
      %34 = vsyncadd [#allocation3], %s33
      %s35 = sshll.u32 [#allocation2], 4
      %s36 = int_to_ptr.vmem [resolvable:$true] %s35
      %41 = dma.hbm_to_vmem [thread:$0]  %s5, 12800, %s36, [#allocation3], 512, 512, 32
    $region25: #{dominion_forward.1} parent=1 // pred_fallthru
      _
    // Predicated region
    $region26: #{dominion_forward.1} parent=1 // pred_check
      _
    $region27: #{dominion_forward.1} parent=1 // pred_check_branch
      %43 = sbr.rel (0) target = $region29
    $region28: #{dominion_forward.1} parent=1 // pred_region
      %s45 = ssub.s32 16384, 16384
      %46 = vsyncadd [#allocation6], %s45
      %s47 = sshll.u32 [#allocation5], 4
      %s48 = int_to_ptr.vmem [resolvable:$true] %s47
      %53 = dma.hbm_to_vmem [thread:$0]  %s6, 16384, %s48, [#allocation6], 512, 512, 32
    $region29: #{dominion_forward.1} parent=1 // pred_fallthru
      _
    // Predicated region
    $region30: #{dominion_forward.1} parent=1 // pred_check
      _
    $region31: #{dominion_forward.1} parent=1 // pred_check_branch
      %55 = sbr.rel (0) target = $region33
    $region32: #{dominion_forward.1} parent=1 // pred_region
      %s57 = ssub.s32 128, 128
      %58 = vsyncadd [#allocation6], %s57
      %s60 = sshll.u32 [#allocation7], 4
      %s61 = int_to_ptr.vmem [resolvable:$true] %s60
      %63 = dma.hbm_to_vmem [thread:$0]  %s7, 128, %s61, [#allocation6]
    $region33: #{dominion_forward.1} parent=1 // pred_fallthru
      _
    // Predicated region
    $region34: #{dominion_forward.1} parent=1 // pred_check
      _
    $region35: #{dominion_forward.1} parent=1 // pred_check_branch
      %65 = sbr.rel (0) target = $region37
    $region36: #{dominion_forward.1} parent=1 // pred_region
      _
    $region37: #{dominion_forward.1} parent=1 // pred_fallthru
      _
    // Predicated region
    $region38: #{dominion_forward.1} parent=1 // pred_check
      _
    $region39: #{dominion_forward.1} parent=1 // pred_check_branch
      %67 = sbr.rel (0) target = $region41
    $region40: #{dominion_forward.1} parent=1 // pred_region
      _
    $region41: #{dominion_forward.1} parent=1 // pred_fallthru
      _
    // Predicated region
    $region42: #{dominion_forward.1} parent=1 // pred_check
      _
    $region43: #{dominion_forward.1} parent=1 // pred_check_branch
      %69 = sbr.rel (0) target = $region45
    $region44: #{dominion_forward.1} parent=1 // pred_region
      %70 = dma.done [#allocation3], 12800
    $region45: #{dominion_forward.1} parent=1 // pred_fallthru
      _
    // Predicated region
    $region46: #{dominion_forward.1} parent=1 // pred_check
      _
    $region47: #{dominion_forward.1} parent=1 // pred_check_branch
      %72 = sbr.rel (0) target = $region49
    $region48: #{dominion_forward.1} parent=1 // pred_region
      %73 = dma.done [#allocation6], 16384
    $region49: #{dominion_forward.1} parent=1 // pred_fallthru
      _
    // Predicated region
    $region50: #{dominion_forward.1} parent=1 // pred_check
      _
    $region51: #{dominion_forward.1} parent=1 // pred_check_branch
      %75 = sbr.rel (0) target = $region53
    $region52: #{dominion_forward.1} parent=1 // pred_region
      %76 = dma.done [#allocation6], 128
    $region53: #{dominion_forward.1} parent=1 // pred_fallthru
      _
    %v78 = vld [vmem:[%s0] sm:$0xff]
    %v79 = vpack.c.bf16 %v78, %v78
    %v80 = vld [vmem:[%s1] sm:$0xff]
    %v81 = vld [vmem:[%s1 + $0x8] sm:$0xff]
    %v82 = vpack.c.bf16 %v80, %v80
    %v83 = vpack.c.bf16 %v81, %v81
    %v84 = vld [vmem:[%s4] sm:$0xff]
    %v85 = vld [vmem:[%s4 + $0x8] sm:$0xff]
    %v86 = vld [vmem:[%s4 + $0x10] sm:$0xff]
    %v87 = vld [vmem:[%s4 + $0x18] sm:$0xff]
    %v88 = vld [vmem:[%s4 + $0x20] sm:$0xff]
    %v89 = vld [vmem:[%s4 + $0x28] sm:$0xff]
    %v90 = vld [vmem:[%s4 + $0x30] sm:$0xff]
    %v91 = vld [vmem:[%s4 + $0x38] sm:$0xff]
    %v92 = vld [vmem:[%s4 + $0x40] sm:$0xff]
    %v93 = vld [vmem:[%s4 + $0x48] sm:$0xff]
    %v94 = vld [vmem:[%s4 + $0x50] sm:$0xff]
    %v95 = vld [vmem:[%s4 + $0x58] sm:$0xff]
    %v96 = vld [vmem:[%s4 + $0x60] sm:$0xff]
    %v97 = vld [vmem:[%s4 + $0x68] sm:$0xff]
    %v98 = vld [vmem:[%s4 + $0x70] sm:$0xff]
    %v99 = vld [vmem:[%s4 + $0x78] sm:$0xff]
    %v100 = vld [vmem:[%s4 + $0x80] sm:$0xff]
    %v101 = vld [vmem:[%s4 + $0x88] sm:$0xff]
    %v102 = vld [vmem:[%s4 + $0x90] sm:$0xff]
    %v103 = vld [vmem:[%s4 + $0x98] sm:$0xff]
    %v104 = vld [vmem:[%s4 + $0xa0] sm:$0xff]
    %v105 = vld [vmem:[%s4 + $0xa8] sm:$0xff]
    %v106 = vld [vmem:[%s4 + $0xb0] sm:$0xff]
    %v107 = vld [vmem:[%s4 + $0xb8] sm:$0xff]
    %v108 = vld [vmem:[%s4 + $0xc0] sm:$0xff]
    %v109 = vld [vmem:[%s4 + $0xc8] sm:$0xff]
    %v110 = vld [vmem:[%s4 + $0xd0] sm:$0xff]
    %v111 = vld [vmem:[%s4 + $0xd8] sm:$0xff]
    %v112 = vld [vmem:[%s4 + $0xe0] sm:$0xff]
    %v113 = vld [vmem:[%s4 + $0xe8] sm:$0xff]
    %v114 = vld [vmem:[%s4 + $0xf0] sm:$0xff]
    %v115 = vld [vmem:[%s4 + $0xf8] sm:$0xff]
    %v116 = vld [vmem:[%s4 + $0x100] sm:$0xff]
    %v117 = vld [vmem:[%s4 + $0x108] sm:$0xff]
    %v118 = vld [vmem:[%s4 + $0x110] sm:$0xff]
    %v119 = vld [vmem:[%s4 + $0x118] sm:$0xff]
    %v120 = vld [vmem:[%s4 + $0x120] sm:$0xff]
    %v121 = vld [vmem:[%s4 + $0x128] sm:$0xff]
    %v122 = vld [vmem:[%s4 + $0x130] sm:$0xff]
    %v123 = vld [vmem:[%s4 + $0x138] sm:$0xff]
    %v124 = vld [vmem:[%s4 + $0x140] sm:$0xff]
    %v125 = vld [vmem:[%s4 + $0x148] sm:$0xff]
    %v126 = vld [vmem:[%s4 + $0x150] sm:$0xff]
    %v127 = vld [vmem:[%s4 + $0x158] sm:$0xff]
    %v128 = vld [vmem:[%s4 + $0x160] sm:$0xff]
    %v129 = vld [vmem:[%s4 + $0x168] sm:$0xff]
    %v130 = vld [vmem:[%s4 + $0x170] sm:$0xff]
    %v131 = vld [vmem:[%s4 + $0x178] sm:$0xff]
    %v132 = vld [vmem:[%s4 + $0x180] sm:$0x11]
    %v133 = vld [vmem:[%s4 + $0x188] sm:$0x11]
    %v134 = vld [vmem:[%s4 + $0x190] sm:$0x11]
    %v135 = vld [vmem:[%s4 + $0x198] sm:$0x11]
    %v136 = vld [vmem:[#allocation2] sm:$0xff]
    %v137 = vld [vmem:[#allocation2 + $0x8] sm:$0xff]
    %v138 = vld [vmem:[#allocation2 + $0x10] sm:$0xff]
    %v139 = vld [vmem:[#allocation2 + $0x18] sm:$0xff]
    %v140 = vld [vmem:[#allocation2 + $0x20] sm:$0xff]
    %v141 = vld [vmem:[#allocation2 + $0x28] sm:$0xff]
    %v142 = vld [vmem:[#allocation2 + $0x30] sm:$0xff]
    %v143 = vld [vmem:[#allocation2 + $0x38] sm:$0xff]
    %v144 = vld [vmem:[#allocation2 + $0x40] sm:$0xff]
    %v145 = vld [vmem:[#allocation2 + $0x48] sm:$0xff]
    %v146 = vld [vmem:[#allocation2 + $0x50] sm:$0xff]
    %v147 = vld [vmem:[#allocation2 + $0x58] sm:$0xff]
    %v148 = vld [vmem:[#allocation2 + $0x60] sm:$0xff]
    %v149 = vld [vmem:[#allocation2 + $0x68] sm:$0xff]
    %v150 = vld [vmem:[#allocation2 + $0x70] sm:$0xff]
    %v151 = vld [vmem:[#allocation2 + $0x78] sm:$0xff]
    %v152 = vld [vmem:[#allocation2 + $0x80] sm:$0xff]
    %v153 = vld [vmem:[#allocation2 + $0x88] sm:$0xff]
    %v154 = vld [vmem:[#allocation2 + $0x90] sm:$0xff]
    %v155 = vld [vmem:[#allocation2 + $0x98] sm:$0xff]
    %v156 = vld [vmem:[#allocation2 + $0xa0] sm:$0xff]
    %v157 = vld [vmem:[#allocation2 + $0xa8] sm:$0xff]
    %v158 = vld [vmem:[#allocation2 + $0xb0] sm:$0xff]
    %v159 = vld [vmem:[#allocation2 + $0xb8] sm:$0xff]
    %v160 = vld [vmem:[#allocation2 + $0xc0] sm:$0xff]
    %v161 = vld [vmem:[#allocation2 + $0xc8] sm:$0xff]
    %v162 = vld [vmem:[#allocation2 + $0xd0] sm:$0xff]
    %v163 = vld [vmem:[#allocation2 + $0xd8] sm:$0xff]
    %v164 = vld [vmem:[#allocation2 + $0xe0] sm:$0xff]
    %v165 = vld [vmem:[#allocation2 + $0xe8] sm:$0xff]
    %v166 = vld [vmem:[#allocation2 + $0xf0] sm:$0xff]
    %v167 = vld [vmem:[#allocation2 + $0xf8] sm:$0xff]
    %v168 = vld [vmem:[#allocation2 + $0x100] sm:$0xff]
    %v169 = vld [vmem:[#allocation2 + $0x108] sm:$0xff]
    %v170 = vld [vmem:[#allocation2 + $0x110] sm:$0xff]
    %v171 = vld [vmem:[#allocation2 + $0x118] sm:$0xff]
    %v172 = vld [vmem:[#allocation2 + $0x120] sm:$0xff]
    %v173 = vld [vmem:[#allocation2 + $0x128] sm:$0xff]
    %v174 = vld [vmem:[#allocation2 + $0x130] sm:$0xff]
    %v175 = vld [vmem:[#allocation2 + $0x138] sm:$0xff]
    %v176 = vld [vmem:[#allocation2 + $0x140] sm:$0xff]
    %v177 = vld [vmem:[#allocation2 + $0x148] sm:$0xff]
    %v178 = vld [vmem:[#allocation2 + $0x150] sm:$0xff]
    %v179 = vld [vmem:[#allocation2 + $0x158] sm:$0xff]
    %v180 = vld [vmem:[#allocation2 + $0x160] sm:$0xff]
    %v181 = vld [vmem:[#allocation2 + $0x168] sm:$0xff]
    %v182 = vld [vmem:[#allocation2 + $0x170] sm:$0xff]
    %v183 = vld [vmem:[#allocation2 + $0x178] sm:$0xff]
    %v184 = vld [vmem:[#allocation2 + $0x180] sm:$0xff]
    %v185 = vld [vmem:[#allocation2 + $0x188] sm:$0xff]
    %v186 = vld [vmem:[#allocation2 + $0x190] sm:$0xff]
    %v187 = vld [vmem:[#allocation2 + $0x198] sm:$0xff]
    %v188 = vld [vmem:[#allocation2 + $0x1a0] sm:$0xff]
    %v189 = vld [vmem:[#allocation2 + $0x1a8] sm:$0xff]
    %v190 = vld [vmem:[#allocation2 + $0x1b0] sm:$0xff]
    %v191 = vld [vmem:[#allocation2 + $0x1b8] sm:$0xff]
    %v192 = vld [vmem:[#allocation2 + $0x1c0] sm:$0xff]
    %v193 = vld [vmem:[#allocation2 + $0x1c8] sm:$0xff]
    %v194 = vld [vmem:[#allocation2 + $0x1d0] sm:$0xff]
    %v195 = vld [vmem:[#allocation2 + $0x1d8] sm:$0xff]
    %v196 = vld [vmem:[#allocation2 + $0x1e0] sm:$0xff]
    %v197 = vld [vmem:[#allocation2 + $0x1e8] sm:$0xff]
    %v198 = vld [vmem:[#allocation2 + $0x1f0] sm:$0xff]
    %v199 = vld [vmem:[#allocation2 + $0x1f8] sm:$0xff]
    %v200 = vld [vmem:[#allocation2 + $0x200] sm:$0xff]
    %v201 = vld [vmem:[#allocation2 + $0x208] sm:$0xff]
    %v202 = vld [vmem:[#allocation2 + $0x210] sm:$0xff]
    %v203 = vld [vmem:[#allocation2 + $0x218] sm:$0xff]
    %v204 = vld [vmem:[#allocation2 + $0x220] sm:$0xff]
    %v205 = vld [vmem:[#allocation2 + $0x228] sm:$0xff]
    %v206 = vld [vmem:[#allocation2 + $0x230] sm:$0xff]
    %v207 = vld [vmem:[#allocation2 + $0x238] sm:$0xff]
    %v208 = vld [vmem:[#allocation2 + $0x240] sm:$0xff]
    %v209 = vld [vmem:[#allocation2 + $0x248] sm:$0xff]
    %v210 = vld [vmem:[#allocation2 + $0x250] sm:$0xff]
    %v211 = vld [vmem:[#allocation2 + $0x258] sm:$0xff]
    %v212 = vld [vmem:[#allocation2 + $0x260] sm:$0xff]
    %v213 = vld [vmem:[#allocation2 + $0x268] sm:$0xff]
    %v214 = vld [vmem:[#allocation2 + $0x270] sm:$0xff]
    %v215 = vld [vmem:[#allocation2 + $0x278] sm:$0xff]
    %v216 = vld [vmem:[#allocation2 + $0x280] sm:$0xff]
    %v217 = vld [vmem:[#allocation2 + $0x288] sm:$0xff]
    %v218 = vld [vmem:[#allocation2 + $0x290] sm:$0xff]
    %v219 = vld [vmem:[#allocation2 + $0x298] sm:$0xff]
    %v220 = vld [vmem:[#allocation2 + $0x2a0] sm:$0xff]
    %v221 = vld [vmem:[#allocation2 + $0x2a8] sm:$0xff]
    %v222 = vld [vmem:[#allocation2 + $0x2b0] sm:$0xff]
    %v223 = vld [vmem:[#allocation2 + $0x2b8] sm:$0xff]
    %v224 = vld [vmem:[#allocation2 + $0x2c0] sm:$0xff]
    %v225 = vld [vmem:[#allocation2 + $0x2c8] sm:$0xff]
    %v226 = vld [vmem:[#allocation2 + $0x2d0] sm:$0xff]
    %v227 = vld [vmem:[#allocation2 + $0x2d8] sm:$0xff]
    %v228 = vld [vmem:[#allocation2 + $0x2e0] sm:$0xff]
    %v229 = vld [vmem:[#allocation2 + $0x2e8] sm:$0xff]
    %v230 = vld [vmem:[#allocation2 + $0x2f0] sm:$0xff]
    %v231 = vld [vmem:[#allocation2 + $0x2f8] sm:$0xff]
    %v232 = vld [vmem:[#allocation2 + $0x300] sm:$0x33]
    %v233 = vld [vmem:[#allocation2 + $0x308] sm:$0x33]
    %v234 = vld [vmem:[#allocation2 + $0x310] sm:$0x33]
    %v235 = vld [vmem:[#allocation2 + $0x318] sm:$0x33]
    %v336 = vunpack.c.l.b16 %v136
    %v337 = vunpack.c.h.b16 %v136
    %v338 = vunpack.c.l.b16 %v137
    %v339 = vunpack.c.h.b16 %v137
    %v340 = vunpack.c.l.b16 %v138
    %v341 = vunpack.c.h.b16 %v138
    %v342 = vunpack.c.l.b16 %v139
    %v343 = vunpack.c.h.b16 %v139
    %v344 = vunpack.c.l.b16 %v140
    %v345 = vunpack.c.h.b16 %v140
    %v346 = vunpack.c.l.b16 %v141
    %v347 = vunpack.c.h.b16 %v141
    %v348 = vunpack.c.l.b16 %v142
    %v349 = vunpack.c.h.b16 %v142
    %v350 = vunpack.c.l.b16 %v143
    %v351 = vunpack.c.h.b16 %v143
    %v352 = vunpack.c.l.b16 %v144
    %v353 = vunpack.c.h.b16 %v144
    %v354 = vunpack.c.l.b16 %v145
    %v355 = vunpack.c.h.b16 %v145
    %v356 = vunpack.c.l.b16 %v146
    %v357 = vunpack.c.h.b16 %v146
    %v358 = vunpack.c.l.b16 %v147
    %v359 = vunpack.c.h.b16 %v147
    %v360 = vunpack.c.l.b16 %v148
    %v361 = vunpack.c.h.b16 %v148
    %v362 = vunpack.c.l.b16 %v149
    %v363 = vunpack.c.h.b16 %v149
    %v364 = vunpack.c.l.b16 %v150
    %v365 = vunpack.c.h.b16 %v150
    %v366 = vunpack.c.l.b16 %v151
    %v367 = vunpack.c.h.b16 %v151
    %v368 = vunpack.c.l.b16 %v152
    %v369 = vunpack.c.h.b16 %v152
    %v370 = vunpack.c.l.b16 %v153
    %v371 = vunpack.c.h.b16 %v153
    %v372 = vunpack.c.l.b16 %v154
    %v373 = vunpack.c.h.b16 %v154
    %v374 = vunpack.c.l.b16 %v155
    %v375 = vunpack.c.h.b16 %v155
    %v376 = vunpack.c.l.b16 %v156
    %v377 = vunpack.c.h.b16 %v156
    %v378 = vunpack.c.l.b16 %v157
    %v379 = vunpack.c.h.b16 %v157
    %v380 = vunpack.c.l.b16 %v158
    %v381 = vunpack.c.h.b16 %v158
    %v382 = vunpack.c.l.b16 %v159
    %v383 = vunpack.c.h.b16 %v159
    %v384 = vunpack.c.l.b16 %v160
    %v385 = vunpack.c.h.b16 %v160
    %v386 = vunpack.c.l.b16 %v161
    %v387 = vunpack.c.h.b16 %v161
    %v388 = vunpack.c.l.b16 %v162
    %v389 = vunpack.c.h.b16 %v162
    %v390 = vunpack.c.l.b16 %v163
    %v391 = vunpack.c.h.b16 %v163
    %v392 = vunpack.c.l.b16 %v164
    %v393 = vunpack.c.h.b16 %v164
    %v394 = vunpack.c.l.b16 %v165
    %v395 = vunpack.c.h.b16 %v165
    %v396 = vunpack.c.l.b16 %v166
    %v397 = vunpack.c.h.b16 %v166
    %v398 = vunpack.c.l.b16 %v167
    %v399 = vunpack.c.h.b16 %v167
    %v400 = vunpack.c.l.b16 %v168
    %v401 = vunpack.c.h.b16 %v168
    %v402 = vunpack.c.l.b16 %v169
    %v403 = vunpack.c.h.b16 %v169
    %v404 = vunpack.c.l.b16 %v170
    %v405 = vunpack.c.h.b16 %v170
    %v406 = vunpack.c.l.b16 %v171
    %v407 = vunpack.c.h.b16 %v171
    %v408 = vunpack.c.l.b16 %v172
    %v409 = vunpack.c.h.b16 %v172
    %v410 = vunpack.c.l.b16 %v173
    %v411 = vunpack.c.h.b16 %v173
    %v412 = vunpack.c.l.b16 %v174
    %v413 = vunpack.c.h.b16 %v174
    %v414 = vunpack.c.l.b16 %v175
    %v415 = vunpack.c.h.b16 %v175
    %v416 = vunpack.c.l.b16 %v176
    %v417 = vunpack.c.h.b16 %v176
    %v418 = vunpack.c.l.b16 %v177
    %v419 = vunpack.c.h.b16 %v177
    %v420 = vunpack.c.l.b16 %v178
    %v421 = vunpack.c.h.b16 %v178
    %v422 = vunpack.c.l.b16 %v179
    %v423 = vunpack.c.h.b16 %v179
    %v424 = vunpack.c.l.b16 %v180
    %v425 = vunpack.c.h.b16 %v180
    %v426 = vunpack.c.l.b16 %v181
    %v427 = vunpack.c.h.b16 %v181
    %v428 = vunpack.c.l.b16 %v182
    %v429 = vunpack.c.h.b16 %v182
    %v430 = vunpack.c.l.b16 %v183
    %v431 = vunpack.c.h.b16 %v183
    %v432 = vunpack.c.l.b16 %v184
    %v433 = vunpack.c.h.b16 %v184
    %v434 = vunpack.c.l.b16 %v185
    %v435 = vunpack.c.h.b16 %v185
    %v436 = vunpack.c.l.b16 %v186
    %v437 = vunpack.c.h.b16 %v186
    %v438 = vunpack.c.l.b16 %v187
    %v439 = vunpack.c.h.b16 %v187
    %v440 = vunpack.c.l.b16 %v188
    %v441 = vunpack.c.h.b16 %v188
    %v442 = vunpack.c.l.b16 %v189
    %v443 = vunpack.c.h.b16 %v189
    %v444 = vunpack.c.l.b16 %v190
    %v445 = vunpack.c.h.b16 %v190
    %v446 = vunpack.c.l.b16 %v191
    %v447 = vunpack.c.h.b16 %v191
    %v448 = vunpack.c.l.b16 %v192
    %v449 = vunpack.c.h.b16 %v192
    %v450 = vunpack.c.l.b16 %v193
    %v451 = vunpack.c.h.b16 %v193
    %v452 = vunpack.c.l.b16 %v194
    %v453 = vunpack.c.h.b16 %v194
    %v454 = vunpack.c.l.b16 %v195
    %v455 = vunpack.c.h.b16 %v195
    %v456 = vunpack.c.l.b16 %v196
    %v457 = vunpack.c.h.b16 %v196
    %v458 = vunpack.c.l.b16 %v197
    %v459 = vunpack.c.h.b16 %v197
    %v460 = vunpack.c.l.b16 %v198
    %v461 = vunpack.c.h.b16 %v198
    %v462 = vunpack.c.l.b16 %v199
    %v463 = vunpack.c.h.b16 %v199
    %v464 = vunpack.c.l.b16 %v200
    %v465 = vunpack.c.h.b16 %v200
    %v466 = vunpack.c.l.b16 %v201
    %v467 = vunpack.c.h.b16 %v201
    %v468 = vunpack.c.l.b16 %v202
    %v469 = vunpack.c.h.b16 %v202
    %v470 = vunpack.c.l.b16 %v203
    %v471 = vunpack.c.h.b16 %v203
    %v472 = vunpack.c.l.b16 %v204
    %v473 = vunpack.c.h.b16 %v204
    %v474 = vunpack.c.l.b16 %v205
    %v475 = vunpack.c.h.b16 %v205
    %v476 = vunpack.c.l.b16 %v206
    %v477 = vunpack.c.h.b16 %v206
    %v478 = vunpack.c.l.b16 %v207
    %v479 = vunpack.c.h.b16 %v207
    %v480 = vunpack.c.l.b16 %v208
    %v481 = vunpack.c.h.b16 %v208
    %v482 = vunpack.c.l.b16 %v209
    %v483 = vunpack.c.h.b16 %v209
    %v484 = vunpack.c.l.b16 %v210
    %v485 = vunpack.c.h.b16 %v210
    %v486 = vunpack.c.l.b16 %v211
    %v487 = vunpack.c.h.b16 %v211
    %v488 = vunpack.c.l.b16 %v212
    %v489 = vunpack.c.h.b16 %v212
    %v490 = vunpack.c.l.b16 %v213
    %v491 = vunpack.c.h.b16 %v213
    %v492 = vunpack.c.l.b16 %v214
    %v493 = vunpack.c.h.b16 %v214
    %v494 = vunpack.c.l.b16 %v215
    %v495 = vunpack.c.h.b16 %v215
    %v496 = vunpack.c.l.b16 %v216
    %v497 = vunpack.c.h.b16 %v216
    %v498 = vunpack.c.l.b16 %v217
    %v499 = vunpack.c.h.b16 %v217
    %v500 = vunpack.c.l.b16 %v218
    %v501 = vunpack.c.h.b16 %v218
    %v502 = vunpack.c.l.b16 %v219
    %v503 = vunpack.c.h.b16 %v219
    %v504 = vunpack.c.l.b16 %v220
    %v505 = vunpack.c.h.b16 %v220
    %v506 = vunpack.c.l.b16 %v221
    %v507 = vunpack.c.h.b16 %v221
    %v508 = vunpack.c.l.b16 %v222
    %v509 = vunpack.c.h.b16 %v222
    %v510 = vunpack.c.l.b16 %v223
    %v511 = vunpack.c.h.b16 %v223
    %v512 = vunpack.c.l.b16 %v224
    %v513 = vunpack.c.h.b16 %v224
    %v514 = vunpack.c.l.b16 %v225
    %v515 = vunpack.c.h.b16 %v225
    %v516 = vunpack.c.l.b16 %v226
    %v517 = vunpack.c.h.b16 %v226
    %v518 = vunpack.c.l.b16 %v227
    %v519 = vunpack.c.h.b16 %v227
    %v520 = vunpack.c.l.b16 %v228
    %v521 = vunpack.c.h.b16 %v228
    %v522 = vunpack.c.l.b16 %v229
    %v523 = vunpack.c.h.b16 %v229
    %v524 = vunpack.c.l.b16 %v230
    %v525 = vunpack.c.h.b16 %v230
    %v526 = vunpack.c.l.b16 %v231
    %v527 = vunpack.c.h.b16 %v231
    %v528 = vunpack.c.l.b16 %v232
    %v529 = vunpack.c.h.b16 %v232
    %v530 = vunpack.c.l.b16 %v233
    %v531 = vunpack.c.h.b16 %v233
    %v532 = vunpack.c.l.b16 %v234
    %v533 = vunpack.c.h.b16 %v234
    %v534 = vunpack.c.l.b16 %v235
    %v535 = vunpack.c.h.b16 %v235
    %v536 = vpack.c.b16 %v344, %v336
    %v537 = vpack.c.b16 %v345, %v337
    %v538 = vpack.c.b16 %v346, %v338
    %v539 = vpack.c.b16 %v347, %v339
    %v540 = vpack.c.b16 %v348, %v340
    %v541 = vpack.c.b16 %v349, %v341
    %v542 = vpack.c.b16 %v350, %v342
    %v543 = vpack.c.b16 %v351, %v343
    %v544 = vpack.c.b16 %v360, %v352
    %v545 = vpack.c.b16 %v361, %v353
    %v546 = vpack.c.b16 %v362, %v354
    %v547 = vpack.c.b16 %v363, %v355
    %v548 = vpack.c.b16 %v364, %v356
    %v549 = vpack.c.b16 %v365, %v357
    %v550 = vpack.c.b16 %v366, %v358
    %v551 = vpack.c.b16 %v367, %v359
    %v552 = vpack.c.b16 %v376, %v368
    %v553 = vpack.c.b16 %v377, %v369
    %v554 = vpack.c.b16 %v378, %v370
    %v555 = vpack.c.b16 %v379, %v371
    %v556 = vpack.c.b16 %v380, %v372
    %v557 = vpack.c.b16 %v381, %v373
    %v558 = vpack.c.b16 %v382, %v374
    %v559 = vpack.c.b16 %v383, %v375
    %v560 = vpack.c.b16 %v392, %v384
    %v561 = vpack.c.b16 %v393, %v385
    %v562 = vpack.c.b16 %v394, %v386
    %v563 = vpack.c.b16 %v395, %v387
    %v564 = vpack.c.b16 %v396, %v388
    %v565 = vpack.c.b16 %v397, %v389
    %v566 = vpack.c.b16 %v398, %v390
    %v567 = vpack.c.b16 %v399, %v391
    %v568 = vpack.c.b16 %v408, %v400
    %v569 = vpack.c.b16 %v409, %v401
    %v570 = vpack.c.b16 %v410, %v402
    %v571 = vpack.c.b16 %v411, %v403
    %v572 = vpack.c.b16 %v412, %v404
    %v573 = vpack.c.b16 %v413, %v405
    %v574 = vpack.c.b16 %v414, %v406
    %v575 = vpack.c.b16 %v415, %v407
    %v576 = vpack.c.b16 %v424, %v416
    %v577 = vpack.c.b16 %v425, %v417
    %v578 = vpack.c.b16 %v426, %v418
    %v579 = vpack.c.b16 %v427, %v419
    %v580 = vpack.c.b16 %v428, %v420
    %v581 = vpack.c.b16 %v429, %v421
    %v582 = vpack.c.b16 %v430, %v422
    %v583 = vpack.c.b16 %v431, %v423
    %v584 = vpack.c.b16 %v440, %v432
    %v585 = vpack.c.b16 %v441, %v433
    %v586 = vpack.c.b16 %v442, %v434
    %v587 = vpack.c.b16 %v443, %v435
    %v588 = vpack.c.b16 %v444, %v436
    %v589 = vpack.c.b16 %v445, %v437
    %v590 = vpack.c.b16 %v446, %v438
    %v591 = vpack.c.b16 %v447, %v439
    %v592 = vpack.c.b16 %v456, %v448
    %v593 = vpack.c.b16 %v457, %v449
    %v594 = vpack.c.b16 %v458, %v450
    %v595 = vpack.c.b16 %v459, %v451
    %v596 = vpack.c.b16 %v460, %v452
    %v597 = vpack.c.b16 %v461, %v453
    %v598 = vpack.c.b16 %v462, %v454
    %v599 = vpack.c.b16 %v463, %v455
    %v600 = vpack.c.b16 %v472, %v464
    %v601 = vpack.c.b16 %v473, %v465
    %v602 = vpack.c.b16 %v474, %v466
    %v603 = vpack.c.b16 %v475, %v467
    %v604 = vpack.c.b16 %v476, %v468
    %v605 = vpack.c.b16 %v477, %v469
    %v606 = vpack.c.b16 %v478, %v470
    %v607 = vpack.c.b16 %v479, %v471
    %v608 = vpack.c.b16 %v488, %v480
    %v609 = vpack.c.b16 %v489, %v481
    %v610 = vpack.c.b16 %v490, %v482
    %v611 = vpack.c.b16 %v491, %v483
    %v612 = vpack.c.b16 %v492, %v484
    %v613 = vpack.c.b16 %v493, %v485
    %v614 = vpack.c.b16 %v494, %v486
    %v615 = vpack.c.b16 %v495, %v487
    %v616 = vpack.c.b16 %v504, %v496
    %v617 = vpack.c.b16 %v505, %v497
    %v618 = vpack.c.b16 %v506, %v498
    %v619 = vpack.c.b16 %v507, %v499
    %v620 = vpack.c.b16 %v508, %v500
    %v621 = vpack.c.b16 %v509, %v501
    %v622 = vpack.c.b16 %v510, %v502
    %v623 = vpack.c.b16 %v511, %v503
    %v624 = vpack.c.b16 %v520, %v512
    %v625 = vpack.c.b16 %v521, %v513
    %v626 = vpack.c.b16 %v522, %v514
    %v627 = vpack.c.b16 %v523, %v515
    %v628 = vpack.c.b16 %v524, %v516
    %v629 = vpack.c.b16 %v525, %v517
    %v630 = vpack.c.b16 %v526, %v518
    %v631 = vpack.c.b16 %v527, %v519
    %v632 = vpack.c.b16 %v528, %v528
    %v633 = vpack.c.b16 %v529, %v529
    %v634 = vpack.c.b16 %v530, %v530
    %v635 = vpack.c.b16 %v531, %v531
    %v636 = vpack.c.b16 %v532, %v532
    %v637 = vpack.c.b16 %v533, %v533
    %v638 = vpack.c.b16 %v534, %v534
    %v639 = vpack.c.b16 %v535, %v535
    %vm736 = vcmask 556032
    %v738 = vsel %vm736, %v83, 0
    %vm740 = vcmask 1041408
    %v742 = vsel %vm740, %v632, 0
    %v745 = vsel %vm740, %v633, 0
    %v748 = vsel %vm740, %v634, 0
    %v751 = vsel %vm740, %v635, 0
    %v754 = vsel %vm740, %v636, 0
    %v757 = vsel %vm740, %v637, 0
    %v760 = vsel %vm740, %v638, 0
    %v763 = vsel %vm740, %v639, 0
    %765 = vmatprep.subr.bf16.mxu0 %v537
    %766 = vmatpush1.bf16.msra.mxu0 %v536
    %767 = vmatprep.subr.bf16.mxu0 %v545
    %768 = vmatpush1.bf16.msra.mxu0 %v544
    %769 = vmatprep.subr.bf16.mxu0 %v553
    %770 = vmatpush1.bf16.msra.mxu0 %v552
    %771 = vmatprep.subr.bf16.mxu0 %v561
    %772 = vmatpush1.bf16.msra.mxu0 %v560
    %773 = vmatprep.subr.bf16.mxu0 %v569
    %774 = vmatpush1.bf16.msra.mxu0 %v568
    %775 = vmatprep.subr.bf16.mxu0 %v577
    %776 = vmatpush1.bf16.msra.mxu0 %v576
    %777 = vmatprep.subr.bf16.mxu0 %v585
    %778 = vmatpush1.bf16.msra.mxu0 %v584
    %779 = vmatprep.subr.bf16.mxu0 %v593
    %780 = vmatpush1.bf16.msra.mxu0 %v592
    %781 = vmatprep.subr.bf16.mxu0 %v601
    %782 = vmatpush1.bf16.msra.mxu0 %v600
    %783 = vmatprep.subr.bf16.mxu0 %v609
    %784 = vmatpush1.bf16.msra.mxu0 %v608
    %785 = vmatprep.subr.bf16.mxu0 %v617
    %786 = vmatpush1.bf16.msra.mxu0 %v616
    %787 = vmatprep.subr.bf16.mxu0 %v625
    %788 = vmatpush1.bf16.msra.mxu0 %v624
    %789 = vmatprep.subr.bf16.mxu0 %v745
    %790 = vmatpush1.bf16.msra.mxu0 %v742
    %791 = vmatprep.subr.bf16.mxu0 0
    %792 = vmatpush1.bf16.msra.mxu0 0
    %793 = vmatprep.subr.bf16.mxu0 0
    %794 = vmatpush1.bf16.msra.mxu0 0
    %795 = vmatprep.subr.bf16.mxu0 0
    %796 = vmatpush1.bf16.msra.mxu0 0
    %797 = vmatprep.mubr.bf16.mxu0 %v738
    %798 = vmatmul.mubr.bf16.gmra.mrb[0].mxu0 %v82
    %v799 = vpop.f32.mrb[0].mxu0
    %v800 = vadd.f32 0.0, %v799
    %v801 = vpop.f32.mrb[0].mxu0
    %v802 = vadd.f32 0.0, %v801
    %v803 = vpop.f32.mrb[0].mxu0
    %v804 = vpop.f32.mrb[0].mxu0
    %805 = vdwg.mxu0
    %806 = vmatprep.subr.bf16.mxu0 %v539
    %807 = vmatpush1.bf16.msra.mxu0 %v538
    %808 = vmatprep.subr.bf16.mxu0 %v547
    %809 = vmatpush1.bf16.msra.mxu0 %v546
    %810 = vmatprep.subr.bf16.mxu0 %v555
    %811 = vmatpush1.bf16.msra.mxu0 %v554
    %812 = vmatprep.subr.bf16.mxu0 %v563
    %813 = vmatpush1.bf16.msra.mxu0 %v562
    %814 = vmatprep.subr.bf16.mxu0 %v571
    %815 = vmatpush1.bf16.msra.mxu0 %v570
    %816 = vmatprep.subr.bf16.mxu0 %v579
    %817 = vmatpush1.bf16.msra.mxu0 %v578
    %818 = vmatprep.subr.bf16.mxu0 %v587
    %819 = vmatpush1.bf16.msra.mxu0 %v586
    %820 = vmatprep.subr.bf16.mxu0 %v595
    %821 = vmatpush1.bf16.msra.mxu0 %v594
    %822 = vmatprep.subr.bf16.mxu0 %v603
    %823 = vmatpush1.bf16.msra.mxu0 %v602
    %824 = vmatprep.subr.bf16.mxu0 %v611
    %825 = vmatpush1.bf16.msra.mxu0 %v610
    %826 = vmatprep.subr.bf16.mxu0 %v619
    %827 = vmatpush1.bf16.msra.mxu0 %v618
    %828 = vmatprep.subr.bf16.mxu0 %v627
    %829 = vmatpush1.bf16.msra.mxu0 %v626
    %830 = vmatprep.subr.bf16.mxu0 %v751
    %831 = vmatpush1.bf16.msra.mxu0 %v748
    %832 = vmatprep.subr.bf16.mxu0 0
    %833 = vmatpush1.bf16.msra.mxu0 0
    %834 = vmatprep.subr.bf16.mxu0 0
    %835 = vmatpush1.bf16.msra.mxu0 0
    %836 = vmatprep.subr.bf16.mxu0 0
    %837 = vmatpush1.bf16.msra.mxu0 0
    %838 = vmatprep.mubr.bf16.mxu0 %v738
    %839 = vmatmul.mubr.bf16.gmra.mrb[0].mxu0 %v82
    %v840 = vpop.f32.mrb[0].mxu0
    %v841 = vadd.f32 0.0, %v840
    %v842 = vpop.f32.mrb[0].mxu0
    %v843 = vadd.f32 0.0, %v842
    %v844 = vpop.f32.mrb[0].mxu0
    %v845 = vpop.f32.mrb[0].mxu0
    %846 = vdwg.mxu0
    %847 = vmatprep.subr.bf16.mxu0 %v541
    %848 = vmatpush1.bf16.msra.mxu0 %v540
    %849 = vmatprep.subr.bf16.mxu0 %v549
    %850 = vmatpush1.bf16.msra.mxu0 %v548
    %851 = vmatprep.subr.bf16.mxu0 %v557
    %852 = vmatpush1.bf16.msra.mxu0 %v556
    %853 = vmatprep.subr.bf16.mxu0 %v565
    %854 = vmatpush1.bf16.msra.mxu0 %v564
    %855 = vmatprep.subr.bf16.mxu0 %v573
    %856 = vmatpush1.bf16.msra.mxu0 %v572
    %857 = vmatprep.subr.bf16.mxu0 %v581
    %858 = vmatpush1.bf16.msra.mxu0 %v580
    %859 = vmatprep.subr.bf16.mxu0 %v589
    %860 = vmatpush1.bf16.msra.mxu0 %v588
    %861 = vmatprep.subr.bf16.mxu0 %v597
    %862 = vmatpush1.bf16.msra.mxu0 %v596
    %863 = vmatprep.subr.bf16.mxu0 %v605
    %864 = vmatpush1.bf16.msra.mxu0 %v604
    %865 = vmatprep.subr.bf16.mxu0 %v613
    %866 = vmatpush1.bf16.msra.mxu0 %v612
    %867 = vmatprep.subr.bf16.mxu0 %v621
    %868 = vmatpush1.bf16.msra.mxu0 %v620
    %869 = vmatprep.subr.bf16.mxu0 %v629
    %870 = vmatpush1.bf16.msra.mxu0 %v628
    %871 = vmatprep.subr.bf16.mxu0 %v757
    %872 = vmatpush1.bf16.msra.mxu0 %v754
    %873 = vmatprep.subr.bf16.mxu0 0
    %874 = vmatpush1.bf16.msra.mxu0 0
    %875 = vmatprep.subr.bf16.mxu0 0
    %876 = vmatpush1.bf16.msra.mxu0 0
    %877 = vmatprep.subr.bf16.mxu0 0
    %878 = vmatpush1.bf16.msra.mxu0 0
    %879 = vmatprep.mubr.bf16.mxu0 %v738
    %880 = vmatmul.mubr.bf16.gmra.mrb[0].mxu0 %v82
    %v881 = vpop.f32.mrb[0].mxu0
    %v882 = vadd.f32 0.0, %v881
    %v883 = vpop.f32.mrb[0].mxu0
    %v884 = vadd.f32 0.0, %v883
    %v885 = vpop.f32.mrb[0].mxu0
    %v886 = vpop.f32.mrb[0].mxu0
    %887 = vdwg.mxu0
    %888 = vmatprep.subr.bf16.mxu0 %v543
    %889 = vmatpush1.bf16.msra.mxu0 %v542
    %890 = vmatprep.subr.bf16.mxu0 %v551
    %891 = vmatpush1.bf16.msra.mxu0 %v550
    %892 = vmatprep.subr.bf16.mxu0 %v559
    %893 = vmatpush1.bf16.msra.mxu0 %v558
    %894 = vmatprep.subr.bf16.mxu0 %v567
    %895 = vmatpush1.bf16.msra.mxu0 %v566
    %896 = vmatprep.subr.bf16.mxu0 %v575
    %897 = vmatpush1.bf16.msra.mxu0 %v574
    %898 = vmatprep.subr.bf16.mxu0 %v583
    %899 = vmatpush1.bf16.msra.mxu0 %v582
    %900 = vmatprep.subr.bf16.mxu0 %v591
    %901 = vmatpush1.bf16.msra.mxu0 %v590
    %902 = vmatprep.subr.bf16.mxu0 %v599
    %903 = vmatpush1.bf16.msra.mxu0 %v598
    %904 = vmatprep.subr.bf16.mxu0 %v607
    %905 = vmatpush1.bf16.msra.mxu0 %v606
    %906 = vmatprep.subr.bf16.mxu0 %v615
    %907 = vmatpush1.bf16.msra.mxu0 %v614
    %908 = vmatprep.subr.bf16.mxu0 %v623
    %909 = vmatpush1.bf16.msra.mxu0 %v622
    %910 = vmatprep.subr.bf16.mxu0 %v631
    %911 = vmatpush1.bf16.msra.mxu0 %v630
    %912 = vmatprep.subr.bf16.mxu0 %v763
    %913 = vmatpush1.bf16.msra.mxu0 %v760
    %914 = vmatprep.subr.bf16.mxu0 0
    %915 = vmatpush1.bf16.msra.mxu0 0
    %916 = vmatprep.subr.bf16.mxu0 0
    %917 = vmatpush1.bf16.msra.mxu0 0
    %918 = vmatprep.subr.bf16.mxu0 0
    %919 = vmatpush1.bf16.msra.mxu0 0
    %920 = vmatprep.mubr.bf16.mxu0 %v738
    %921 = vmatmul.mubr.bf16.gmra.mrb[0].mxu0 %v82
    %v922 = vpop.f32.mrb[0].mxu0
    %v923 = vadd.f32 0.0, %v922
    %v924 = vpop.f32.mrb[0].mxu0
    %v925 = vadd.f32 0.0, %v924
    %v926 = vpop.f32.mrb[0].mxu0
    %v927 = vpop.f32.mrb[0].mxu0
    %928 = vdwg.mxu0
    %v981 = vunpack.c.l.b16 %v84
    %v982 = vunpack.c.h.b16 %v84
    %v983 = vunpack.c.l.b16 %v85
    %v984 = vunpack.c.h.b16 %v85
    %v985 = vunpack.c.l.b16 %v86
    %v986 = vunpack.c.h.b16 %v86
    %v987 = vunpack.c.l.b16 %v87
    %v988 = vunpack.c.h.b16 %v87
    %v989 = vunpack.c.l.b16 %v88
    %v990 = vunpack.c.h.b16 %v88
    %v991 = vunpack.c.l.b16 %v89
    %v992 = vunpack.c.h.b16 %v89
    %v993 = vunpack.c.l.b16 %v90
    %v994 = vunpack.c.h.b16 %v90
    %v995 = vunpack.c.l.b16 %v91
    %v996 = vunpack.c.h.b16 %v91
    %v997 = vunpack.c.l.b16 %v92
    %v998 = vunpack.c.h.b16 %v92
    %v999 = vunpack.c.l.b16 %v93
    %v1000 = vunpack.c.h.b16 %v93
    %v1001 = vunpack.c.l.b16 %v94
    %v1002 = vunpack.c.h.b16 %v94
    %v1003 = vunpack.c.l.b16 %v95
    %v1004 = vunpack.c.h.b16 %v95
    %v1005 = vunpack.c.l.b16 %v96
    %v1006 = vunpack.c.h.b16 %v96
    %v1007 = vunpack.c.l.b16 %v97
    %v1008 = vunpack.c.h.b16 %v97
    %v1009 = vunpack.c.l.b16 %v98
    %v1010 = vunpack.c.h.b16 %v98
    %v1011 = vunpack.c.l.b16 %v99
    %v1012 = vunpack.c.h.b16 %v99
    %v1013 = vunpack.c.l.b16 %v100
    %v1014 = vunpack.c.h.b16 %v100
    %v1015 = vunpack.c.l.b16 %v101
    %v1016 = vunpack.c.h.b16 %v101
    %v1017 = vunpack.c.l.b16 %v102
    %v1018 = vunpack.c.h.b16 %v102
    %v1019 = vunpack.c.l.b16 %v103
    %v1020 = vunpack.c.h.b16 %v103
    %v1021 = vunpack.c.l.b16 %v104
    %v1022 = vunpack.c.h.b16 %v104
    %v1023 = vunpack.c.l.b16 %v105
    %v1024 = vunpack.c.h.b16 %v105
    %v1025 = vunpack.c.l.b16 %v106
    %v1026 = vunpack.c.h.b16 %v106
    %v1027 = vunpack.c.l.b16 %v107
    %v1028 = vunpack.c.h.b16 %v107
    %v1029 = vunpack.c.l.b16 %v108
    %v1030 = vunpack.c.h.b16 %v108
    %v1031 = vunpack.c.l.b16 %v109
    %v1032 = vunpack.c.h.b16 %v109
    %v1033 = vunpack.c.l.b16 %v110
    %v1034 = vunpack.c.h.b16 %v110
    %v1035 = vunpack.c.l.b16 %v111
    %v1036 = vunpack.c.h.b16 %v111
    %v1037 = vunpack.c.l.b16 %v112
    %v1038 = vunpack.c.h.b16 %v112
    %v1039 = vunpack.c.l.b16 %v113
    %v1040 = vunpack.c.h.b16 %v113
    %v1041 = vunpack.c.l.b16 %v114
    %v1042 = vunpack.c.h.b16 %v114
    %v1043 = vunpack.c.l.b16 %v115
    %v1044 = vunpack.c.h.b16 %v115
    %v1045 = vunpack.c.l.b16 %v116
    %v1046 = vunpack.c.h.b16 %v116
    %v1047 = vunpack.c.l.b16 %v117
    %v1048 = vunpack.c.h.b16 %v117
    %v1049 = vunpack.c.l.b16 %v118
    %v1050 = vunpack.c.h.b16 %v118
    %v1051 = vunpack.c.l.b16 %v119
    %v1052 = vunpack.c.h.b16 %v119
    %v1053 = vunpack.c.l.b16 %v120
    %v1054 = vunpack.c.h.b16 %v120
    %v1055 = vunpack.c.l.b16 %v121
    %v1056 = vunpack.c.h.b16 %v121
    %v1057 = vunpack.c.l.b16 %v122
    %v1058 = vunpack.c.h.b16 %v122
    %v1059 = vunpack.c.l.b16 %v123
    %v1060 = vunpack.c.h.b16 %v123
    %v1061 = vunpack.c.l.b16 %v124
    %v1062 = vunpack.c.h.b16 %v124
    %v1063 = vunpack.c.l.b16 %v125
    %v1064 = vunpack.c.h.b16 %v125
    %v1065 = vunpack.c.l.b16 %v126
    %v1066 = vunpack.c.h.b16 %v126
    %v1067 = vunpack.c.l.b16 %v127
    %v1068 = vunpack.c.h.b16 %v127
    %v1069 = vunpack.c.l.b16 %v128
    %v1070 = vunpack.c.h.b16 %v128
    %v1071 = vunpack.c.l.b16 %v129
    %v1072 = vunpack.c.h.b16 %v129
    %v1073 = vunpack.c.l.b16 %v130
    %v1074 = vunpack.c.h.b16 %v130
    %v1075 = vunpack.c.l.b16 %v131
    %v1076 = vunpack.c.h.b16 %v131
    %v1077 = vunpack.c.l.b16 %v132
    %v1078 = vunpack.c.h.b16 %v132
    %v1079 = vunpack.c.l.b16 %v133
    %v1080 = vunpack.c.h.b16 %v133
    %v1081 = vunpack.c.l.b16 %v134
    %v1082 = vunpack.c.h.b16 %v134
    %v1083 = vunpack.c.l.b16 %v135
    %v1084 = vunpack.c.h.b16 %v135
    %v1085 = vpack.c.b16 %v989, %v981
    %v1086 = vpack.c.b16 %v990, %v982
    %v1087 = vpack.c.b16 %v991, %v983
    %v1088 = vpack.c.b16 %v992, %v984
    %v1089 = vpack.c.b16 %v993, %v985
    %v1090 = vpack.c.b16 %v994, %v986
    %v1091 = vpack.c.b16 %v995, %v987
    %v1092 = vpack.c.b16 %v996, %v988
    %v1093 = vpack.c.b16 %v1005, %v997
    %v1094 = vpack.c.b16 %v1006, %v998
    %v1095 = vpack.c.b16 %v1007, %v999
    %v1096 = vpack.c.b16 %v1008, %v1000
    %v1097 = vpack.c.b16 %v1009, %v1001
    %v1098 = vpack.c.b16 %v1010, %v1002
    %v1099 = vpack.c.b16 %v1011, %v1003
    %v1100 = vpack.c.b16 %v1012, %v1004
    %v1101 = vpack.c.b16 %v1021, %v1013
    %v1102 = vpack.c.b16 %v1022, %v1014
    %v1103 = vpack.c.b16 %v1023, %v1015
    %v1104 = vpack.c.b16 %v1024, %v1016
    %v1105 = vpack.c.b16 %v1025, %v1017
    %v1106 = vpack.c.b16 %v1026, %v1018
    %v1107 = vpack.c.b16 %v1027, %v1019
    %v1108 = vpack.c.b16 %v1028, %v1020
    %v1109 = vpack.c.b16 %v1037, %v1029
    %v1110 = vpack.c.b16 %v1038, %v1030
    %v1111 = vpack.c.b16 %v1039, %v1031
    %v1112 = vpack.c.b16 %v1040, %v1032
    %v1113 = vpack.c.b16 %v1041, %v1033
    %v1114 = vpack.c.b16 %v1042, %v1034
    %v1115 = vpack.c.b16 %v1043, %v1035
    %v1116 = vpack.c.b16 %v1044, %v1036
    %v1117 = vpack.c.b16 %v1053, %v1045
    %v1118 = vpack.c.b16 %v1054, %v1046
    %v1119 = vpack.c.b16 %v1055, %v1047
    %v1120 = vpack.c.b16 %v1056, %v1048
    %v1121 = vpack.c.b16 %v1057, %v1049
    %v1122 = vpack.c.b16 %v1058, %v1050
    %v1123 = vpack.c.b16 %v1059, %v1051
    %v1124 = vpack.c.b16 %v1060, %v1052
    %v1125 = vpack.c.b16 %v1069, %v1061
    %v1126 = vpack.c.b16 %v1070, %v1062
    %v1127 = vpack.c.b16 %v1071, %v1063
    %v1128 = vpack.c.b16 %v1072, %v1064
    %v1129 = vpack.c.b16 %v1073, %v1065
    %v1130 = vpack.c.b16 %v1074, %v1066
    %v1131 = vpack.c.b16 %v1075, %v1067
    %v1132 = vpack.c.b16 %v1076, %v1068
    %v1133 = vpack.c.b16 %v1077, %v1077
    %v1134 = vpack.c.b16 %v1078, %v1078
    %v1135 = vpack.c.b16 %v1079, %v1079
    %v1136 = vpack.c.b16 %v1080, %v1080
    %v1137 = vpack.c.b16 %v1081, %v1081
    %v1138 = vpack.c.b16 %v1082, %v1082
    %v1139 = vpack.c.b16 %v1083, %v1083
    %v1140 = vpack.c.b16 %v1084, %v1084
    %vm1189 = vcmask 801792
    %v1191 = vsel %vm1189, %v79, 0
    %vm1193 = vcmask 1040384
    %v1195 = vsel %vm1193, %v1133, 0
    %v1198 = vsel %vm1193, %v1134, 0
    %v1201 = vsel %vm1193, %v1135, 0
    %v1204 = vsel %vm1193, %v1136, 0
    %v1207 = vsel %vm1193, %v1137, 0
    %v1210 = vsel %vm1193, %v1138, 0
    %v1213 = vsel %vm1193, %v1139, 0
    %v1216 = vsel %vm1193, %v1140, 0
    %1218 = vmatprep.subr.bf16.mxu0 %v1086
    %1219 = vmatpush1.bf16.msra.mxu0 %v1085
    %1220 = vmatprep.subr.bf16.mxu0 %v1094
    %1221 = vmatpush1.bf16.msra.mxu0 %v1093
    %1222 = vmatprep.subr.bf16.mxu0 %v1102
    %1223 = vmatpush1.bf16.msra.mxu0 %v1101
    %1224 = vmatprep.subr.bf16.mxu0 %v1110
    %1225 = vmatpush1.bf16.msra.mxu0 %v1109
    %1226 = vmatprep.subr.bf16.mxu0 %v1118
    %1227 = vmatpush1.bf16.msra.mxu0 %v1117
    %1228 = vmatprep.subr.bf16.mxu0 %v1126
    %1229 = vmatpush1.bf16.msra.mxu0 %v1125
    %1230 = vmatprep.subr.bf16.mxu0 %v1198
    %1231 = vmatpush1.bf16.msra.mxu0 %v1195
    %1232 = vmatprep.subr.bf16.mxu0 0
    %1233 = vmatpush1.bf16.msra.mxu0 0
    %1234 = vmatprep.subr.bf16.mxu0 0
    %1235 = vmatpush1.bf16.msra.mxu0 0
    %1236 = vmatprep.subr.bf16.mxu0 0
    %1237 = vmatpush1.bf16.msra.mxu0 0
    %1238 = vmatprep.subr.bf16.mxu0 0
    %1239 = vmatpush1.bf16.msra.mxu0 0
    %1240 = vmatprep.subr.bf16.mxu0 0
    %1241 = vmatpush1.bf16.msra.mxu0 0
    %1242 = vmatprep.subr.bf16.mxu0 0
    %1243 = vmatpush1.bf16.msra.mxu0 0
    %1244 = vmatprep.subr.bf16.mxu0 0
    %1245 = vmatpush1.bf16.msra.mxu0 0
    %1246 = vmatprep.subr.bf16.mxu0 0
    %1247 = vmatpush1.bf16.msra.mxu0 0
    %1248 = vmatprep.subr.bf16.mxu0 0
    %1249 = vmatpush1.bf16.msra.mxu0 0
    %1250 = vmatprep.mubr.bf16.mxu0 0
    %1251 = vmatmul.mubr.bf16.gmra.mrb[0].mxu0 %v1191
    %v1252 = vpop.f32.mrb[0].mxu0
    %v1253 = vadd.f32 %v800, %v1252
    %v1254 = vpop.f32.mrb[0].mxu0
    %v1255 = vadd.f32 %v802, %v1254
    %v1256 = vpop.f32.mrb[0].mxu0
    %v1257 = vpop.f32.mrb[0].mxu0
    %1258 = vdwg.mxu0
    %1259 = vmatprep.subr.bf16.mxu0 %v1088
    %1260 = vmatpush1.bf16.msra.mxu0 %v1087
    %1261 = vmatprep.subr.bf16.mxu0 %v1096
    %1262 = vmatpush1.bf16.msra.mxu0 %v1095
    %1263 = vmatprep.subr.bf16.mxu0 %v1104
    %1264 = vmatpush1.bf16.msra.mxu0 %v1103
    %1265 = vmatprep.subr.bf16.mxu0 %v1112
    %1266 = vmatpush1.bf16.msra.mxu0 %v1111
    %1267 = vmatprep.subr.bf16.mxu0 %v1120
    %1268 = vmatpush1.bf16.msra.mxu0 %v1119
    %1269 = vmatprep.subr.bf16.mxu0 %v1128
    %1270 = vmatpush1.bf16.msra.mxu0 %v1127
    %1271 = vmatprep.subr.bf16.mxu0 %v1204
    %1272 = vmatpush1.bf16.msra.mxu0 %v1201
    %1273 = vmatprep.subr.bf16.mxu0 0
    %1274 = vmatpush1.bf16.msra.mxu0 0
    %1275 = vmatprep.subr.bf16.mxu0 0
    %1276 = vmatpush1.bf16.msra.mxu0 0
    %1277 = vmatprep.subr.bf16.mxu0 0
    %1278 = vmatpush1.bf16.msra.mxu0 0
    %1279 = vmatprep.subr.bf16.mxu0 0
    %1280 = vmatpush1.bf16.msra.mxu0 0
    %1281 = vmatprep.subr.bf16.mxu0 0
    %1282 = vmatpush1.bf16.msra.mxu0 0
    %1283 = vmatprep.subr.bf16.mxu0 0
    %1284 = vmatpush1.bf16.msra.mxu0 0
    %1285 = vmatprep.subr.bf16.mxu0 0
    %1286 = vmatpush1.bf16.msra.mxu0 0
    %1287 = vmatprep.subr.bf16.mxu0 0
    %1288 = vmatpush1.bf16.msra.mxu0 0
    %1289 = vmatprep.subr.bf16.mxu0 0
    %1290 = vmatpush1.bf16.msra.mxu0 0
    %1291 = vmatprep.mubr.bf16.mxu0 0
    %1292 = vmatmul.mubr.bf16.gmra.mrb[0].mxu0 %v1191
    %v1293 = vpop.f32.mrb[0].mxu0
    %v1294 = vadd.f32 %v841, %v1293
    %v1295 = vpop.f32.mrb[0].mxu0
    %v1296 = vadd.f32 %v843, %v1295
    %v1297 = vpop.f32.mrb[0].mxu0
    %v1298 = vpop.f32.mrb[0].mxu0
    %1299 = vdwg.mxu0
    %1300 = vmatprep.subr.bf16.mxu0 %v1090
    %1301 = vmatpush1.bf16.msra.mxu0 %v1089
    %1302 = vmatprep.subr.bf16.mxu0 %v1098
    %1303 = vmatpush1.bf16.msra.mxu0 %v1097
    %1304 = vmatprep.subr.bf16.mxu0 %v1106
    %1305 = vmatpush1.bf16.msra.mxu0 %v1105
    %1306 = vmatprep.subr.bf16.mxu0 %v1114
    %1307 = vmatpush1.bf16.msra.mxu0 %v1113
    %1308 = vmatprep.subr.bf16.mxu0 %v1122
    %1309 = vmatpush1.bf16.msra.mxu0 %v1121
    %1310 = vmatprep.subr.bf16.mxu0 %v1130
    %1311 = vmatpush1.bf16.msra.mxu0 %v1129
    %1312 = vmatprep.subr.bf16.mxu0 %v1210
    %1313 = vmatpush1.bf16.msra.mxu0 %v1207
    %1314 = vmatprep.subr.bf16.mxu0 0
    %1315 = vmatpush1.bf16.msra.mxu0 0
    %1316 = vmatprep.subr.bf16.mxu0 0
    %1317 = vmatpush1.bf16.msra.mxu0 0
    %1318 = vmatprep.subr.bf16.mxu0 0
    %1319 = vmatpush1.bf16.msra.mxu0 0
    %1320 = vmatprep.subr.bf16.mxu0 0
    %1321 = vmatpush1.bf16.msra.mxu0 0
    %1322 = vmatprep.subr.bf16.mxu0 0
    %1323 = vmatpush1.bf16.msra.mxu0 0
    %1324 = vmatprep.subr.bf16.mxu0 0
    %1325 = vmatpush1.bf16.msra.mxu0 0
    %1326 = vmatprep.subr.bf16.mxu0 0
    %1327 = vmatpush1.bf16.msra.mxu0 0
    %1328 = vmatprep.subr.bf16.mxu0 0
    %1329 = vmatpush1.bf16.msra.mxu0 0
    %1330 = vmatprep.subr.bf16.mxu0 0
    %1331 = vmatpush1.bf16.msra.mxu0 0
    %1332 = vmatprep.mubr.bf16.mxu0 0
    %1333 = vmatmul.mubr.bf16.gmra.mrb[0].mxu0 %v1191
    %v1334 = vpop.f32.mrb[0].mxu0
    %v1335 = vadd.f32 %v882, %v1334
    %v1336 = vpop.f32.mrb[0].mxu0
    %v1337 = vadd.f32 %v884, %v1336
    %v1338 = vpop.f32.mrb[0].mxu0
    %v1339 = vpop.f32.mrb[0].mxu0
    %1340 = vdwg.mxu0
    %1341 = vmatprep.subr.bf16.mxu0 %v1092
    %1342 = vmatpush1.bf16.msra.mxu0 %v1091
    %1343 = vmatprep.subr.bf16.mxu0 %v1100
    %1344 = vmatpush1.bf16.msra.mxu0 %v1099
    %1345 = vmatprep.subr.bf16.mxu0 %v1108
    %1346 = vmatpush1.bf16.msra.mxu0 %v1107
    %1347 = vmatprep.subr.bf16.mxu0 %v1116
    %1348 = vmatpush1.bf16.msra.mxu0 %v1115
    %1349 = vmatprep.subr.bf16.mxu0 %v1124
    %1350 = vmatpush1.bf16.msra.mxu0 %v1123
    %1351 = vmatprep.subr.bf16.mxu0 %v1132
    %1352 = vmatpush1.bf16.msra.mxu0 %v1131
    %1353 = vmatprep.subr.bf16.mxu0 %v1216
    %1354 = vmatpush1.bf16.msra.mxu0 %v1213
    %1355 = vmatprep.subr.bf16.mxu0 0
    %1356 = vmatpush1.bf16.msra.mxu0 0
    %1357 = vmatprep.subr.bf16.mxu0 0
    %1358 = vmatpush1.bf16.msra.mxu0 0
    %1359 = vmatprep.subr.bf16.mxu0 0
    %1360 = vmatpush1.bf16.msra.mxu0 0
    %1361 = vmatprep.subr.bf16.mxu0 0
    %1362 = vmatpush1.bf16.msra.mxu0 0
    %1363 = vmatprep.subr.bf16.mxu0 0
    %1364 = vmatpush1.bf16.msra.mxu0 0
    %1365 = vmatprep.subr.bf16.mxu0 0
    %1366 = vmatpush1.bf16.msra.mxu0 0
    %1367 = vmatprep.subr.bf16.mxu0 0
    %1368 = vmatpush1.bf16.msra.mxu0 0
    %1369 = vmatprep.subr.bf16.mxu0 0
    %1370 = vmatpush1.bf16.msra.mxu0 0
    %1371 = vmatprep.subr.bf16.mxu0 0
    %1372 = vmatpush1.bf16.msra.mxu0 0
    %1373 = vmatprep.mubr.bf16.mxu0 0
    %1374 = vmatmul.mubr.bf16.gmra.mrb[0].mxu0 %v1191
    %v1375 = vpop.f32.mrb[0].mxu0
    %v1376 = vadd.f32 %v923, %v1375
    %v1377 = vpop.f32.mrb[0].mxu0
    %v1378 = vadd.f32 %v925, %v1377
    %v1379 = vpop.f32.mrb[0].mxu0
    %v1380 = vpop.f32.mrb[0].mxu0
    %1381 = vdwg.mxu0
    %v1382 = vld [vmem:[#allocation7] sm:$0xff]
    %v1384 = vlaneseq
    %v1385 = vshrl.u32 %v1384, 7
    %v1386 = vsub.s32 0, %v1385
    %v1387 = vrot.slane %v1382, %v1386
    %v1388 = vlaneseq
    %v1389 = vshrl.u32 %v1388, 7
    %v1390 = vsub.s32 1, %v1389
    %v1391 = vrot.slane %v1382, %v1390
    %v1392 = vlaneseq
    %v1393 = vshrl.u32 %v1392, 7
    %v1394 = vsub.s32 2, %v1393
    %v1395 = vrot.slane %v1382, %v1394
    %v1396 = vlaneseq
    %v1397 = vshrl.u32 %v1396, 7
    %v1398 = vsub.s32 3, %v1397
    %v1399 = vrot.slane %v1382, %v1398
    %v1400 = vlaneseq
    %v1401 = vshrl.u32 %v1400, 7
    %v1402 = vsub.s32 4, %v1401
    %v1403 = vrot.slane %v1382, %v1402
    %v1404 = vlaneseq
    %v1405 = vshrl.u32 %v1404, 7
    %v1406 = vsub.s32 5, %v1405
    %v1407 = vrot.slane %v1382, %v1406
    %v1408 = vlaneseq
    %v1409 = vshrl.u32 %v1408, 7
    %v1410 = vsub.s32 6, %v1409
    %v1411 = vrot.slane %v1382, %v1410
    %v1412 = vlaneseq
    %v1413 = vshrl.u32 %v1412, 7
    %v1414 = vsub.s32 7, %v1413
    %v1415 = vrot.slane %v1382, %v1414
    %v1424 = vadd.f32 %v1253, %v1387
    %v1425 = vadd.f32 %v1255, %v1391
    %v1426 = vadd.f32 %v1294, %v1395
    %v1427 = vadd.f32 %v1296, %v1399
    %v1428 = vadd.f32 %v1335, %v1403
    %v1429 = vadd.f32 %v1337, %v1407
    %v1430 = vadd.f32 %v1376, %v1411
    %v1431 = vadd.f32 %v1378, %v1415
    %v1432 = vld [vmem:[#allocation5] sm:$0xff]
    %v1433 = vld [vmem:[#allocation5 + $0x8] sm:$0xff]
    %v1434 = vld [vmem:[#allocation5 + $0x10] sm:$0xff]
    %v1435 = vld [vmem:[#allocation5 + $0x18] sm:$0xff]
    %v1436 = vld [vmem:[#allocation5 + $0x20] sm:$0xff]
    %v1437 = vld [vmem:[#allocation5 + $0x28] sm:$0xff]
    %v1438 = vld [vmem:[#allocation5 + $0x30] sm:$0xff]
    %v1439 = vld [vmem:[#allocation5 + $0x38] sm:$0xff]
    %v1440 = vld [vmem:[#allocation5 + $0x40] sm:$0xff]
    %v1441 = vld [vmem:[#allocation5 + $0x48] sm:$0xff]
    %v1442 = vld [vmem:[#allocation5 + $0x50] sm:$0xff]
    %v1443 = vld [vmem:[#allocation5 + $0x58] sm:$0xff]
    %v1444 = vld [vmem:[#allocation5 + $0x60] sm:$0xff]
    %v1445 = vld [vmem:[#allocation5 + $0x68] sm:$0xff]
    %v1446 = vld [vmem:[#allocation5 + $0x70] sm:$0xff]
    %v1447 = vld [vmem:[#allocation5 + $0x78] sm:$0xff]
    %v1448 = vld [vmem:[#allocation5 + $0x80] sm:$0xff]
    %v1449 = vld [vmem:[#allocation5 + $0x88] sm:$0xff]
    %v1450 = vld [vmem:[#allocation5 + $0x90] sm:$0xff]
    %v1451 = vld [vmem:[#allocation5 + $0x98] sm:$0xff]
    %v1452 = vld [vmem:[#allocation5 + $0xa0] sm:$0xff]
    %v1453 = vld [vmem:[#allocation5 + $0xa8] sm:$0xff]
    %v1454 = vld [vmem:[#allocation5 + $0xb0] sm:$0xff]
    %v1455 = vld [vmem:[#allocation5 + $0xb8] sm:$0xff]
    %v1456 = vld [vmem:[#allocation5 + $0xc0] sm:$0xff]
    %v1457 = vld [vmem:[#allocation5 + $0xc8] sm:$0xff]
    %v1458 = vld [vmem:[#allocation5 + $0xd0] sm:$0xff]
    %v1459 = vld [vmem:[#allocation5 + $0xd8] sm:$0xff]
    %v1460 = vld [vmem:[#allocation5 + $0xe0] sm:$0xff]
    %v1461 = vld [vmem:[#allocation5 + $0xe8] sm:$0xff]
    %v1462 = vld [vmem:[#allocation5 + $0xf0] sm:$0xff]
    %v1463 = vld [vmem:[#allocation5 + $0xf8] sm:$0xff]
    %v1464 = vld [vmem:[#allocation5 + $0x100] sm:$0xff]
    %v1465 = vld [vmem:[#allocation5 + $0x108] sm:$0xff]
    %v1466 = vld [vmem:[#allocation5 + $0x110] sm:$0xff]
    %v1467 = vld [vmem:[#allocation5 + $0x118] sm:$0xff]
    %v1468 = vld [vmem:[#allocation5 + $0x120] sm:$0xff]
    %v1469 = vld [vmem:[#allocation5 + $0x128] sm:$0xff]
    %v1470 = vld [vmem:[#allocation5 + $0x130] sm:$0xff]
    %v1471 = vld [vmem:[#allocation5 + $0x138] sm:$0xff]
    %v1472 = vld [vmem:[#allocation5 + $0x140] sm:$0xff]
    %v1473 = vld [vmem:[#allocation5 + $0x148] sm:$0xff]
    %v1474 = vld [vmem:[#allocation5 + $0x150] sm:$0xff]
    %v1475 = vld [vmem:[#allocation5 + $0x158] sm:$0xff]
    %v1476 = vld [vmem:[#allocation5 + $0x160] sm:$0xff]
    %v1477 = vld [vmem:[#allocation5 + $0x168] sm:$0xff]
    %v1478 = vld [vmem:[#allocation5 + $0x170] sm:$0xff]
    %v1479 = vld [vmem:[#allocation5 + $0x178] sm:$0xff]
    %v1480 = vld [vmem:[#allocation5 + $0x180] sm:$0xff]
    %v1481 = vld [vmem:[#allocation5 + $0x188] sm:$0xff]
    %v1482 = vld [vmem:[#allocation5 + $0x190] sm:$0xff]
    %v1483 = vld [vmem:[#allocation5 + $0x198] sm:$0xff]
    %v1484 = vld [vmem:[#allocation5 + $0x1a0] sm:$0xff]
    %v1485 = vld [vmem:[#allocation5 + $0x1a8] sm:$0xff]
    %v1486 = vld [vmem:[#allocation5 + $0x1b0] sm:$0xff]
    %v1487 = vld [vmem:[#allocation5 + $0x1b8] sm:$0xff]
    %v1488 = vld [vmem:[#allocation5 + $0x1c0] sm:$0xff]
    %v1489 = vld [vmem:[#allocation5 + $0x1c8] sm:$0xff]
    %v1490 = vld [vmem:[#allocation5 + $0x1d0] sm:$0xff]
    %v1491 = vld [vmem:[#allocation5 + $0x1d8] sm:$0xff]
    %v1492 = vld [vmem:[#allocation5 + $0x1e0] sm:$0xff]
    %v1493 = vld [vmem:[#allocation5 + $0x1e8] sm:$0xff]
    %v1494 = vld [vmem:[#allocation5 + $0x1f0] sm:$0xff]
    %v1495 = vld [vmem:[#allocation5 + $0x1f8] sm:$0xff]
    %v1496 = vld [vmem:[#allocation5 + $0x200] sm:$0xff]
    %v1497 = vld [vmem:[#allocation5 + $0x208] sm:$0xff]
    %v1498 = vld [vmem:[#allocation5 + $0x210] sm:$0xff]
    %v1499 = vld [vmem:[#allocation5 + $0x218] sm:$0xff]
    %v1500 = vld [vmem:[#allocation5 + $0x220] sm:$0xff]
    %v1501 = vld [vmem:[#allocation5 + $0x228] sm:$0xff]
    %v1502 = vld [vmem:[#allocation5 + $0x230] sm:$0xff]
    %v1503 = vld [vmem:[#allocation5 + $0x238] sm:$0xff]
    %v1504 = vld [vmem:[#allocation5 + $0x240] sm:$0xff]
    %v1505 = vld [vmem:[#allocation5 + $0x248] sm:$0xff]
    %v1506 = vld [vmem:[#allocation5 + $0x250] sm:$0xff]
    %v1507 = vld [vmem:[#allocation5 + $0x258] sm:$0xff]
    %v1508 = vld [vmem:[#allocation5 + $0x260] sm:$0xff]
    %v1509 = vld [vmem:[#allocation5 + $0x268] sm:$0xff]
    %v1510 = vld [vmem:[#allocation5 + $0x270] sm:$0xff]
    %v1511 = vld [vmem:[#allocation5 + $0x278] sm:$0xff]
    %v1512 = vld [vmem:[#allocation5 + $0x280] sm:$0xff]
    %v1513 = vld [vmem:[#allocation5 + $0x288] sm:$0xff]
    %v1514 = vld [vmem:[#allocation5 + $0x290] sm:$0xff]
    %v1515 = vld [vmem:[#allocation5 + $0x298] sm:$0xff]
    %v1516 = vld [vmem:[#allocation5 + $0x2a0] sm:$0xff]
    %v1517 = vld [vmem:[#allocation5 + $0x2a8] sm:$0xff]
    %v1518 = vld [vmem:[#allocation5 + $0x2b0] sm:$0xff]
    %v1519 = vld [vmem:[#allocation5 + $0x2b8] sm:$0xff]
    %v1520 = vld [vmem:[#allocation5 + $0x2c0] sm:$0xff]
    %v1521 = vld [vmem:[#allocation5 + $0x2c8] sm:$0xff]
    %v1522 = vld [vmem:[#allocation5 + $0x2d0] sm:$0xff]
    %v1523 = vld [vmem:[#allocation5 + $0x2d8] sm:$0xff]
    %v1524 = vld [vmem:[#allocation5 + $0x2e0] sm:$0xff]
    %v1525 = vld [vmem:[#allocation5 + $0x2e8] sm:$0xff]
    %v1526 = vld [vmem:[#allocation5 + $0x2f0] sm:$0xff]
    %v1527 = vld [vmem:[#allocation5 + $0x2f8] sm:$0xff]
    %v1528 = vld [vmem:[#allocation5 + $0x300] sm:$0xff]
    %v1529 = vld [vmem:[#allocation5 + $0x308] sm:$0xff]
    %v1530 = vld [vmem:[#allocation5 + $0x310] sm:$0xff]
    %v1531 = vld [vmem:[#allocation5 + $0x318] sm:$0xff]
    %v1532 = vld [vmem:[#allocation5 + $0x320] sm:$0xff]
    %v1533 = vld [vmem:[#allocation5 + $0x328] sm:$0xff]
    %v1534 = vld [vmem:[#allocation5 + $0x330] sm:$0xff]
    %v1535 = vld [vmem:[#allocation5 + $0x338] sm:$0xff]
    %v1536 = vld [vmem:[#allocation5 + $0x340] sm:$0xff]
    %v1537 = vld [vmem:[#allocation5 + $0x348] sm:$0xff]
    %v1538 = vld [vmem:[#allocation5 + $0x350] sm:$0xff]
    %v1539 = vld [vmem:[#allocation5 + $0x358] sm:$0xff]
    %v1540 = vld [vmem:[#allocation5 + $0x360] sm:$0xff]
    %v1541 = vld [vmem:[#allocation5 + $0x368] sm:$0xff]
    %v1542 = vld [vmem:[#allocation5 + $0x370] sm:$0xff]
    %v1543 = vld [vmem:[#allocation5 + $0x378] sm:$0xff]
    %v1544 = vld [vmem:[#allocation5 + $0x380] sm:$0xff]
    %v1545 = vld [vmem:[#allocation5 + $0x388] sm:$0xff]
    %v1546 = vld [vmem:[#allocation5 + $0x390] sm:$0xff]
    %v1547 = vld [vmem:[#allocation5 + $0x398] sm:$0xff]
    %v1548 = vld [vmem:[#allocation5 + $0x3a0] sm:$0xff]
    %v1549 = vld [vmem:[#allocation5 + $0x3a8] sm:$0xff]
    %v1550 = vld [vmem:[#allocation5 + $0x3b0] sm:$0xff]
    %v1551 = vld [vmem:[#allocation5 + $0x3b8] sm:$0xff]
    %v1552 = vld [vmem:[#allocation5 + $0x3c0] sm:$0xff]
    %v1553 = vld [vmem:[#allocation5 + $0x3c8] sm:$0xff]
    %v1554 = vld [vmem:[#allocation5 + $0x3d0] sm:$0xff]
    %v1555 = vld [vmem:[#allocation5 + $0x3d8] sm:$0xff]
    %v1556 = vld [vmem:[#allocation5 + $0x3e0] sm:$0xff]
    %v1557 = vld [vmem:[#allocation5 + $0x3e8] sm:$0xff]
    %v1558 = vld [vmem:[#allocation5 + $0x3f0] sm:$0xff]
    %v1559 = vld [vmem:[#allocation5 + $0x3f8] sm:$0xff]
    %v1560 = vld [vmem:[%s2] sm:$0x3]
    %v1561 = vld [vmem:[%s3] sm:$0x3]
    %v1563 = vlaneseq
    %v1564 = vshrl.u32 %v1563, 7
    %v1565 = vsub.s32 0, %v1564
    %v1566 = vrot.slane %v1560, %v1565
    %v1567 = vlaneseq
    %v1568 = vshrl.u32 %v1567, 7
    %v1569 = vsub.s32 1, %v1568
    %v1570 = vrot.slane %v1560, %v1569
    %v1573 = vpack.c.bf16 %v1566, %v1566
    %v1574 = vpack.c.bf16 %v1570, %v1570
    %v1703 = vunpack.c.l.b16 %v1432
    %v1704 = vunpack.c.h.b16 %v1432
    %v1705 = vunpack.c.l.b16 %v1433
    %v1706 = vunpack.c.h.b16 %v1433
    %v1707 = vunpack.c.l.b16 %v1434
    %v1708 = vunpack.c.h.b16 %v1434
    %v1709 = vunpack.c.l.b16 %v1435
    %v1710 = vunpack.c.h.b16 %v1435
    %v1711 = vunpack.c.l.b16 %v1436
    %v1712 = vunpack.c.h.b16 %v1436
    %v1713 = vunpack.c.l.b16 %v1437
    %v1714 = vunpack.c.h.b16 %v1437
    %v1715 = vunpack.c.l.b16 %v1438
    %v1716 = vunpack.c.h.b16 %v1438
    %v1717 = vunpack.c.l.b16 %v1439
    %v1718 = vunpack.c.h.b16 %v1439
    %v1719 = vunpack.c.l.b16 %v1440
    %v1720 = vunpack.c.h.b16 %v1440
    %v1721 = vunpack.c.l.b16 %v1441
    %v1722 = vunpack.c.h.b16 %v1441
    %v1723 = vunpack.c.l.b16 %v1442
    %v1724 = vunpack.c.h.b16 %v1442
    %v1725 = vunpack.c.l.b16 %v1443
    %v1726 = vunpack.c.h.b16 %v1443
    %v1727 = vunpack.c.l.b16 %v1444
    %v1728 = vunpack.c.h.b16 %v1444
    %v1729 = vunpack.c.l.b16 %v1445
    %v1730 = vunpack.c.h.b16 %v1445
    %v1731 = vunpack.c.l.b16 %v1446
    %v1732 = vunpack.c.h.b16 %v1446
    %v1733 = vunpack.c.l.b16 %v1447
    %v1734 = vunpack.c.h.b16 %v1447
    %v1735 = vunpack.c.l.b16 %v1448
    %v1736 = vunpack.c.h.b16 %v1448
    %v1737 = vunpack.c.l.b16 %v1449
    %v1738 = vunpack.c.h.b16 %v1449
    %v1739 = vunpack.c.l.b16 %v1450
    %v1740 = vunpack.c.h.b16 %v1450
    %v1741 = vunpack.c.l.b16 %v1451
    %v1742 = vunpack.c.h.b16 %v1451
    %v1743 = vunpack.c.l.b16 %v1452
    %v1744 = vunpack.c.h.b16 %v1452
    %v1745 = vunpack.c.l.b16 %v1453
    %v1746 = vunpack.c.h.b16 %v1453
    %v1747 = vunpack.c.l.b16 %v1454
    %v1748 = vunpack.c.h.b16 %v1454
    %v1749 = vunpack.c.l.b16 %v1455
    %v1750 = vunpack.c.h.b16 %v1455
    %v1751 = vunpack.c.l.b16 %v1456
    %v1752 = vunpack.c.h.b16 %v1456
    %v1753 = vunpack.c.l.b16 %v1457
    %v1754 = vunpack.c.h.b16 %v1457
    %v1755 = vunpack.c.l.b16 %v1458
    %v1756 = vunpack.c.h.b16 %v1458
    %v1757 = vunpack.c.l.b16 %v1459
    %v1758 = vunpack.c.h.b16 %v1459
    %v1759 = vunpack.c.l.b16 %v1460
    %v1760 = vunpack.c.h.b16 %v1460
    %v1761 = vunpack.c.l.b16 %v1461
    %v1762 = vunpack.c.h.b16 %v1461
    %v1763 = vunpack.c.l.b16 %v1462
    %v1764 = vunpack.c.h.b16 %v1462
    %v1765 = vunpack.c.l.b16 %v1463
    %v1766 = vunpack.c.h.b16 %v1463
    %v1767 = vunpack.c.l.b16 %v1464
    %v1768 = vunpack.c.h.b16 %v1464
    %v1769 = vunpack.c.l.b16 %v1465
    %v1770 = vunpack.c.h.b16 %v1465
    %v1771 = vunpack.c.l.b16 %v1466
    %v1772 = vunpack.c.h.b16 %v1466
    %v1773 = vunpack.c.l.b16 %v1467
    %v1774 = vunpack.c.h.b16 %v1467
    %v1775 = vunpack.c.l.b16 %v1468
    %v1776 = vunpack.c.h.b16 %v1468
    %v1777 = vunpack.c.l.b16 %v1469
    %v1778 = vunpack.c.h.b16 %v1469
    %v1779 = vunpack.c.l.b16 %v1470
    %v1780 = vunpack.c.h.b16 %v1470
    %v1781 = vunpack.c.l.b16 %v1471
    %v1782 = vunpack.c.h.b16 %v1471
    %v1783 = vunpack.c.l.b16 %v1472
    %v1784 = vunpack.c.h.b16 %v1472
    %v1785 = vunpack.c.l.b16 %v1473
    %v1786 = vunpack.c.h.b16 %v1473
    %v1787 = vunpack.c.l.b16 %v1474
    %v1788 = vunpack.c.h.b16 %v1474
    %v1789 = vunpack.c.l.b16 %v1475
    %v1790 = vunpack.c.h.b16 %v1475
    %v1791 = vunpack.c.l.b16 %v1476
    %v1792 = vunpack.c.h.b16 %v1476
    %v1793 = vunpack.c.l.b16 %v1477
    %v1794 = vunpack.c.h.b16 %v1477
    %v1795 = vunpack.c.l.b16 %v1478
    %v1796 = vunpack.c.h.b16 %v1478
    %v1797 = vunpack.c.l.b16 %v1479
    %v1798 = vunpack.c.h.b16 %v1479
    %v1799 = vunpack.c.l.b16 %v1480
    %v1800 = vunpack.c.h.b16 %v1480
    %v1801 = vunpack.c.l.b16 %v1481
    %v1802 = vunpack.c.h.b16 %v1481
    %v1803 = vunpack.c.l.b16 %v1482
    %v1804 = vunpack.c.h.b16 %v1482
    %v1805 = vunpack.c.l.b16 %v1483
    %v1806 = vunpack.c.h.b16 %v1483
    %v1807 = vunpack.c.l.b16 %v1484
    %v1808 = vunpack.c.h.b16 %v1484
    %v1809 = vunpack.c.l.b16 %v1485
    %v1810 = vunpack.c.h.b16 %v1485
    %v1811 = vunpack.c.l.b16 %v1486
    %v1812 = vunpack.c.h.b16 %v1486
    %v1813 = vunpack.c.l.b16 %v1487
    %v1814 = vunpack.c.h.b16 %v1487
    %v1815 = vunpack.c.l.b16 %v1488
    %v1816 = vunpack.c.h.b16 %v1488
    %v1817 = vunpack.c.l.b16 %v1489
    %v1818 = vunpack.c.h.b16 %v1489
    %v1819 = vunpack.c.l.b16 %v1490
    %v1820 = vunpack.c.h.b16 %v1490
    %v1821 = vunpack.c.l.b16 %v1491
    %v1822 = vunpack.c.h.b16 %v1491
    %v1823 = vunpack.c.l.b16 %v1492
    %v1824 = vunpack.c.h.b16 %v1492
    %v1825 = vunpack.c.l.b16 %v1493
    %v1826 = vunpack.c.h.b16 %v1493
    %v1827 = vunpack.c.l.b16 %v1494
    %v1828 = vunpack.c.h.b16 %v1494
    %v1829 = vunpack.c.l.b16 %v1495
    %v1830 = vunpack.c.h.b16 %v1495
    %v1831 = vunpack.c.l.b16 %v1496
    %v1832 = vunpack.c.h.b16 %v1496
    %v1833 = vunpack.c.l.b16 %v1497
    %v1834 = vunpack.c.h.b16 %v1497
    %v1835 = vunpack.c.l.b16 %v1498
    %v1836 = vunpack.c.h.b16 %v1498
    %v1837 = vunpack.c.l.b16 %v1499
    %v1838 = vunpack.c.h.b16 %v1499
    %v1839 = vunpack.c.l.b16 %v1500
    %v1840 = vunpack.c.h.b16 %v1500
    %v1841 = vunpack.c.l.b16 %v1501
    %v1842 = vunpack.c.h.b16 %v1501
    %v1843 = vunpack.c.l.b16 %v1502
    %v1844 = vunpack.c.h.b16 %v1502
    %v1845 = vunpack.c.l.b16 %v1503
    %v1846 = vunpack.c.h.b16 %v1503
    %v1847 = vunpack.c.l.b16 %v1504
    %v1848 = vunpack.c.h.b16 %v1504
    %v1849 = vunpack.c.l.b16 %v1505
    %v1850 = vunpack.c.h.b16 %v1505
    %v1851 = vunpack.c.l.b16 %v1506
    %v1852 = vunpack.c.h.b16 %v1506
    %v1853 = vunpack.c.l.b16 %v1507
    %v1854 = vunpack.c.h.b16 %v1507
    %v1855 = vunpack.c.l.b16 %v1508
    %v1856 = vunpack.c.h.b16 %v1508
    %v1857 = vunpack.c.l.b16 %v1509
    %v1858 = vunpack.c.h.b16 %v1509
    %v1859 = vunpack.c.l.b16 %v1510
    %v1860 = vunpack.c.h.b16 %v1510
    %v1861 = vunpack.c.l.b16 %v1511
    %v1862 = vunpack.c.h.b16 %v1511
    %v1863 = vunpack.c.l.b16 %v1512
    %v1864 = vunpack.c.h.b16 %v1512
    %v1865 = vunpack.c.l.b16 %v1513
    %v1866 = vunpack.c.h.b16 %v1513
    %v1867 = vunpack.c.l.b16 %v1514
    %v1868 = vunpack.c.h.b16 %v1514
    %v1869 = vunpack.c.l.b16 %v1515
    %v1870 = vunpack.c.h.b16 %v1515
    %v1871 = vunpack.c.l.b16 %v1516
    %v1872 = vunpack.c.h.b16 %v1516
    %v1873 = vunpack.c.l.b16 %v1517
    %v1874 = vunpack.c.h.b16 %v1517
    %v1875 = vunpack.c.l.b16 %v1518
    %v1876 = vunpack.c.h.b16 %v1518
    %v1877 = vunpack.c.l.b16 %v1519
    %v1878 = vunpack.c.h.b16 %v1519
    %v1879 = vunpack.c.l.b16 %v1520
    %v1880 = vunpack.c.h.b16 %v1520
    %v1881 = vunpack.c.l.b16 %v1521
    %v1882 = vunpack.c.h.b16 %v1521
    %v1883 = vunpack.c.l.b16 %v1522
    %v1884 = vunpack.c.h.b16 %v1522
    %v1885 = vunpack.c.l.b16 %v1523
    %v1886 = vunpack.c.h.b16 %v1523
    %v1887 = vunpack.c.l.b16 %v1524
    %v1888 = vunpack.c.h.b16 %v1524
    %v1889 = vunpack.c.l.b16 %v1525
    %v1890 = vunpack.c.h.b16 %v1525
    %v1891 = vunpack.c.l.b16 %v1526
    %v1892 = vunpack.c.h.b16 %v1526
    %v1893 = vunpack.c.l.b16 %v1527
    %v1894 = vunpack.c.h.b16 %v1527
    %v1895 = vunpack.c.l.b16 %v1528
    %v1896 = vunpack.c.h.b16 %v1528
    %v1897 = vunpack.c.l.b16 %v1529
    %v1898 = vunpack.c.h.b16 %v1529
    %v1899 = vunpack.c.l.b16 %v1530
    %v1900 = vunpack.c.h.b16 %v1530
    %v1901 = vunpack.c.l.b16 %v1531
    %v1902 = vunpack.c.h.b16 %v1531
    %v1903 = vunpack.c.l.b16 %v1532
    %v1904 = vunpack.c.h.b16 %v1532
    %v1905 = vunpack.c.l.b16 %v1533
    %v1906 = vunpack.c.h.b16 %v1533
    %v1907 = vunpack.c.l.b16 %v1534
    %v1908 = vunpack.c.h.b16 %v1534
    %v1909 = vunpack.c.l.b16 %v1535
    %v1910 = vunpack.c.h.b16 %v1535
    %v1911 = vunpack.c.l.b16 %v1536
    %v1912 = vunpack.c.h.b16 %v1536
    %v1913 = vunpack.c.l.b16 %v1537
    %v1914 = vunpack.c.h.b16 %v1537
    %v1915 = vunpack.c.l.b16 %v1538
    %v1916 = vunpack.c.h.b16 %v1538
    %v1917 = vunpack.c.l.b16 %v1539
    %v1918 = vunpack.c.h.b16 %v1539
    %v1919 = vunpack.c.l.b16 %v1540
    %v1920 = vunpack.c.h.b16 %v1540
    %v1921 = vunpack.c.l.b16 %v1541
    %v1922 = vunpack.c.h.b16 %v1541
    %v1923 = vunpack.c.l.b16 %v1542
    %v1924 = vunpack.c.h.b16 %v1542
    %v1925 = vunpack.c.l.b16 %v1543
    %v1926 = vunpack.c.h.b16 %v1543
    %v1927 = vunpack.c.l.b16 %v1544
    %v1928 = vunpack.c.h.b16 %v1544
    %v1929 = vunpack.c.l.b16 %v1545
    %v1930 = vunpack.c.h.b16 %v1545
    %v1931 = vunpack.c.l.b16 %v1546
    %v1932 = vunpack.c.h.b16 %v1546
    %v1933 = vunpack.c.l.b16 %v1547
    %v1934 = vunpack.c.h.b16 %v1547
    %v1935 = vunpack.c.l.b16 %v1548
    %v1936 = vunpack.c.h.b16 %v1548
    %v1937 = vunpack.c.l.b16 %v1549
    %v1938 = vunpack.c.h.b16 %v1549
    %v1939 = vunpack.c.l.b16 %v1550
    %v1940 = vunpack.c.h.b16 %v1550
    %v1941 = vunpack.c.l.b16 %v1551
    %v1942 = vunpack.c.h.b16 %v1551
    %v1943 = vunpack.c.l.b16 %v1552
    %v1944 = vunpack.c.h.b16 %v1552
    %v1945 = vunpack.c.l.b16 %v1553
    %v1946 = vunpack.c.h.b16 %v1553
    %v1947 = vunpack.c.l.b16 %v1554
    %v1948 = vunpack.c.h.b16 %v1554
    %v1949 = vunpack.c.l.b16 %v1555
    %v1950 = vunpack.c.h.b16 %v1555
    %v1951 = vunpack.c.l.b16 %v1556
    %v1952 = vunpack.c.h.b16 %v1556
    %v1953 = vunpack.c.l.b16 %v1557
    %v1954 = vunpack.c.h.b16 %v1557
    %v1955 = vunpack.c.l.b16 %v1558
    %v1956 = vunpack.c.h.b16 %v1558
    %v1957 = vunpack.c.l.b16 %v1559
    %v1958 = vunpack.c.h.b16 %v1559
    %v1959 = vpack.c.b16 %v1711, %v1703
    %v1960 = vpack.c.b16 %v1712, %v1704
    %v1961 = vpack.c.b16 %v1713, %v1705
    %v1962 = vpack.c.b16 %v1714, %v1706
    %v1963 = vpack.c.b16 %v1715, %v1707
    %v1964 = vpack.c.b16 %v1716, %v1708
    %v1965 = vpack.c.b16 %v1717, %v1709
    %v1966 = vpack.c.b16 %v1718, %v1710
    %v1967 = vpack.c.b16 %v1727, %v1719
    %v1968 = vpack.c.b16 %v1728, %v1720
    %v1969 = vpack.c.b16 %v1729, %v1721
    %v1970 = vpack.c.b16 %v1730, %v1722
    %v1971 = vpack.c.b16 %v1731, %v1723
    %v1972 = vpack.c.b16 %v1732, %v1724
    %v1973 = vpack.c.b16 %v1733, %v1725
    %v1974 = vpack.c.b16 %v1734, %v1726
    %v1975 = vpack.c.b16 %v1743, %v1735
    %v1976 = vpack.c.b16 %v1744, %v1736
    %v1977 = vpack.c.b16 %v1745, %v1737
    %v1978 = vpack.c.b16 %v1746, %v1738
    %v1979 = vpack.c.b16 %v1747, %v1739
    %v1980 = vpack.c.b16 %v1748, %v1740
    %v1981 = vpack.c.b16 %v1749, %v1741
    %v1982 = vpack.c.b16 %v1750, %v1742
    %v1983 = vpack.c.b16 %v1759, %v1751
    %v1984 = vpack.c.b16 %v1760, %v1752
    %v1985 = vpack.c.b16 %v1761, %v1753
    %v1986 = vpack.c.b16 %v1762, %v1754
    %v1987 = vpack.c.b16 %v1763, %v1755
    %v1988 = vpack.c.b16 %v1764, %v1756
    %v1989 = vpack.c.b16 %v1765, %v1757
    %v1990 = vpack.c.b16 %v1766, %v1758
    %v1991 = vpack.c.b16 %v1775, %v1767
    %v1992 = vpack.c.b16 %v1776, %v1768
    %v1993 = vpack.c.b16 %v1777, %v1769
    %v1994 = vpack.c.b16 %v1778, %v1770
    %v1995 = vpack.c.b16 %v1779, %v1771
    %v1996 = vpack.c.b16 %v1780, %v1772
    %v1997 = vpack.c.b16 %v1781, %v1773
    %v1998 = vpack.c.b16 %v1782, %v1774
    %v1999 = vpack.c.b16 %v1791, %v1783
    %v2000 = vpack.c.b16 %v1792, %v1784
    %v2001 = vpack.c.b16 %v1793, %v1785
    %v2002 = vpack.c.b16 %v1794, %v1786
    %v2003 = vpack.c.b16 %v1795, %v1787
    %v2004 = vpack.c.b16 %v1796, %v1788
    %v2005 = vpack.c.b16 %v1797, %v1789
    %v2006 = vpack.c.b16 %v1798, %v1790
    %v2007 = vpack.c.b16 %v1807, %v1799
    %v2008 = vpack.c.b16 %v1808, %v1800
    %v2009 = vpack.c.b16 %v1809, %v1801
    %v2010 = vpack.c.b16 %v1810, %v1802
    %v2011 = vpack.c.b16 %v1811, %v1803
    %v2012 = vpack.c.b16 %v1812, %v1804
    %v2013 = vpack.c.b16 %v1813, %v1805
    %v2014 = vpack.c.b16 %v1814, %v1806
    %v2015 = vpack.c.b16 %v1823, %v1815
    %v2016 = vpack.c.b16 %v1824, %v1816
    %v2017 = vpack.c.b16 %v1825, %v1817
    %v2018 = vpack.c.b16 %v1826, %v1818
    %v2019 = vpack.c.b16 %v1827, %v1819
    %v2020 = vpack.c.b16 %v1828, %v1820
    %v2021 = vpack.c.b16 %v1829, %v1821
    %v2022 = vpack.c.b16 %v1830, %v1822
    %v2023 = vpack.c.b16 %v1839, %v1831
    %v2024 = vpack.c.b16 %v1840, %v1832
    %v2025 = vpack.c.b16 %v1841, %v1833
    %v2026 = vpack.c.b16 %v1842, %v1834
    %v2027 = vpack.c.b16 %v1843, %v1835
    %v2028 = vpack.c.b16 %v1844, %v1836
    %v2029 = vpack.c.b16 %v1845, %v1837
    %v2030 = vpack.c.b16 %v1846, %v1838
    %v2031 = vpack.c.b16 %v1855, %v1847
    %v2032 = vpack.c.b16 %v1856, %v1848
    %v2033 = vpack.c.b16 %v1857, %v1849
    %v2034 = vpack.c.b16 %v1858, %v1850
    %v2035 = vpack.c.b16 %v1859, %v1851
    %v2036 = vpack.c.b16 %v1860, %v1852
    %v2037 = vpack.c.b16 %v1861, %v1853
    %v2038 = vpack.c.b16 %v1862, %v1854
    %v2039 = vpack.c.b16 %v1871, %v1863
    %v2040 = vpack.c.b16 %v1872, %v1864
    %v2041 = vpack.c.b16 %v1873, %v1865
    %v2042 = vpack.c.b16 %v1874, %v1866
    %v2043 = vpack.c.b16 %v1875, %v1867
    %v2044 = vpack.c.b16 %v1876, %v1868
    %v2045 = vpack.c.b16 %v1877, %v1869
    %v2046 = vpack.c.b16 %v1878, %v1870
    %v2047 = vpack.c.b16 %v1887, %v1879
    %v2048 = vpack.c.b16 %v1888, %v1880
    %v2049 = vpack.c.b16 %v1889, %v1881
    %v2050 = vpack.c.b16 %v1890, %v1882
    %v2051 = vpack.c.b16 %v1891, %v1883
    %v2052 = vpack.c.b16 %v1892, %v1884
    %v2053 = vpack.c.b16 %v1893, %v1885
    %v2054 = vpack.c.b16 %v1894, %v1886
    %v2055 = vpack.c.b16 %v1903, %v1895
    %v2056 = vpack.c.b16 %v1904, %v1896
    %v2057 = vpack.c.b16 %v1905, %v1897
    %v2058 = vpack.c.b16 %v1906, %v1898
    %v2059 = vpack.c.b16 %v1907, %v1899
    %v2060 = vpack.c.b16 %v1908, %v1900
    %v2061 = vpack.c.b16 %v1909, %v1901
    %v2062 = vpack.c.b16 %v1910, %v1902
    %v2063 = vpack.c.b16 %v1919, %v1911
    %v2064 = vpack.c.b16 %v1920, %v1912
    %v2065 = vpack.c.b16 %v1921, %v1913
    %v2066 = vpack.c.b16 %v1922, %v1914
    %v2067 = vpack.c.b16 %v1923, %v1915
    %v2068 = vpack.c.b16 %v1924, %v1916
    %v2069 = vpack.c.b16 %v1925, %v1917
    %v2070 = vpack.c.b16 %v1926, %v1918
    %v2071 = vpack.c.b16 %v1935, %v1927
    %v2072 = vpack.c.b16 %v1936, %v1928
    %v2073 = vpack.c.b16 %v1937, %v1929
    %v2074 = vpack.c.b16 %v1938, %v1930
    %v2075 = vpack.c.b16 %v1939, %v1931
    %v2076 = vpack.c.b16 %v1940, %v1932
    %v2077 = vpack.c.b16 %v1941, %v1933
    %v2078 = vpack.c.b16 %v1942, %v1934
    %v2079 = vpack.c.b16 %v1951, %v1943
    %v2080 = vpack.c.b16 %v1952, %v1944
    %v2081 = vpack.c.b16 %v1953, %v1945
    %v2082 = vpack.c.b16 %v1954, %v1946
    %v2083 = vpack.c.b16 %v1955, %v1947
    %v2084 = vpack.c.b16 %v1956, %v1948
    %v2085 = vpack.c.b16 %v1957, %v1949
    %v2086 = vpack.c.b16 %v1958, %v1950
    %2215 = vmatprep.subr.bf16.mxu0 %v1960
    %2216 = vmatpush1.bf16.msra.mxu0 %v1959
    %2217 = vmatprep.subr.bf16.mxu0 %v1968
    %2218 = vmatpush1.bf16.msra.mxu0 %v1967
    %2219 = vmatprep.subr.bf16.mxu0 %v1976
    %2220 = vmatpush1.bf16.msra.mxu0 %v1975
    %2221 = vmatprep.subr.bf16.mxu0 %v1984
    %2222 = vmatpush1.bf16.msra.mxu0 %v1983
    %2223 = vmatprep.subr.bf16.mxu0 %v1992
    %2224 = vmatpush1.bf16.msra.mxu0 %v1991
    %2225 = vmatprep.subr.bf16.mxu0 %v2000
    %2226 = vmatpush1.bf16.msra.mxu0 %v1999
    %2227 = vmatprep.subr.bf16.mxu0 %v2008
    %2228 = vmatpush1.bf16.msra.mxu0 %v2007
    %2229 = vmatprep.subr.bf16.mxu0 %v2016
    %2230 = vmatpush1.bf16.msra.mxu0 %v2015
    %2231 = vmatprep.subr.bf16.mxu0 %v2024
    %2232 = vmatpush1.bf16.msra.mxu0 %v2023
    %2233 = vmatprep.subr.bf16.mxu0 %v2032
    %2234 = vmatpush1.bf16.msra.mxu0 %v2031
    %2235 = vmatprep.subr.bf16.mxu0 %v2040
    %2236 = vmatpush1.bf16.msra.mxu0 %v2039
    %2237 = vmatprep.subr.bf16.mxu0 %v2048
    %2238 = vmatpush1.bf16.msra.mxu0 %v2047
    %2239 = vmatprep.subr.bf16.mxu0 %v2056
    %2240 = vmatpush1.bf16.msra.mxu0 %v2055
    %2241 = vmatprep.subr.bf16.mxu0 %v2064
    %2242 = vmatpush1.bf16.msra.mxu0 %v2063
    %2243 = vmatprep.subr.bf16.mxu0 %v2072
    %2244 = vmatpush1.bf16.msra.mxu0 %v2071
    %2245 = vmatprep.subr.bf16.mxu0 %v2080
    %2246 = vmatpush1.bf16.msra.mxu0 %v2079
    %2247 = vmatprep.mubr.bf16.mxu0 %v1574
    %2248 = vmatmul.mubr.bf16.gmra.mrb[0].mxu0 %v1573
    %v2249 = vpop.f32.mrb[0].mxu0
    %v2250 = vadd.f32 0.0, %v2249
    %v2251 = vpop.f32.mrb[0].mxu0
    %v2252 = vadd.f32 0.0, %v2251
    %v2253 = vpop.f32.mrb[0].mxu0
    %v2254 = vpop.f32.mrb[0].mxu0
    %2255 = vdwg.mxu0
    %2256 = vmatprep.subr.bf16.mxu0 %v1962
    %2257 = vmatpush1.bf16.msra.mxu0 %v1961
    %2258 = vmatprep.subr.bf16.mxu0 %v1970
    %2259 = vmatpush1.bf16.msra.mxu0 %v1969
    %2260 = vmatprep.subr.bf16.mxu0 %v1978
    %2261 = vmatpush1.bf16.msra.mxu0 %v1977
    %2262 = vmatprep.subr.bf16.mxu0 %v1986
    %2263 = vmatpush1.bf16.msra.mxu0 %v1985
    %2264 = vmatprep.subr.bf16.mxu0 %v1994
    %2265 = vmatpush1.bf16.msra.mxu0 %v1993
    %2266 = vmatprep.subr.bf16.mxu0 %v2002
    %2267 = vmatpush1.bf16.msra.mxu0 %v2001
    %2268 = vmatprep.subr.bf16.mxu0 %v2010
    %2269 = vmatpush1.bf16.msra.mxu0 %v2009
    %2270 = vmatprep.subr.bf16.mxu0 %v2018
    %2271 = vmatpush1.bf16.msra.mxu0 %v2017
    %2272 = vmatprep.subr.bf16.mxu0 %v2026
    %2273 = vmatpush1.bf16.msra.mxu0 %v2025
    %2274 = vmatprep.subr.bf16.mxu0 %v2034
    %2275 = vmatpush1.bf16.msra.mxu0 %v2033
    %2276 = vmatprep.subr.bf16.mxu0 %v2042
    %2277 = vmatpush1.bf16.msra.mxu0 %v2041
    %2278 = vmatprep.subr.bf16.mxu0 %v2050
    %2279 = vmatpush1.bf16.msra.mxu0 %v2049
    %2280 = vmatprep.subr.bf16.mxu0 %v2058
    %2281 = vmatpush1.bf16.msra.mxu0 %v2057
    %2282 = vmatprep.subr.bf16.mxu0 %v2066
    %2283 = vmatpush1.bf16.msra.mxu0 %v2065
    %2284 = vmatprep.subr.bf16.mxu0 %v2074
    %2285 = vmatpush1.bf16.msra.mxu0 %v2073
    %2286 = vmatprep.subr.bf16.mxu0 %v2082
    %2287 = vmatpush1.bf16.msra.mxu0 %v2081
    %2288 = vmatprep.mubr.bf16.mxu0 %v1574
    %2289 = vmatmul.mubr.bf16.gmra.mrb[0].mxu0 %v1573
    %v2290 = vpop.f32.mrb[0].mxu0
    %v2291 = vadd.f32 0.0, %v2290
    %v2292 = vpop.f32.mrb[0].mxu0
    %v2293 = vadd.f32 0.0, %v2292
    %v2294 = vpop.f32.mrb[0].mxu0
    %v2295 = vpop.f32.mrb[0].mxu0
    %2296 = vdwg.mxu0
    %2297 = vmatprep.subr.bf16.mxu0 %v1964
    %2298 = vmatpush1.bf16.msra.mxu0 %v1963
    %2299 = vmatprep.subr.bf16.mxu0 %v1972
    %2300 = vmatpush1.bf16.msra.mxu0 %v1971
    %2301 = vmatprep.subr.bf16.mxu0 %v1980
    %2302 = vmatpush1.bf16.msra.mxu0 %v1979
    %2303 = vmatprep.subr.bf16.mxu0 %v1988
    %2304 = vmatpush1.bf16.msra.mxu0 %v1987
    %2305 = vmatprep.subr.bf16.mxu0 %v1996
    %2306 = vmatpush1.bf16.msra.mxu0 %v1995
    %2307 = vmatprep.subr.bf16.mxu0 %v2004
    %2308 = vmatpush1.bf16.msra.mxu0 %v2003
    %2309 = vmatprep.subr.bf16.mxu0 %v2012
    %2310 = vmatpush1.bf16.msra.mxu0 %v2011
    %2311 = vmatprep.subr.bf16.mxu0 %v2020
    %2312 = vmatpush1.bf16.msra.mxu0 %v2019
    %2313 = vmatprep.subr.bf16.mxu0 %v2028
    %2314 = vmatpush1.bf16.msra.mxu0 %v2027
    %2315 = vmatprep.subr.bf16.mxu0 %v2036
    %2316 = vmatpush1.bf16.msra.mxu0 %v2035
    %2317 = vmatprep.subr.bf16.mxu0 %v2044
    %2318 = vmatpush1.bf16.msra.mxu0 %v2043
    %2319 = vmatprep.subr.bf16.mxu0 %v2052
    %2320 = vmatpush1.bf16.msra.mxu0 %v2051
    %2321 = vmatprep.subr.bf16.mxu0 %v2060
    %2322 = vmatpush1.bf16.msra.mxu0 %v2059
    %2323 = vmatprep.subr.bf16.mxu0 %v2068
    %2324 = vmatpush1.bf16.msra.mxu0 %v2067
    %2325 = vmatprep.subr.bf16.mxu0 %v2076
    %2326 = vmatpush1.bf16.msra.mxu0 %v2075
    %2327 = vmatprep.subr.bf16.mxu0 %v2084
    %2328 = vmatpush1.bf16.msra.mxu0 %v2083
    %2329 = vmatprep.mubr.bf16.mxu0 %v1574
    %2330 = vmatmul.mubr.bf16.gmra.mrb[0].mxu0 %v1573
    %v2331 = vpop.f32.mrb[0].mxu0
    %v2332 = vadd.f32 0.0, %v2331
    %v2333 = vpop.f32.mrb[0].mxu0
    %v2334 = vadd.f32 0.0, %v2333
    %v2335 = vpop.f32.mrb[0].mxu0
    %v2336 = vpop.f32.mrb[0].mxu0
    %2337 = vdwg.mxu0
    %2338 = vmatprep.subr.bf16.mxu0 %v1966
    %2339 = vmatpush1.bf16.msra.mxu0 %v1965
    %2340 = vmatprep.subr.bf16.mxu0 %v1974
    %2341 = vmatpush1.bf16.msra.mxu0 %v1973
    %2342 = vmatprep.subr.bf16.mxu0 %v1982
    %2343 = vmatpush1.bf16.msra.mxu0 %v1981
    %2344 = vmatprep.subr.bf16.mxu0 %v1990
    %2345 = vmatpush1.bf16.msra.mxu0 %v1989
    %2346 = vmatprep.subr.bf16.mxu0 %v1998
    %2347 = vmatpush1.bf16.msra.mxu0 %v1997
    %2348 = vmatprep.subr.bf16.mxu0 %v2006
    %2349 = vmatpush1.bf16.msra.mxu0 %v2005
    %2350 = vmatprep.subr.bf16.mxu0 %v2014
    %2351 = vmatpush1.bf16.msra.mxu0 %v2013
    %2352 = vmatprep.subr.bf16.mxu0 %v2022
    %2353 = vmatpush1.bf16.msra.mxu0 %v2021
    %2354 = vmatprep.subr.bf16.mxu0 %v2030
    %2355 = vmatpush1.bf16.msra.mxu0 %v2029
    %2356 = vmatprep.subr.bf16.mxu0 %v2038
    %2357 = vmatpush1.bf16.msra.mxu0 %v2037
    %2358 = vmatprep.subr.bf16.mxu0 %v2046
    %2359 = vmatpush1.bf16.msra.mxu0 %v2045
    %2360 = vmatprep.subr.bf16.mxu0 %v2054
    %2361 = vmatpush1.bf16.msra.mxu0 %v2053
    %2362 = vmatprep.subr.bf16.mxu0 %v2062
    %2363 = vmatpush1.bf16.msra.mxu0 %v2061
    %2364 = vmatprep.subr.bf16.mxu0 %v2070
    %2365 = vmatpush1.bf16.msra.mxu0 %v2069
    %2366 = vmatprep.subr.bf16.mxu0 %v2078
    %2367 = vmatpush1.bf16.msra.mxu0 %v2077
    %2368 = vmatprep.subr.bf16.mxu0 %v2086
    %2369 = vmatpush1.bf16.msra.mxu0 %v2085
    %2370 = vmatprep.mubr.bf16.mxu0 %v1574
    %2371 = vmatmul.mubr.bf16.gmra.mrb[0].mxu0 %v1573
    %v2372 = vpop.f32.mrb[0].mxu0
    %v2373 = vadd.f32 0.0, %v2372
    %v2374 = vpop.f32.mrb[0].mxu0
    %v2375 = vadd.f32 0.0, %v2374
    %v2376 = vpop.f32.mrb[0].mxu0
    %v2377 = vpop.f32.mrb[0].mxu0
    %2378 = vdwg.mxu0
    %v2379 = vadd.f32 %v1424, %v2250
    %v2380 = vadd.f32 %v1425, %v2252
    %v2381 = vadd.f32 %v1426, %v2291
    %v2382 = vadd.f32 %v1427, %v2293
    %v2383 = vadd.f32 %v1428, %v2332
    %v2384 = vadd.f32 %v1429, %v2334
    %v2385 = vadd.f32 %v1430, %v2373
    %v2386 = vadd.f32 %v1431, %v2375
    %v2387 = vxor.u32 %v2379, 2147483648
    %v2388 = vxor.u32 %v2380, 2147483648
    %v2389 = vxor.u32 %v2381, 2147483648
    %v2390 = vxor.u32 %v2382, 2147483648
    %v2391 = vxor.u32 %v2383, 2147483648
    %v2392 = vxor.u32 %v2384, 2147483648
    %v2393 = vmul.f32 %v2387, 1.442695
    %v2394 = vpow.pop %v2393
    %v2395 = vmul.f32 %v2388, 1.442695
    %v2396 = vpow.pop %v2395
    %v2397 = vmul.f32 %v2389, 1.442695
    %v2398 = vpow.pop %v2397
    %v2399 = vmul.f32 %v2390, 1.442695
    %v2400 = vpow.pop %v2399
    %v2401 = vmul.f32 %v2391, 1.442695
    %v2402 = vpow.pop %v2401
    %v2403 = vmul.f32 %v2392, 1.442695
    %v2404 = vpow.pop %v2403
    %v2405 = vadd.f32 %v2394, 1.0
    %v2406 = vadd.f32 %v2396, 1.0
    %v2407 = vadd.f32 %v2398, 1.0
    %v2408 = vadd.f32 %v2400, 1.0
    %v2409 = vadd.f32 %v2402, 1.0
    %v2410 = vadd.f32 %v2404, 1.0
    %v2411 = vrcp.pop %v2405
    %v2412 = vmul.f32 1.0, %v2411
    %v2413 = vrcp.pop %v2406
    %v2414 = vmul.f32 1.0, %v2413
    %v2415 = vrcp.pop %v2407
    %v2416 = vmul.f32 1.0, %v2415
    %v2417 = vrcp.pop %v2408
    %v2418 = vmul.f32 1.0, %v2417
    %v2419 = vrcp.pop %v2409
    %v2420 = vmul.f32 1.0, %v2419
    %v2421 = vrcp.pop %v2410
    %v2422 = vmul.f32 1.0, %v2421
    %v2423 = vtanh.pop %v2385
    %v2424 = vtanh.pop %v2386
    %v2426 = vlaneseq
    %v2427 = vshrl.u32 %v2426, 7
    %v2428 = vsub.s32 0, %v2427
    %v2429 = vrot.slane %v1561, %v2428
    %v2430 = vlaneseq
    %v2431 = vshrl.u32 %v2430, 7
    %v2432 = vsub.s32 1, %v2431
    %v2433 = vrot.slane %v1561, %v2432
    %v2436 = vmul.f32 %v2416, %v2429
    %v2437 = vmul.f32 %v2418, %v2433
    %v2438 = vmul.f32 %v2412, %v2423
    %v2439 = vmul.f32 %v2414, %v2424
    %v2440 = vadd.f32 %v2436, %v2438
    %v2441 = vadd.f32 %v2437, %v2439
    %v2442 = vtanh.pop %v2440
    %v2443 = vtanh.pop %v2441
    %v2444 = vmul.f32 %v2420, %v2442
    %v2445 = vmul.f32 %v2422, %v2443
    %v2446 = vpack.c.bf16 %v2444, %v2444
    %v2447 = vpack.c.bf16 %v2445, %v2445
    %2448 = vmatprep.subr.bf16.mxu0 %v1960
    %2449 = vmatpush1.bf16.msra.mxu0 %v1959
    %2450 = vmatprep.subr.bf16.mxu0 %v1968
    %2451 = vmatpush1.bf16.msra.mxu0 %v1967
    %2452 = vmatprep.subr.bf16.mxu0 %v1976
    %2453 = vmatpush1.bf16.msra.mxu0 %v1975
    %2454 = vmatprep.subr.bf16.mxu0 %v1984
    %2455 = vmatpush1.bf16.msra.mxu0 %v1983
    %2456 = vmatprep.subr.bf16.mxu0 %v1992
    %2457 = vmatpush1.bf16.msra.mxu0 %v1991
    %2458 = vmatprep.subr.bf16.mxu0 %v2000
    %2459 = vmatpush1.bf16.msra.mxu0 %v1999
    %2460 = vmatprep.subr.bf16.mxu0 %v2008
    %2461 = vmatpush1.bf16.msra.mxu0 %v2007
    %2462 = vmatprep.subr.bf16.mxu0 %v2016
    %2463 = vmatpush1.bf16.msra.mxu0 %v2015
    %2464 = vmatprep.subr.bf16.mxu0 %v2024
    %2465 = vmatpush1.bf16.msra.mxu0 %v2023
    %2466 = vmatprep.subr.bf16.mxu0 %v2032
    %2467 = vmatpush1.bf16.msra.mxu0 %v2031
    %2468 = vmatprep.subr.bf16.mxu0 %v2040
    %2469 = vmatpush1.bf16.msra.mxu0 %v2039
    %2470 = vmatprep.subr.bf16.mxu0 %v2048
    %2471 = vmatpush1.bf16.msra.mxu0 %v2047
    %2472 = vmatprep.subr.bf16.mxu0 %v2056
    %2473 = vmatpush1.bf16.msra.mxu0 %v2055
    %2474 = vmatprep.subr.bf16.mxu0 %v2064
    %2475 = vmatpush1.bf16.msra.mxu0 %v2063
    %2476 = vmatprep.subr.bf16.mxu0 %v2072
    %2477 = vmatpush1.bf16.msra.mxu0 %v2071
    %2478 = vmatprep.subr.bf16.mxu0 %v2080
    %2479 = vmatpush1.bf16.msra.mxu0 %v2079
    %2480 = vmatprep.mubr.bf16.mxu0 %v2447
    %2481 = vmatmul.mubr.bf16.gmra.mrb[0].mxu0 %v2446
    %v2482 = vpop.f32.mrb[0].mxu0
    %v2483 = vadd.f32 0.0, %v2482
    %v2484 = vpop.f32.mrb[0].mxu0
    %v2485 = vadd.f32 0.0, %v2484
    %v2486 = vpop.f32.mrb[0].mxu0
    %v2487 = vpop.f32.mrb[0].mxu0
    %2488 = vdwg.mxu0
    %2489 = vmatprep.subr.bf16.mxu0 %v1962
    %2490 = vmatpush1.bf16.msra.mxu0 %v1961
    %2491 = vmatprep.subr.bf16.mxu0 %v1970
    %2492 = vmatpush1.bf16.msra.mxu0 %v1969
    %2493 = vmatprep.subr.bf16.mxu0 %v1978
    %2494 = vmatpush1.bf16.msra.mxu0 %v1977
    %2495 = vmatprep.subr.bf16.mxu0 %v1986
    %2496 = vmatpush1.bf16.msra.mxu0 %v1985
    %2497 = vmatprep.subr.bf16.mxu0 %v1994
    %2498 = vmatpush1.bf16.msra.mxu0 %v1993
    %2499 = vmatprep.subr.bf16.mxu0 %v2002
    %2500 = vmatpush1.bf16.msra.mxu0 %v2001
    %2501 = vmatprep.subr.bf16.mxu0 %v2010
    %2502 = vmatpush1.bf16.msra.mxu0 %v2009
    %2503 = vmatprep.subr.bf16.mxu0 %v2018
    %2504 = vmatpush1.bf16.msra.mxu0 %v2017
    %2505 = vmatprep.subr.bf16.mxu0 %v2026
    %2506 = vmatpush1.bf16.msra.mxu0 %v2025
    %2507 = vmatprep.subr.bf16.mxu0 %v2034
    %2508 = vmatpush1.bf16.msra.mxu0 %v2033
    %2509 = vmatprep.subr.bf16.mxu0 %v2042
    %2510 = vmatpush1.bf16.msra.mxu0 %v2041
    %2511 = vmatprep.subr.bf16.mxu0 %v2050
    %2512 = vmatpush1.bf16.msra.mxu0 %v2049
    %2513 = vmatprep.subr.bf16.mxu0 %v2058
    %2514 = vmatpush1.bf16.msra.mxu0 %v2057
    %2515 = vmatprep.subr.bf16.mxu0 %v2066
    %2516 = vmatpush1.bf16.msra.mxu0 %v2065
    %2517 = vmatprep.subr.bf16.mxu0 %v2074
    %2518 = vmatpush1.bf16.msra.mxu0 %v2073
    %2519 = vmatprep.subr.bf16.mxu0 %v2082
    %2520 = vmatpush1.bf16.msra.mxu0 %v2081
    %2521 = vmatprep.mubr.bf16.mxu0 %v2447
    %2522 = vmatmul.mubr.bf16.gmra.mrb[0].mxu0 %v2446
    %v2523 = vpop.f32.mrb[0].mxu0
    %v2524 = vadd.f32 0.0, %v2523
    %v2525 = vpop.f32.mrb[0].mxu0
    %v2526 = vadd.f32 0.0, %v2525
    %v2527 = vpop.f32.mrb[0].mxu0
    %v2528 = vpop.f32.mrb[0].mxu0
    %2529 = vdwg.mxu0
    %2530 = vmatprep.subr.bf16.mxu0 %v1964
    %2531 = vmatpush1.bf16.msra.mxu0 %v1963
    %2532 = vmatprep.subr.bf16.mxu0 %v1972
    %2533 = vmatpush1.bf16.msra.mxu0 %v1971
    %2534 = vmatprep.subr.bf16.mxu0 %v1980
    %2535 = vmatpush1.bf16.msra.mxu0 %v1979
    %2536 = vmatprep.subr.bf16.mxu0 %v1988
    %2537 = vmatpush1.bf16.msra.mxu0 %v1987
    %2538 = vmatprep.subr.bf16.mxu0 %v1996
    %2539 = vmatpush1.bf16.msra.mxu0 %v1995
    %2540 = vmatprep.subr.bf16.mxu0 %v2004
    %2541 = vmatpush1.bf16.msra.mxu0 %v2003
    %2542 = vmatprep.subr.bf16.mxu0 %v2012
    %2543 = vmatpush1.bf16.msra.mxu0 %v2011
    %2544 = vmatprep.subr.bf16.mxu0 %v2020
    %2545 = vmatpush1.bf16.msra.mxu0 %v2019
    %2546 = vmatprep.subr.bf16.mxu0 %v2028
    %2547 = vmatpush1.bf16.msra.mxu0 %v2027
    %2548 = vmatprep.subr.bf16.mxu0 %v2036
    %2549 = vmatpush1.bf16.msra.mxu0 %v2035
    %2550 = vmatprep.subr.bf16.mxu0 %v2044
    %2551 = vmatpush1.bf16.msra.mxu0 %v2043
    %2552 = vmatprep.subr.bf16.mxu0 %v2052
    %2553 = vmatpush1.bf16.msra.mxu0 %v2051
    %2554 = vmatprep.subr.bf16.mxu0 %v2060
    %2555 = vmatpush1.bf16.msra.mxu0 %v2059
    %2556 = vmatprep.subr.bf16.mxu0 %v2068
    %2557 = vmatpush1.bf16.msra.mxu0 %v2067
    %2558 = vmatprep.subr.bf16.mxu0 %v2076
    %2559 = vmatpush1.bf16.msra.mxu0 %v2075
    %2560 = vmatprep.subr.bf16.mxu0 %v2084
    %2561 = vmatpush1.bf16.msra.mxu0 %v2083
    %2562 = vmatprep.mubr.bf16.mxu0 %v2447
    %2563 = vmatmul.mubr.bf16.gmra.mrb[0].mxu0 %v2446
    %v2564 = vpop.f32.mrb[0].mxu0
    %v2565 = vadd.f32 0.0, %v2564
    %v2566 = vpop.f32.mrb[0].mxu0
    %v2567 = vadd.f32 0.0, %v2566
    %v2568 = vpop.f32.mrb[0].mxu0
    %v2569 = vpop.f32.mrb[0].mxu0
    %2570 = vdwg.mxu0
    %2571 = vmatprep.subr.bf16.mxu0 %v1966
    %2572 = vmatpush1.bf16.msra.mxu0 %v1965
    %2573 = vmatprep.subr.bf16.mxu0 %v1974
    %2574 = vmatpush1.bf16.msra.mxu0 %v1973
    %2575 = vmatprep.subr.bf16.mxu0 %v1982
    %2576 = vmatpush1.bf16.msra.mxu0 %v1981
    %2577 = vmatprep.subr.bf16.mxu0 %v1990
    %2578 = vmatpush1.bf16.msra.mxu0 %v1989
    %2579 = vmatprep.subr.bf16.mxu0 %v1998
    %2580 = vmatpush1.bf16.msra.mxu0 %v1997
    %2581 = vmatprep.subr.bf16.mxu0 %v2006
    %2582 = vmatpush1.bf16.msra.mxu0 %v2005
    %2583 = vmatprep.subr.bf16.mxu0 %v2014
    %2584 = vmatpush1.bf16.msra.mxu0 %v2013
    %2585 = vmatprep.subr.bf16.mxu0 %v2022
    %2586 = vmatpush1.bf16.msra.mxu0 %v2021
    %2587 = vmatprep.subr.bf16.mxu0 %v2030
    %2588 = vmatpush1.bf16.msra.mxu0 %v2029
    %2589 = vmatprep.subr.bf16.mxu0 %v2038
    %2590 = vmatpush1.bf16.msra.mxu0 %v2037
    %2591 = vmatprep.subr.bf16.mxu0 %v2046
    %2592 = vmatpush1.bf16.msra.mxu0 %v2045
    %2593 = vmatprep.subr.bf16.mxu0 %v2054
    %2594 = vmatpush1.bf16.msra.mxu0 %v2053
    %2595 = vmatprep.subr.bf16.mxu0 %v2062
    %2596 = vmatpush1.bf16.msra.mxu0 %v2061
    %2597 = vmatprep.subr.bf16.mxu0 %v2070
    %2598 = vmatpush1.bf16.msra.mxu0 %v2069
    %2599 = vmatprep.subr.bf16.mxu0 %v2078
    %2600 = vmatpush1.bf16.msra.mxu0 %v2077
    %2601 = vmatprep.subr.bf16.mxu0 %v2086
    %2602 = vmatpush1.bf16.msra.mxu0 %v2085
    %2603 = vmatprep.mubr.bf16.mxu0 %v2447
    %2604 = vmatmul.mubr.bf16.gmra.mrb[0].mxu0 %v2446
    %v2605 = vpop.f32.mrb[0].mxu0
    %v2606 = vadd.f32 0.0, %v2605
    %v2607 = vpop.f32.mrb[0].mxu0
    %v2608 = vadd.f32 0.0, %v2607
    %v2609 = vpop.f32.mrb[0].mxu0
    %v2610 = vpop.f32.mrb[0].mxu0
    %2611 = vdwg.mxu0
    %v2620 = vrot.slane %v2483, 7
    %v2621 = vrot.slane %v2485, 7
    %v2622 = vrot.slane %v2524, 7
    %v2623 = vrot.slane %v2526, 7
    %v2624 = vrot.slane %v2565, 7
    %v2625 = vrot.slane %v2567, 7
    %v2626 = vrot.slane %v2606, 7
    %v2627 = vrot.slane %v2608, 7
    %v2636 = vadd.f32 %v1424, %v2620
    %v2637 = vadd.f32 %v1425, %v2621
    %v2638 = vadd.f32 %v1426, %v2622
    %v2639 = vadd.f32 %v1427, %v2623
    %v2640 = vadd.f32 %v1428, %v2624
    %v2641 = vadd.f32 %v1429, %v2625
    %v2642 = vadd.f32 %v1430, %v2626
    %v2643 = vadd.f32 %v1431, %v2627
    %v2644 = vxor.u32 %v2636, 2147483648
    %v2645 = vxor.u32 %v2637, 2147483648
    %v2646 = vxor.u32 %v2638, 2147483648
    %v2647 = vxor.u32 %v2639, 2147483648
    %v2648 = vxor.u32 %v2640, 2147483648
    %v2649 = vxor.u32 %v2641, 2147483648
    %v2650 = vmul.f32 %v2644, 1.442695
    %v2651 = vpow.pop %v2650
    %v2652 = vmul.f32 %v2645, 1.442695
    %v2653 = vpow.pop %v2652
    %v2654 = vmul.f32 %v2646, 1.442695
    %v2655 = vpow.pop %v2654
    %v2656 = vmul.f32 %v2647, 1.442695
    %v2657 = vpow.pop %v2656
    %v2658 = vmul.f32 %v2648, 1.442695
    %v2659 = vpow.pop %v2658
    %v2660 = vmul.f32 %v2649, 1.442695
    %v2661 = vpow.pop %v2660
    %v2662 = vadd.f32 %v2651, 1.0
    %v2663 = vadd.f32 %v2653, 1.0
    %v2664 = vadd.f32 %v2655, 1.0
    %v2665 = vadd.f32 %v2657, 1.0
    %v2666 = vadd.f32 %v2659, 1.0
    %v2667 = vadd.f32 %v2661, 1.0
    %v2668 = vrcp.pop %v2662
    %v2669 = vmul.f32 1.0, %v2668
    %v2670 = vrcp.pop %v2663
    %v2671 = vmul.f32 1.0, %v2670
    %v2672 = vrcp.pop %v2664
    %v2673 = vmul.f32 1.0, %v2672
    %v2674 = vrcp.pop %v2665
    %v2675 = vmul.f32 1.0, %v2674
    %v2676 = vrcp.pop %v2666
    %v2677 = vmul.f32 1.0, %v2676
    %v2678 = vrcp.pop %v2667
    %v2679 = vmul.f32 1.0, %v2678
    %v2680 = vtanh.pop %v2642
    %v2681 = vtanh.pop %v2643
    %v2684 = vrot.slane %v2440, 7
    %v2685 = vrot.slane %v2441, 7
    %v2688 = vmul.f32 %v2673, %v2684
    %v2689 = vmul.f32 %v2675, %v2685
    %v2690 = vmul.f32 %v2669, %v2680
    %v2691 = vmul.f32 %v2671, %v2681
    %v2692 = vadd.f32 %v2688, %v2690
    %v2693 = vadd.f32 %v2689, %v2691
    %v2694 = vtanh.pop %v2692
    %v2695 = vtanh.pop %v2693
    %v2696 = vmul.f32 %v2677, %v2694
    %v2697 = vmul.f32 %v2679, %v2695
    %v2698 = vpack.c.bf16 %v2696, %v2696
    %v2699 = vpack.c.bf16 %v2697, %v2697
    %v2701 = vshrl.u32 %v2698, 16
    %v2704 = vshrl.u32 %v2699, 16
    %2708 = vmatprep.subr.bf16.mxu0 %v1960
    %2709 = vmatpush1.bf16.msra.mxu0 %v1959
    %2710 = vmatprep.subr.bf16.mxu0 %v1968
    %2711 = vmatpush1.bf16.msra.mxu0 %v1967
    %2712 = vmatprep.subr.bf16.mxu0 %v1976
    %2713 = vmatpush1.bf16.msra.mxu0 %v1975
    %2714 = vmatprep.subr.bf16.mxu0 %v1984
    %2715 = vmatpush1.bf16.msra.mxu0 %v1983
    %2716 = vmatprep.subr.bf16.mxu0 %v1992
    %2717 = vmatpush1.bf16.msra.mxu0 %v1991
    %2718 = vmatprep.subr.bf16.mxu0 %v2000
    %2719 = vmatpush1.bf16.msra.mxu0 %v1999
    %2720 = vmatprep.subr.bf16.mxu0 %v2008
    %2721 = vmatpush1.bf16.msra.mxu0 %v2007
    %2722 = vmatprep.subr.bf16.mxu0 %v2016
    %2723 = vmatpush1.bf16.msra.mxu0 %v2015
    %2724 = vmatprep.subr.bf16.mxu0 %v2024
    %2725 = vmatpush1.bf16.msra.mxu0 %v2023
    %2726 = vmatprep.subr.bf16.mxu0 %v2032
    %2727 = vmatpush1.bf16.msra.mxu0 %v2031
    %2728 = vmatprep.subr.bf16.mxu0 %v2040
    %2729 = vmatpush1.bf16.msra.mxu0 %v2039
    %2730 = vmatprep.subr.bf16.mxu0 %v2048
    %2731 = vmatpush1.bf16.msra.mxu0 %v2047
    %2732 = vmatprep.subr.bf16.mxu0 %v2056
    %2733 = vmatpush1.bf16.msra.mxu0 %v2055
    %2734 = vmatprep.subr.bf16.mxu0 %v2064
    %2735 = vmatpush1.bf16.msra.mxu0 %v2063
    %2736 = vmatprep.subr.bf16.mxu0 %v2072
    %2737 = vmatpush1.bf16.msra.mxu0 %v2071
    %2738 = vmatprep.subr.bf16.mxu0 %v2080
    %2739 = vmatpush1.bf16.msra.mxu0 %v2079
    %2740 = vmatprep.mubr.bf16.mxu0 %v2704
    %2741 = vmatmul.mubr.bf16.gmra.mrb[0].mxu0 %v2701
    %v2742 = vpop.f32.mrb[0].mxu0
    %v2743 = vadd.f32 0.0, %v2742
    %v2744 = vpop.f32.mrb[0].mxu0
    %v2745 = vadd.f32 0.0, %v2744
    %v2746 = vpop.f32.mrb[0].mxu0
    %v2747 = vpop.f32.mrb[0].mxu0
    %2748 = vdwg.mxu0
    %2749 = vmatprep.subr.bf16.mxu0 %v1962
    %2750 = vmatpush1.bf16.msra.mxu0 %v1961
    %2751 = vmatprep.subr.bf16.mxu0 %v1970
    %2752 = vmatpush1.bf16.msra.mxu0 %v1969
    %2753 = vmatprep.subr.bf16.mxu0 %v1978
    %2754 = vmatpush1.bf16.msra.mxu0 %v1977
    %2755 = vmatprep.subr.bf16.mxu0 %v1986
    %2756 = vmatpush1.bf16.msra.mxu0 %v1985
    %2757 = vmatprep.subr.bf16.mxu0 %v1994
    %2758 = vmatpush1.bf16.msra.mxu0 %v1993
    %2759 = vmatprep.subr.bf16.mxu0 %v2002
    %2760 = vmatpush1.bf16.msra.mxu0 %v2001
    %2761 = vmatprep.subr.bf16.mxu0 %v2010
    %2762 = vmatpush1.bf16.msra.mxu0 %v2009
    %2763 = vmatprep.subr.bf16.mxu0 %v2018
    %2764 = vmatpush1.bf16.msra.mxu0 %v2017
    %2765 = vmatprep.subr.bf16.mxu0 %v2026
    %2766 = vmatpush1.bf16.msra.mxu0 %v2025
    %2767 = vmatprep.subr.bf16.mxu0 %v2034
    %2768 = vmatpush1.bf16.msra.mxu0 %v2033
    %2769 = vmatprep.subr.bf16.mxu0 %v2042
    %2770 = vmatpush1.bf16.msra.mxu0 %v2041
    %2771 = vmatprep.subr.bf16.mxu0 %v2050
    %2772 = vmatpush1.bf16.msra.mxu0 %v2049
    %2773 = vmatprep.subr.bf16.mxu0 %v2058
    %2774 = vmatpush1.bf16.msra.mxu0 %v2057
    %2775 = vmatprep.subr.bf16.mxu0 %v2066
    %2776 = vmatpush1.bf16.msra.mxu0 %v2065
    %2777 = vmatprep.subr.bf16.mxu0 %v2074
    %2778 = vmatpush1.bf16.msra.mxu0 %v2073
    %2779 = vmatprep.subr.bf16.mxu0 %v2082
    %2780 = vmatpush1.bf16.msra.mxu0 %v2081
    %2781 = vmatprep.mubr.bf16.mxu0 %v2704
    %2782 = vmatmul.mubr.bf16.gmra.mrb[0].mxu0 %v2701
    %v2783 = vpop.f32.mrb[0].mxu0
    %v2784 = vadd.f32 0.0, %v2783
    %v2785 = vpop.f32.mrb[0].mxu0
    %v2786 = vadd.f32 0.0, %v2785
    %v2787 = vpop.f32.mrb[0].mxu0
    %v2788 = vpop.f32.mrb[0].mxu0
    %2789 = vdwg.mxu0
    %2790 = vmatprep.subr.bf16.mxu0 %v1964
    %2791 = vmatpush1.bf16.msra.mxu0 %v1963
    %2792 = vmatprep.subr.bf16.mxu0 %v1972
    %2793 = vmatpush1.bf16.msra.mxu0 %v1971
    %2794 = vmatprep.subr.bf16.mxu0 %v1980
    %2795 = vmatpush1.bf16.msra.mxu0 %v1979
    %2796 = vmatprep.subr.bf16.mxu0 %v1988
    %2797 = vmatpush1.bf16.msra.mxu0 %v1987
    %2798 = vmatprep.subr.bf16.mxu0 %v1996
    %2799 = vmatpush1.bf16.msra.mxu0 %v1995
    %2800 = vmatprep.subr.bf16.mxu0 %v2004
    %2801 = vmatpush1.bf16.msra.mxu0 %v2003
    %2802 = vmatprep.subr.bf16.mxu0 %v2012
    %2803 = vmatpush1.bf16.msra.mxu0 %v2011
    %2804 = vmatprep.subr.bf16.mxu0 %v2020
    %2805 = vmatpush1.bf16.msra.mxu0 %v2019
    %2806 = vmatprep.subr.bf16.mxu0 %v2028
    %2807 = vmatpush1.bf16.msra.mxu0 %v2027
    %2808 = vmatprep.subr.bf16.mxu0 %v2036
    %2809 = vmatpush1.bf16.msra.mxu0 %v2035
    %2810 = vmatprep.subr.bf16.mxu0 %v2044
    %2811 = vmatpush1.bf16.msra.mxu0 %v2043
    %2812 = vmatprep.subr.bf16.mxu0 %v2052
    %2813 = vmatpush1.bf16.msra.mxu0 %v2051
    %2814 = vmatprep.subr.bf16.mxu0 %v2060
    %2815 = vmatpush1.bf16.msra.mxu0 %v2059
    %2816 = vmatprep.subr.bf16.mxu0 %v2068
    %2817 = vmatpush1.bf16.msra.mxu0 %v2067
    %2818 = vmatprep.subr.bf16.mxu0 %v2076
    %2819 = vmatpush1.bf16.msra.mxu0 %v2075
    %2820 = vmatprep.subr.bf16.mxu0 %v2084
    %2821 = vmatpush1.bf16.msra.mxu0 %v2083
    %2822 = vmatprep.mubr.bf16.mxu0 %v2704
    %2823 = vmatmul.mubr.bf16.gmra.mrb[0].mxu0 %v2701
    %v2824 = vpop.f32.mrb[0].mxu0
    %v2825 = vadd.f32 0.0, %v2824
    %v2826 = vpop.f32.mrb[0].mxu0
    %v2827 = vadd.f32 0.0, %v2826
    %v2828 = vpop.f32.mrb[0].mxu0
    %v2829 = vpop.f32.mrb[0].mxu0
    %2830 = vdwg.mxu0
    %2831 = vmatprep.subr.bf16.mxu0 %v1966
    %2832 = vmatpush1.bf16.msra.mxu0 %v1965
    %2833 = vmatprep.subr.bf16.mxu0 %v1974
    %2834 = vmatpush1.bf16.msra.mxu0 %v1973
    %2835 = vmatprep.subr.bf16.mxu0 %v1982
    %2836 = vmatpush1.bf16.msra.mxu0 %v1981
    %2837 = vmatprep.subr.bf16.mxu0 %v1990
    %2838 = vmatpush1.bf16.msra.mxu0 %v1989
    %2839 = vmatprep.subr.bf16.mxu0 %v1998
    %2840 = vmatpush1.bf16.msra.mxu0 %v1997
    %2841 = vmatprep.subr.bf16.mxu0 %v2006
    %2842 = vmatpush1.bf16.msra.mxu0 %v2005
    %2843 = vmatprep.subr.bf16.mxu0 %v2014
    %2844 = vmatpush1.bf16.msra.mxu0 %v2013
    %2845 = vmatprep.subr.bf16.mxu0 %v2022
    %2846 = vmatpush1.bf16.msra.mxu0 %v2021
    %2847 = vmatprep.subr.bf16.mxu0 %v2030
    %2848 = vmatpush1.bf16.msra.mxu0 %v2029
    %2849 = vmatprep.subr.bf16.mxu0 %v2038
    %2850 = vmatpush1.bf16.msra.mxu0 %v2037
    %2851 = vmatprep.subr.bf16.mxu0 %v2046
    %2852 = vmatpush1.bf16.msra.mxu0 %v2045
    %2853 = vmatprep.subr.bf16.mxu0 %v2054
    %2854 = vmatpush1.bf16.msra.mxu0 %v2053
    %2855 = vmatprep.subr.bf16.mxu0 %v2062
    %2856 = vmatpush1.bf16.msra.mxu0 %v2061
    %2857 = vmatprep.subr.bf16.mxu0 %v2070
    %2858 = vmatpush1.bf16.msra.mxu0 %v2069
    %2859 = vmatprep.subr.bf16.mxu0 %v2078
    %2860 = vmatpush1.bf16.msra.mxu0 %v2077
    %2861 = vmatprep.subr.bf16.mxu0 %v2086
    %2862 = vmatpush1.bf16.msra.mxu0 %v2085
    %2863 = vmatprep.mubr.bf16.mxu0 %v2704
    %2864 = vmatmul.mubr.bf16.gmra.mrb[0].mxu0 %v2701
    %v2865 = vpop.f32.mrb[0].mxu0
    %v2866 = vadd.f32 0.0, %v2865
    %v2867 = vpop.f32.mrb[0].mxu0
    %v2868 = vadd.f32 0.0, %v2867
    %v2869 = vpop.f32.mrb[0].mxu0
    %v2870 = vpop.f32.mrb[0].mxu0
    %2871 = vdwg.mxu0
    %v2880 = vrot.slane %v2743, 6
    %v2881 = vrot.slane %v2745, 6
    %v2882 = vrot.slane %v2784, 6
    %v2883 = vrot.slane %v2786, 6
    %v2884 = vrot.slane %v2825, 6
    %v2885 = vrot.slane %v2827, 6
    %v2886 = vrot.slane %v2866, 6
    %v2887 = vrot.slane %v2868, 6
    %v2896 = vadd.f32 %v1424, %v2880
    %v2897 = vadd.f32 %v1425, %v2881
    %v2898 = vadd.f32 %v1426, %v2882
    %v2899 = vadd.f32 %v1427, %v2883
    %v2900 = vadd.f32 %v1428, %v2884
    %v2901 = vadd.f32 %v1429, %v2885
    %v2902 = vadd.f32 %v1430, %v2886
    %v2903 = vadd.f32 %v1431, %v2887
    %v2904 = vxor.u32 %v2896, 2147483648
    %v2905 = vxor.u32 %v2897, 2147483648
    %v2906 = vxor.u32 %v2898, 2147483648
    %v2907 = vxor.u32 %v2899, 2147483648
    %v2908 = vxor.u32 %v2900, 2147483648
    %v2909 = vxor.u32 %v2901, 2147483648
    %v2910 = vmul.f32 %v2904, 1.442695
    %v2911 = vpow.pop %v2910
    %v2912 = vmul.f32 %v2905, 1.442695
    %v2913 = vpow.pop %v2912
    %v2914 = vmul.f32 %v2906, 1.442695
    %v2915 = vpow.pop %v2914
    %v2916 = vmul.f32 %v2907, 1.442695
    %v2917 = vpow.pop %v2916
    %v2918 = vmul.f32 %v2908, 1.442695
    %v2919 = vpow.pop %v2918
    %v2920 = vmul.f32 %v2909, 1.442695
    %v2921 = vpow.pop %v2920
    %v2922 = vadd.f32 %v2911, 1.0
    %v2923 = vadd.f32 %v2913, 1.0
    %v2924 = vadd.f32 %v2915, 1.0
    %v2925 = vadd.f32 %v2917, 1.0
    %v2926 = vadd.f32 %v2919, 1.0
    %v2927 = vadd.f32 %v2921, 1.0
    %v2928 = vrcp.pop %v2922
    %v2929 = vmul.f32 1.0, %v2928
    %v2930 = vrcp.pop %v2923
    %v2931 = vmul.f32 1.0, %v2930
    %v2932 = vrcp.pop %v2924
    %v2933 = vmul.f32 1.0, %v2932
    %v2934 = vrcp.pop %v2925
    %v2935 = vmul.f32 1.0, %v2934
    %v2936 = vrcp.pop %v2926
    %v2937 = vmul.f32 1.0, %v2936
    %v2938 = vrcp.pop %v2927
    %v2939 = vmul.f32 1.0, %v2938
    %v2940 = vtanh.pop %v2902
    %v2941 = vtanh.pop %v2903
    %v2944 = vrot.slane %v2692, 7
    %v2945 = vrot.slane %v2693, 7
    %v2948 = vmul.f32 %v2933, %v2944
    %v2949 = vmul.f32 %v2935, %v2945
    %v2950 = vmul.f32 %v2929, %v2940
    %v2951 = vmul.f32 %v2931, %v2941
    %v2952 = vadd.f32 %v2948, %v2950
    %v2953 = vadd.f32 %v2949, %v2951
    %v2954 = vtanh.pop %v2952
    %v2955 = vtanh.pop %v2953
    %v2956 = vmul.f32 %v2937, %v2954
    %v2957 = vmul.f32 %v2939, %v2955
    %v2958 = vpack.c.bf16 %v2956, %v2956
    %v2959 = vpack.c.bf16 %v2957, %v2957
    %v2962 = vrot.slane %v2958, 1
    %v2963 = vrot.slane %v2959, 1
    %2966 = vmatprep.subr.bf16.mxu0 %v1960
    %2967 = vmatpush1.bf16.msra.mxu0 %v1959
    %2968 = vmatprep.subr.bf16.mxu0 %v1968
    %2969 = vmatpush1.bf16.msra.mxu0 %v1967
    %2970 = vmatprep.subr.bf16.mxu0 %v1976
    %2971 = vmatpush1.bf16.msra.mxu0 %v1975
    %2972 = vmatprep.subr.bf16.mxu0 %v1984
    %2973 = vmatpush1.bf16.msra.mxu0 %v1983
    %2974 = vmatprep.subr.bf16.mxu0 %v1992
    %2975 = vmatpush1.bf16.msra.mxu0 %v1991
    %2976 = vmatprep.subr.bf16.mxu0 %v2000
    %2977 = vmatpush1.bf16.msra.mxu0 %v1999
    %2978 = vmatprep.subr.bf16.mxu0 %v2008
    %2979 = vmatpush1.bf16.msra.mxu0 %v2007
    %2980 = vmatprep.subr.bf16.mxu0 %v2016
    %2981 = vmatpush1.bf16.msra.mxu0 %v2015
    %2982 = vmatprep.subr.bf16.mxu0 %v2024
    %2983 = vmatpush1.bf16.msra.mxu0 %v2023
    %2984 = vmatprep.subr.bf16.mxu0 %v2032
    %2985 = vmatpush1.bf16.msra.mxu0 %v2031
    %2986 = vmatprep.subr.bf16.mxu0 %v2040
    %2987 = vmatpush1.bf16.msra.mxu0 %v2039
    %2988 = vmatprep.subr.bf16.mxu0 %v2048
    %2989 = vmatpush1.bf16.msra.mxu0 %v2047
    %2990 = vmatprep.subr.bf16.mxu0 %v2056
    %2991 = vmatpush1.bf16.msra.mxu0 %v2055
    %2992 = vmatprep.subr.bf16.mxu0 %v2064
    %2993 = vmatpush1.bf16.msra.mxu0 %v2063
    %2994 = vmatprep.subr.bf16.mxu0 %v2072
    %2995 = vmatpush1.bf16.msra.mxu0 %v2071
    %2996 = vmatprep.subr.bf16.mxu0 %v2080
    %2997 = vmatpush1.bf16.msra.mxu0 %v2079
    %2998 = vmatprep.mubr.bf16.mxu0 %v2963
    %2999 = vmatmul.mubr.bf16.gmra.mrb[0].mxu0 %v2962
    %v3000 = vpop.f32.mrb[0].mxu0
    %v3001 = vadd.f32 0.0, %v3000
    %v3002 = vpop.f32.mrb[0].mxu0
    %v3003 = vadd.f32 0.0, %v3002
    %v3004 = vpop.f32.mrb[0].mxu0
    %v3005 = vpop.f32.mrb[0].mxu0
    %3006 = vdwg.mxu0
    %3007 = vmatprep.subr.bf16.mxu0 %v1962
    %3008 = vmatpush1.bf16.msra.mxu0 %v1961
    %3009 = vmatprep.subr.bf16.mxu0 %v1970
    %3010 = vmatpush1.bf16.msra.mxu0 %v1969
    %3011 = vmatprep.subr.bf16.mxu0 %v1978
    %3012 = vmatpush1.bf16.msra.mxu0 %v1977
    %3013 = vmatprep.subr.bf16.mxu0 %v1986
    %3014 = vmatpush1.bf16.msra.mxu0 %v1985
    %3015 = vmatprep.subr.bf16.mxu0 %v1994
    %3016 = vmatpush1.bf16.msra.mxu0 %v1993
    %3017 = vmatprep.subr.bf16.mxu0 %v2002
    %3018 = vmatpush1.bf16.msra.mxu0 %v2001
    %3019 = vmatprep.subr.bf16.mxu0 %v2010
    %3020 = vmatpush1.bf16.msra.mxu0 %v2009
    %3021 = vmatprep.subr.bf16.mxu0 %v2018
    %3022 = vmatpush1.bf16.msra.mxu0 %v2017
    %3023 = vmatprep.subr.bf16.mxu0 %v2026
    %3024 = vmatpush1.bf16.msra.mxu0 %v2025
    %3025 = vmatprep.subr.bf16.mxu0 %v2034
    %3026 = vmatpush1.bf16.msra.mxu0 %v2033
    %3027 = vmatprep.subr.bf16.mxu0 %v2042
    %3028 = vmatpush1.bf16.msra.mxu0 %v2041
    %3029 = vmatprep.subr.bf16.mxu0 %v2050
    %3030 = vmatpush1.bf16.msra.mxu0 %v2049
    %3031 = vmatprep.subr.bf16.mxu0 %v2058
    %3032 = vmatpush1.bf16.msra.mxu0 %v2057
    %3033 = vmatprep.subr.bf16.mxu0 %v2066
    %3034 = vmatpush1.bf16.msra.mxu0 %v2065
    %3035 = vmatprep.subr.bf16.mxu0 %v2074
    %3036 = vmatpush1.bf16.msra.mxu0 %v2073
    %3037 = vmatprep.subr.bf16.mxu0 %v2082
    %3038 = vmatpush1.bf16.msra.mxu0 %v2081
    %3039 = vmatprep.mubr.bf16.mxu0 %v2963
    %3040 = vmatmul.mubr.bf16.gmra.mrb[0].mxu0 %v2962
    %v3041 = vpop.f32.mrb[0].mxu0
    %v3042 = vadd.f32 0.0, %v3041
    %v3043 = vpop.f32.mrb[0].mxu0
    %v3044 = vadd.f32 0.0, %v3043
    %v3045 = vpop.f32.mrb[0].mxu0
    %v3046 = vpop.f32.mrb[0].mxu0
    %3047 = vdwg.mxu0
    %3048 = vmatprep.subr.bf16.mxu0 %v1964
    %3049 = vmatpush1.bf16.msra.mxu0 %v1963
    %3050 = vmatprep.subr.bf16.mxu0 %v1972
    %3051 = vmatpush1.bf16.msra.mxu0 %v1971
    %3052 = vmatprep.subr.bf16.mxu0 %v1980
    %3053 = vmatpush1.bf16.msra.mxu0 %v1979
    %3054 = vmatprep.subr.bf16.mxu0 %v1988
    %3055 = vmatpush1.bf16.msra.mxu0 %v1987
    %3056 = vmatprep.subr.bf16.mxu0 %v1996
    %3057 = vmatpush1.bf16.msra.mxu0 %v1995
    %3058 = vmatprep.subr.bf16.mxu0 %v2004
    %3059 = vmatpush1.bf16.msra.mxu0 %v2003
    %3060 = vmatprep.subr.bf16.mxu0 %v2012
    %3061 = vmatpush1.bf16.msra.mxu0 %v2011
    %3062 = vmatprep.subr.bf16.mxu0 %v2020
    %3063 = vmatpush1.bf16.msra.mxu0 %v2019
    %3064 = vmatprep.subr.bf16.mxu0 %v2028
    %3065 = vmatpush1.bf16.msra.mxu0 %v2027
    %3066 = vmatprep.subr.bf16.mxu0 %v2036
    %3067 = vmatpush1.bf16.msra.mxu0 %v2035
    %3068 = vmatprep.subr.bf16.mxu0 %v2044
    %3069 = vmatpush1.bf16.msra.mxu0 %v2043
    %3070 = vmatprep.subr.bf16.mxu0 %v2052
    %3071 = vmatpush1.bf16.msra.mxu0 %v2051
    %3072 = vmatprep.subr.bf16.mxu0 %v2060
    %3073 = vmatpush1.bf16.msra.mxu0 %v2059
    %3074 = vmatprep.subr.bf16.mxu0 %v2068
    %3075 = vmatpush1.bf16.msra.mxu0 %v2067
    %3076 = vmatprep.subr.bf16.mxu0 %v2076
    %3077 = vmatpush1.bf16.msra.mxu0 %v2075
    %3078 = vmatprep.subr.bf16.mxu0 %v2084
    %3079 = vmatpush1.bf16.msra.mxu0 %v2083
    %3080 = vmatprep.mubr.bf16.mxu0 %v2963
    %3081 = vmatmul.mubr.bf16.gmra.mrb[0].mxu0 %v2962
    %v3082 = vpop.f32.mrb[0].mxu0
    %v3083 = vadd.f32 0.0, %v3082
    %v3084 = vpop.f32.mrb[0].mxu0
    %v3085 = vadd.f32 0.0, %v3084
    %v3086 = vpop.f32.mrb[0].mxu0
    %v3087 = vpop.f32.mrb[0].mxu0
    %3088 = vdwg.mxu0
    %3089 = vmatprep.subr.bf16.mxu0 %v1966
    %3090 = vmatpush1.bf16.msra.mxu0 %v1965
    %3091 = vmatprep.subr.bf16.mxu0 %v1974
    %3092 = vmatpush1.bf16.msra.mxu0 %v1973
    %3093 = vmatprep.subr.bf16.mxu0 %v1982
    %3094 = vmatpush1.bf16.msra.mxu0 %v1981
    %3095 = vmatprep.subr.bf16.mxu0 %v1990
    %3096 = vmatpush1.bf16.msra.mxu0 %v1989
    %3097 = vmatprep.subr.bf16.mxu0 %v1998
    %3098 = vmatpush1.bf16.msra.mxu0 %v1997
    %3099 = vmatprep.subr.bf16.mxu0 %v2006
    %3100 = vmatpush1.bf16.msra.mxu0 %v2005
    %3101 = vmatprep.subr.bf16.mxu0 %v2014
    %3102 = vmatpush1.bf16.msra.mxu0 %v2013
    %3103 = vmatprep.subr.bf16.mxu0 %v2022
    %3104 = vmatpush1.bf16.msra.mxu0 %v2021
    %3105 = vmatprep.subr.bf16.mxu0 %v2030
    %3106 = vmatpush1.bf16.msra.mxu0 %v2029
    %3107 = vmatprep.subr.bf16.mxu0 %v2038
    %3108 = vmatpush1.bf16.msra.mxu0 %v2037
    %3109 = vmatprep.subr.bf16.mxu0 %v2046
    %3110 = vmatpush1.bf16.msra.mxu0 %v2045
    %3111 = vmatprep.subr.bf16.mxu0 %v2054
    %3112 = vmatpush1.bf16.msra.mxu0 %v2053
    %3113 = vmatprep.subr.bf16.mxu0 %v2062
    %3114 = vmatpush1.bf16.msra.mxu0 %v2061
    %3115 = vmatprep.subr.bf16.mxu0 %v2070
    %3116 = vmatpush1.bf16.msra.mxu0 %v2069
    %3117 = vmatprep.subr.bf16.mxu0 %v2078
    %3118 = vmatpush1.bf16.msra.mxu0 %v2077
    %3119 = vmatprep.subr.bf16.mxu0 %v2086
    %3120 = vmatpush1.bf16.msra.mxu0 %v2085
    %3121 = vmatprep.mubr.bf16.mxu0 %v2963
    %3122 = vmatmul.mubr.bf16.gmra.mrb[0].mxu0 %v2962
    %v3123 = vpop.f32.mrb[0].mxu0
    %v3124 = vadd.f32 0.0, %v3123
    %v3125 = vpop.f32.mrb[0].mxu0
    %v3126 = vadd.f32 0.0, %v3125
    %v3127 = vpop.f32.mrb[0].mxu0
    %v3128 = vpop.f32.mrb[0].mxu0
    %3129 = vdwg.mxu0
    %v3138 = vrot.slane %v3001, 5
    %v3139 = vrot.slane %v3003, 5
    %v3140 = vrot.slane %v3042, 5
    %v3141 = vrot.slane %v3044, 5
    %v3142 = vrot.slane %v3083, 5
    %v3143 = vrot.slane %v3085, 5
    %v3144 = vrot.slane %v3124, 5
    %v3145 = vrot.slane %v3126, 5
    %v3154 = vadd.f32 %v1424, %v3138
    %v3155 = vadd.f32 %v1425, %v3139
    %v3156 = vadd.f32 %v1426, %v3140
    %v3157 = vadd.f32 %v1427, %v3141
    %v3158 = vadd.f32 %v1428, %v3142
    %v3159 = vadd.f32 %v1429, %v3143
    %v3160 = vadd.f32 %v1430, %v3144
    %v3161 = vadd.f32 %v1431, %v3145
    %v3162 = vxor.u32 %v3154, 2147483648
    %v3163 = vxor.u32 %v3155, 2147483648
    %v3164 = vxor.u32 %v3156, 2147483648
    %v3165 = vxor.u32 %v3157, 2147483648
    %v3166 = vxor.u32 %v3158, 2147483648
    %v3167 = vxor.u32 %v3159, 2147483648
    %v3168 = vmul.f32 %v3162, 1.442695
    %v3169 = vpow.pop %v3168
    %v3170 = vmul.f32 %v3163, 1.442695
    %v3171 = vpow.pop %v3170
    %v3172 = vmul.f32 %v3164, 1.442695
    %v3173 = vpow.pop %v3172
    %v3174 = vmul.f32 %v3165, 1.442695
    %v3175 = vpow.pop %v3174
    %v3176 = vmul.f32 %v3166, 1.442695
    %v3177 = vpow.pop %v3176
    %v3178 = vmul.f32 %v3167, 1.442695
    %v3179 = vpow.pop %v3178
    %v3180 = vadd.f32 %v3169, 1.0
    %v3181 = vadd.f32 %v3171, 1.0
    %v3182 = vadd.f32 %v3173, 1.0
    %v3183 = vadd.f32 %v3175, 1.0
    %v3184 = vadd.f32 %v3177, 1.0
    %v3185 = vadd.f32 %v3179, 1.0
    %v3186 = vrcp.pop %v3180
    %v3187 = vmul.f32 1.0, %v3186
    %v3188 = vrcp.pop %v3181
    %v3189 = vmul.f32 1.0, %v3188
    %v3190 = vrcp.pop %v3182
    %v3191 = vmul.f32 1.0, %v3190
    %v3192 = vrcp.pop %v3183
    %v3193 = vmul.f32 1.0, %v3192
    %v3194 = vrcp.pop %v3184
    %v3195 = vmul.f32 1.0, %v3194
    %v3196 = vrcp.pop %v3185
    %v3197 = vmul.f32 1.0, %v3196
    %v3198 = vtanh.pop %v3160
    %v3199 = vtanh.pop %v3161
    %v3202 = vrot.slane %v2952, 7
    %v3203 = vrot.slane %v2953, 7
    %v3206 = vmul.f32 %v3191, %v3202
    %v3207 = vmul.f32 %v3193, %v3203
    %v3208 = vmul.f32 %v3187, %v3198
    %v3209 = vmul.f32 %v3189, %v3199
    %v3210 = vadd.f32 %v3206, %v3208
    %v3211 = vadd.f32 %v3207, %v3209
    %v3212 = vtanh.pop %v3210
    %v3213 = vtanh.pop %v3211
    %v3214 = vmul.f32 %v3195, %v3212
    %v3215 = vmul.f32 %v3197, %v3213
    %v3216 = vpack.c.bf16 %v3214, %v3214
    %v3217 = vpack.c.bf16 %v3215, %v3215
    %v3219 = vshrl.u32 %v3216, 16
    %v3221 = vrot.slane %v3219, 1
    %v3223 = vshrl.u32 %v3217, 16
    %v3225 = vrot.slane %v3223, 1
    %3228 = vmatprep.subr.bf16.mxu0 %v1960
    %3229 = vmatpush1.bf16.msra.mxu0 %v1959
    %3230 = vmatprep.subr.bf16.mxu0 %v1968
    %3231 = vmatpush1.bf16.msra.mxu0 %v1967
    %3232 = vmatprep.subr.bf16.mxu0 %v1976
    %3233 = vmatpush1.bf16.msra.mxu0 %v1975
    %3234 = vmatprep.subr.bf16.mxu0 %v1984
    %3235 = vmatpush1.bf16.msra.mxu0 %v1983
    %3236 = vmatprep.subr.bf16.mxu0 %v1992
    %3237 = vmatpush1.bf16.msra.mxu0 %v1991
    %3238 = vmatprep.subr.bf16.mxu0 %v2000
    %3239 = vmatpush1.bf16.msra.mxu0 %v1999
    %3240 = vmatprep.subr.bf16.mxu0 %v2008
    %3241 = vmatpush1.bf16.msra.mxu0 %v2007
    %3242 = vmatprep.subr.bf16.mxu0 %v2016
    %3243 = vmatpush1.bf16.msra.mxu0 %v2015
    %3244 = vmatprep.subr.bf16.mxu0 %v2024
    %3245 = vmatpush1.bf16.msra.mxu0 %v2023
    %3246 = vmatprep.subr.bf16.mxu0 %v2032
    %3247 = vmatpush1.bf16.msra.mxu0 %v2031
    %3248 = vmatprep.subr.bf16.mxu0 %v2040
    %3249 = vmatpush1.bf16.msra.mxu0 %v2039
    %3250 = vmatprep.subr.bf16.mxu0 %v2048
    %3251 = vmatpush1.bf16.msra.mxu0 %v2047
    %3252 = vmatprep.subr.bf16.mxu0 %v2056
    %3253 = vmatpush1.bf16.msra.mxu0 %v2055
    %3254 = vmatprep.subr.bf16.mxu0 %v2064
    %3255 = vmatpush1.bf16.msra.mxu0 %v2063
    %3256 = vmatprep.subr.bf16.mxu0 %v2072
    %3257 = vmatpush1.bf16.msra.mxu0 %v2071
    %3258 = vmatprep.subr.bf16.mxu0 %v2080
    %3259 = vmatpush1.bf16.msra.mxu0 %v2079
    %3260 = vmatprep.mubr.bf16.mxu0 %v3225
    %3261 = vmatmul.mubr.bf16.gmra.mrb[0].mxu0 %v3221
    %v3262 = vpop.f32.mrb[0].mxu0
    %v3263 = vadd.f32 0.0, %v3262
    %v3264 = vpop.f32.mrb[0].mxu0
    %v3265 = vadd.f32 0.0, %v3264
    %v3266 = vpop.f32.mrb[0].mxu0
    %v3267 = vpop.f32.mrb[0].mxu0
    %3268 = vdwg.mxu0
    %3269 = vmatprep.subr.bf16.mxu0 %v1962
    %3270 = vmatpush1.bf16.msra.mxu0 %v1961
    %3271 = vmatprep.subr.bf16.mxu0 %v1970
    %3272 = vmatpush1.bf16.msra.mxu0 %v1969
    %3273 = vmatprep.subr.bf16.mxu0 %v1978
    %3274 = vmatpush1.bf16.msra.mxu0 %v1977
    %3275 = vmatprep.subr.bf16.mxu0 %v1986
    %3276 = vmatpush1.bf16.msra.mxu0 %v1985
    %3277 = vmatprep.subr.bf16.mxu0 %v1994
    %3278 = vmatpush1.bf16.msra.mxu0 %v1993
    %3279 = vmatprep.subr.bf16.mxu0 %v2002
    %3280 = vmatpush1.bf16.msra.mxu0 %v2001
    %3281 = vmatprep.subr.bf16.mxu0 %v2010
    %3282 = vmatpush1.bf16.msra.mxu0 %v2009
    %3283 = vmatprep.subr.bf16.mxu0 %v2018
    %3284 = vmatpush1.bf16.msra.mxu0 %v2017
    %3285 = vmatprep.subr.bf16.mxu0 %v2026
    %3286 = vmatpush1.bf16.msra.mxu0 %v2025
    %3287 = vmatprep.subr.bf16.mxu0 %v2034
    %3288 = vmatpush1.bf16.msra.mxu0 %v2033
    %3289 = vmatprep.subr.bf16.mxu0 %v2042
    %3290 = vmatpush1.bf16.msra.mxu0 %v2041
    %3291 = vmatprep.subr.bf16.mxu0 %v2050
    %3292 = vmatpush1.bf16.msra.mxu0 %v2049
    %3293 = vmatprep.subr.bf16.mxu0 %v2058
    %3294 = vmatpush1.bf16.msra.mxu0 %v2057
    %3295 = vmatprep.subr.bf16.mxu0 %v2066
    %3296 = vmatpush1.bf16.msra.mxu0 %v2065
    %3297 = vmatprep.subr.bf16.mxu0 %v2074
    %3298 = vmatpush1.bf16.msra.mxu0 %v2073
    %3299 = vmatprep.subr.bf16.mxu0 %v2082
    %3300 = vmatpush1.bf16.msra.mxu0 %v2081
    %3301 = vmatprep.mubr.bf16.mxu0 %v3225
    %3302 = vmatmul.mubr.bf16.gmra.mrb[0].mxu0 %v3221
    %v3303 = vpop.f32.mrb[0].mxu0
    %v3304 = vadd.f32 0.0, %v3303
    %v3305 = vpop.f32.mrb[0].mxu0
    %v3306 = vadd.f32 0.0, %v3305
    %v3307 = vpop.f32.mrb[0].mxu0
    %v3308 = vpop.f32.mrb[0].mxu0
    %3309 = vdwg.mxu0
    %3310 = vmatprep.subr.bf16.mxu0 %v1964
    %3311 = vmatpush1.bf16.msra.mxu0 %v1963
    %3312 = vmatprep.subr.bf16.mxu0 %v1972
    %3313 = vmatpush1.bf16.msra.mxu0 %v1971
    %3314 = vmatprep.subr.bf16.mxu0 %v1980
    %3315 = vmatpush1.bf16.msra.mxu0 %v1979
    %3316 = vmatprep.subr.bf16.mxu0 %v1988
    %3317 = vmatpush1.bf16.msra.mxu0 %v1987
    %3318 = vmatprep.subr.bf16.mxu0 %v1996
    %3319 = vmatpush1.bf16.msra.mxu0 %v1995
    %3320 = vmatprep.subr.bf16.mxu0 %v2004
    %3321 = vmatpush1.bf16.msra.mxu0 %v2003
    %3322 = vmatprep.subr.bf16.mxu0 %v2012
    %3323 = vmatpush1.bf16.msra.mxu0 %v2011
    %3324 = vmatprep.subr.bf16.mxu0 %v2020
    %3325 = vmatpush1.bf16.msra.mxu0 %v2019
    %3326 = vmatprep.subr.bf16.mxu0 %v2028
    %3327 = vmatpush1.bf16.msra.mxu0 %v2027
    %3328 = vmatprep.subr.bf16.mxu0 %v2036
    %3329 = vmatpush1.bf16.msra.mxu0 %v2035
    %3330 = vmatprep.subr.bf16.mxu0 %v2044
    %3331 = vmatpush1.bf16.msra.mxu0 %v2043
    %3332 = vmatprep.subr.bf16.mxu0 %v2052
    %3333 = vmatpush1.bf16.msra.mxu0 %v2051
    %3334 = vmatprep.subr.bf16.mxu0 %v2060
    %3335 = vmatpush1.bf16.msra.mxu0 %v2059
    %3336 = vmatprep.subr.bf16.mxu0 %v2068
    %3337 = vmatpush1.bf16.msra.mxu0 %v2067
    %3338 = vmatprep.subr.bf16.mxu0 %v2076
    %3339 = vmatpush1.bf16.msra.mxu0 %v2075
    %3340 = vmatprep.subr.bf16.mxu0 %v2084
    %3341 = vmatpush1.bf16.msra.mxu0 %v2083
    %3342 = vmatprep.mubr.bf16.mxu0 %v3225
    %3343 = vmatmul.mubr.bf16.gmra.mrb[0].mxu0 %v3221
    %v3344 = vpop.f32.mrb[0].mxu0
    %v3345 = vadd.f32 0.0, %v3344
    %v3346 = vpop.f32.mrb[0].mxu0
    %v3347 = vadd.f32 0.0, %v3346
    %v3348 = vpop.f32.mrb[0].mxu0
    %v3349 = vpop.f32.mrb[0].mxu0
    %3350 = vdwg.mxu0
    %3351 = vmatprep.subr.bf16.mxu0 %v1966
    %3352 = vmatpush1.bf16.msra.mxu0 %v1965
    %3353 = vmatprep.subr.bf16.mxu0 %v1974
    %3354 = vmatpush1.bf16.msra.mxu0 %v1973
    %3355 = vmatprep.subr.bf16.mxu0 %v1982
    %3356 = vmatpush1.bf16.msra.mxu0 %v1981
    %3357 = vmatprep.subr.bf16.mxu0 %v1990
    %3358 = vmatpush1.bf16.msra.mxu0 %v1989
    %3359 = vmatprep.subr.bf16.mxu0 %v1998
    %3360 = vmatpush1.bf16.msra.mxu0 %v1997
    %3361 = vmatprep.subr.bf16.mxu0 %v2006
    %3362 = vmatpush1.bf16.msra.mxu0 %v2005
    %3363 = vmatprep.subr.bf16.mxu0 %v2014
    %3364 = vmatpush1.bf16.msra.mxu0 %v2013
    %3365 = vmatprep.subr.bf16.mxu0 %v2022
    %3366 = vmatpush1.bf16.msra.mxu0 %v2021
    %3367 = vmatprep.subr.bf16.mxu0 %v2030
    %3368 = vmatpush1.bf16.msra.mxu0 %v2029
    %3369 = vmatprep.subr.bf16.mxu0 %v2038
    %3370 = vmatpush1.bf16.msra.mxu0 %v2037
    %3371 = vmatprep.subr.bf16.mxu0 %v2046
    %3372 = vmatpush1.bf16.msra.mxu0 %v2045
    %3373 = vmatprep.subr.bf16.mxu0 %v2054
    %3374 = vmatpush1.bf16.msra.mxu0 %v2053
    %3375 = vmatprep.subr.bf16.mxu0 %v2062
    %3376 = vmatpush1.bf16.msra.mxu0 %v2061
    %3377 = vmatprep.subr.bf16.mxu0 %v2070
    %3378 = vmatpush1.bf16.msra.mxu0 %v2069
    %3379 = vmatprep.subr.bf16.mxu0 %v2078
    %3380 = vmatpush1.bf16.msra.mxu0 %v2077
    %3381 = vmatprep.subr.bf16.mxu0 %v2086
    %3382 = vmatpush1.bf16.msra.mxu0 %v2085
    %3383 = vmatprep.mubr.bf16.mxu0 %v3225
    %3384 = vmatmul.mubr.bf16.gmra.mrb[0].mxu0 %v3221
    %v3385 = vpop.f32.mrb[0].mxu0
    %v3386 = vadd.f32 0.0, %v3385
    %v3387 = vpop.f32.mrb[0].mxu0
    %v3388 = vadd.f32 0.0, %v3387
    %v3389 = vpop.f32.mrb[0].mxu0
    %v3390 = vpop.f32.mrb[0].mxu0
    %3391 = vdwg.mxu0
    %v3400 = vrot.slane %v3263, 4
    %v3401 = vrot.slane %v3265, 4
    %v3402 = vrot.slane %v3304, 4
    %v3403 = vrot.slane %v3306, 4
    %v3404 = vrot.slane %v3345, 4
    %v3405 = vrot.slane %v3347, 4
    %v3406 = vrot.slane %v3386, 4
    %v3407 = vrot.slane %v3388, 4
    %v3416 = vadd.f32 %v1424, %v3400
    %v3417 = vadd.f32 %v1425, %v3401
    %v3418 = vadd.f32 %v1426, %v3402
    %v3419 = vadd.f32 %v1427, %v3403
    %v3420 = vadd.f32 %v1428, %v3404
    %v3421 = vadd.f32 %v1429, %v3405
    %v3422 = vadd.f32 %v1430, %v3406
    %v3423 = vadd.f32 %v1431, %v3407
    %v3424 = vxor.u32 %v3416, 2147483648
    %v3425 = vxor.u32 %v3417, 2147483648
    %v3426 = vxor.u32 %v3418, 2147483648
    %v3427 = vxor.u32 %v3419, 2147483648
    %v3428 = vxor.u32 %v3420, 2147483648
    %v3429 = vxor.u32 %v3421, 2147483648
    %v3430 = vmul.f32 %v3424, 1.442695
    %v3431 = vpow.pop %v3430
    %v3432 = vmul.f32 %v3425, 1.442695
    %v3433 = vpow.pop %v3432
    %v3434 = vmul.f32 %v3426, 1.442695
    %v3435 = vpow.pop %v3434
    %v3436 = vmul.f32 %v3427, 1.442695
    %v3437 = vpow.pop %v3436
    %v3438 = vmul.f32 %v3428, 1.442695
    %v3439 = vpow.pop %v3438
    %v3440 = vmul.f32 %v3429, 1.442695
    %v3441 = vpow.pop %v3440
    %v3442 = vadd.f32 %v3431, 1.0
    %v3443 = vadd.f32 %v3433, 1.0
    %v3444 = vadd.f32 %v3435, 1.0
    %v3445 = vadd.f32 %v3437, 1.0
    %v3446 = vadd.f32 %v3439, 1.0
    %v3447 = vadd.f32 %v3441, 1.0
    %v3448 = vrcp.pop %v3442
    %v3449 = vmul.f32 1.0, %v3448
    %v3450 = vrcp.pop %v3443
    %v3451 = vmul.f32 1.0, %v3450
    %v3452 = vrcp.pop %v3444
    %v3453 = vmul.f32 1.0, %v3452
    %v3454 = vrcp.pop %v3445
    %v3455 = vmul.f32 1.0, %v3454
    %v3456 = vrcp.pop %v3446
    %v3457 = vmul.f32 1.0, %v3456
    %v3458 = vrcp.pop %v3447
    %v3459 = vmul.f32 1.0, %v3458
    %v3460 = vtanh.pop %v3422
    %v3461 = vtanh.pop %v3423
    %v3464 = vrot.slane %v3210, 7
    %v3465 = vrot.slane %v3211, 7
    %v3468 = vmul.f32 %v3453, %v3464
    %v3469 = vmul.f32 %v3455, %v3465
    %v3470 = vmul.f32 %v3449, %v3460
    %v3471 = vmul.f32 %v3451, %v3461
    %v3472 = vadd.f32 %v3468, %v3470
    %v3473 = vadd.f32 %v3469, %v3471
    %v3474 = vtanh.pop %v3472
    %v3475 = vtanh.pop %v3473
    %v3476 = vmul.f32 %v3457, %v3474
    %v3477 = vmul.f32 %v3459, %v3475
    %v3478 = vpack.c.bf16 %v3476, %v3476
    %v3479 = vpack.c.bf16 %v3477, %v3477
    %v3482 = vrot.slane %v3478, 2
    %v3483 = vrot.slane %v3479, 2
    %3486 = vmatprep.subr.bf16.mxu0 %v1960
    %3487 = vmatpush1.bf16.msra.mxu0 %v1959
    %3488 = vmatprep.subr.bf16.mxu0 %v1968
    %3489 = vmatpush1.bf16.msra.mxu0 %v1967
    %3490 = vmatprep.subr.bf16.mxu0 %v1976
    %3491 = vmatpush1.bf16.msra.mxu0 %v1975
    %3492 = vmatprep.subr.bf16.mxu0 %v1984
    %3493 = vmatpush1.bf16.msra.mxu0 %v1983
    %3494 = vmatprep.subr.bf16.mxu0 %v1992
    %3495 = vmatpush1.bf16.msra.mxu0 %v1991
    %3496 = vmatprep.subr.bf16.mxu0 %v2000
    %3497 = vmatpush1.bf16.msra.mxu0 %v1999
    %3498 = vmatprep.subr.bf16.mxu0 %v2008
    %3499 = vmatpush1.bf16.msra.mxu0 %v2007
    %3500 = vmatprep.subr.bf16.mxu0 %v2016
    %3501 = vmatpush1.bf16.msra.mxu0 %v2015
    %3502 = vmatprep.subr.bf16.mxu0 %v2024
    %3503 = vmatpush1.bf16.msra.mxu0 %v2023
    %3504 = vmatprep.subr.bf16.mxu0 %v2032
    %3505 = vmatpush1.bf16.msra.mxu0 %v2031
    %3506 = vmatprep.subr.bf16.mxu0 %v2040
    %3507 = vmatpush1.bf16.msra.mxu0 %v2039
    %3508 = vmatprep.subr.bf16.mxu0 %v2048
    %3509 = vmatpush1.bf16.msra.mxu0 %v2047
    %3510 = vmatprep.subr.bf16.mxu0 %v2056
    %3511 = vmatpush1.bf16.msra.mxu0 %v2055
    %3512 = vmatprep.subr.bf16.mxu0 %v2064
    %3513 = vmatpush1.bf16.msra.mxu0 %v2063
    %3514 = vmatprep.subr.bf16.mxu0 %v2072
    %3515 = vmatpush1.bf16.msra.mxu0 %v2071
    %3516 = vmatprep.subr.bf16.mxu0 %v2080
    %3517 = vmatpush1.bf16.msra.mxu0 %v2079
    %3518 = vmatprep.mubr.bf16.mxu0 %v3483
    %3519 = vmatmul.mubr.bf16.gmra.mrb[0].mxu0 %v3482
    %v3520 = vpop.f32.mrb[0].mxu0
    %v3521 = vadd.f32 0.0, %v3520
    %v3522 = vpop.f32.mrb[0].mxu0
    %v3523 = vadd.f32 0.0, %v3522
    %v3524 = vpop.f32.mrb[0].mxu0
    %v3525 = vpop.f32.mrb[0].mxu0
    %3526 = vdwg.mxu0
    %3527 = vmatprep.subr.bf16.mxu0 %v1962
    %3528 = vmatpush1.bf16.msra.mxu0 %v1961
    %3529 = vmatprep.subr.bf16.mxu0 %v1970
    %3530 = vmatpush1.bf16.msra.mxu0 %v1969
    %3531 = vmatprep.subr.bf16.mxu0 %v1978
    %3532 = vmatpush1.bf16.msra.mxu0 %v1977
    %3533 = vmatprep.subr.bf16.mxu0 %v1986
    %3534 = vmatpush1.bf16.msra.mxu0 %v1985
    %3535 = vmatprep.subr.bf16.mxu0 %v1994
    %3536 = vmatpush1.bf16.msra.mxu0 %v1993
    %3537 = vmatprep.subr.bf16.mxu0 %v2002
    %3538 = vmatpush1.bf16.msra.mxu0 %v2001
    %3539 = vmatprep.subr.bf16.mxu0 %v2010
    %3540 = vmatpush1.bf16.msra.mxu0 %v2009
    %3541 = vmatprep.subr.bf16.mxu0 %v2018
    %3542 = vmatpush1.bf16.msra.mxu0 %v2017
    %3543 = vmatprep.subr.bf16.mxu0 %v2026
    %3544 = vmatpush1.bf16.msra.mxu0 %v2025
    %3545 = vmatprep.subr.bf16.mxu0 %v2034
    %3546 = vmatpush1.bf16.msra.mxu0 %v2033
    %3547 = vmatprep.subr.bf16.mxu0 %v2042
    %3548 = vmatpush1.bf16.msra.mxu0 %v2041
    %3549 = vmatprep.subr.bf16.mxu0 %v2050
    %3550 = vmatpush1.bf16.msra.mxu0 %v2049
    %3551 = vmatprep.subr.bf16.mxu0 %v2058
    %3552 = vmatpush1.bf16.msra.mxu0 %v2057
    %3553 = vmatprep.subr.bf16.mxu0 %v2066
    %3554 = vmatpush1.bf16.msra.mxu0 %v2065
    %3555 = vmatprep.subr.bf16.mxu0 %v2074
    %3556 = vmatpush1.bf16.msra.mxu0 %v2073
    %3557 = vmatprep.subr.bf16.mxu0 %v2082
    %3558 = vmatpush1.bf16.msra.mxu0 %v2081
    %3559 = vmatprep.mubr.bf16.mxu0 %v3483
    %3560 = vmatmul.mubr.bf16.gmra.mrb[0].mxu0 %v3482
    %v3561 = vpop.f32.mrb[0].mxu0
    %v3562 = vadd.f32 0.0, %v3561
    %v3563 = vpop.f32.mrb[0].mxu0
    %v3564 = vadd.f32 0.0, %v3563
    %v3565 = vpop.f32.mrb[0].mxu0
    %v3566 = vpop.f32.mrb[0].mxu0
    %3567 = vdwg.mxu0
    %3568 = vmatprep.subr.bf16.mxu0 %v1964
    %3569 = vmatpush1.bf16.msra.mxu0 %v1963
    %3570 = vmatprep.subr.bf16.mxu0 %v1972
    %3571 = vmatpush1.bf16.msra.mxu0 %v1971
    %3572 = vmatprep.subr.bf16.mxu0 %v1980
    %3573 = vmatpush1.bf16.msra.mxu0 %v1979
    %3574 = vmatprep.subr.bf16.mxu0 %v1988
    %3575 = vmatpush1.bf16.msra.mxu0 %v1987
    %3576 = vmatprep.subr.bf16.mxu0 %v1996
    %3577 = vmatpush1.bf16.msra.mxu0 %v1995
    %3578 = vmatprep.subr.bf16.mxu0 %v2004
    %3579 = vmatpush1.bf16.msra.mxu0 %v2003
    %3580 = vmatprep.subr.bf16.mxu0 %v2012
    %3581 = vmatpush1.bf16.msra.mxu0 %v2011
    %3582 = vmatprep.subr.bf16.mxu0 %v2020
    %3583 = vmatpush1.bf16.msra.mxu0 %v2019
    %3584 = vmatprep.subr.bf16.mxu0 %v2028
    %3585 = vmatpush1.bf16.msra.mxu0 %v2027
    %3586 = vmatprep.subr.bf16.mxu0 %v2036
    %3587 = vmatpush1.bf16.msra.mxu0 %v2035
    %3588 = vmatprep.subr.bf16.mxu0 %v2044
    %3589 = vmatpush1.bf16.msra.mxu0 %v2043
    %3590 = vmatprep.subr.bf16.mxu0 %v2052
    %3591 = vmatpush1.bf16.msra.mxu0 %v2051
    %3592 = vmatprep.subr.bf16.mxu0 %v2060
    %3593 = vmatpush1.bf16.msra.mxu0 %v2059
    %3594 = vmatprep.subr.bf16.mxu0 %v2068
    %3595 = vmatpush1.bf16.msra.mxu0 %v2067
    %3596 = vmatprep.subr.bf16.mxu0 %v2076
    %3597 = vmatpush1.bf16.msra.mxu0 %v2075
    %3598 = vmatprep.subr.bf16.mxu0 %v2084
    %3599 = vmatpush1.bf16.msra.mxu0 %v2083
    %3600 = vmatprep.mubr.bf16.mxu0 %v3483
    %3601 = vmatmul.mubr.bf16.gmra.mrb[0].mxu0 %v3482
    %v3602 = vpop.f32.mrb[0].mxu0
    %v3603 = vadd.f32 0.0, %v3602
    %v3604 = vpop.f32.mrb[0].mxu0
    %v3605 = vadd.f32 0.0, %v3604
    %v3606 = vpop.f32.mrb[0].mxu0
    %v3607 = vpop.f32.mrb[0].mxu0
    %3608 = vdwg.mxu0
    %3609 = vmatprep.subr.bf16.mxu0 %v1966
    %3610 = vmatpush1.bf16.msra.mxu0 %v1965
    %3611 = vmatprep.subr.bf16.mxu0 %v1974
    %3612 = vmatpush1.bf16.msra.mxu0 %v1973
    %3613 = vmatprep.subr.bf16.mxu0 %v1982
    %3614 = vmatpush1.bf16.msra.mxu0 %v1981
    %3615 = vmatprep.subr.bf16.mxu0 %v1990
    %3616 = vmatpush1.bf16.msra.mxu0 %v1989
    %3617 = vmatprep.subr.bf16.mxu0 %v1998
    %3618 = vmatpush1.bf16.msra.mxu0 %v1997
    %3619 = vmatprep.subr.bf16.mxu0 %v2006
    %3620 = vmatpush1.bf16.msra.mxu0 %v2005
    %3621 = vmatprep.subr.bf16.mxu0 %v2014
    %3622 = vmatpush1.bf16.msra.mxu0 %v2013
    %3623 = vmatprep.subr.bf16.mxu0 %v2022
    %3624 = vmatpush1.bf16.msra.mxu0 %v2021
    %3625 = vmatprep.subr.bf16.mxu0 %v2030
    %3626 = vmatpush1.bf16.msra.mxu0 %v2029
    %3627 = vmatprep.subr.bf16.mxu0 %v2038
    %3628 = vmatpush1.bf16.msra.mxu0 %v2037
    %3629 = vmatprep.subr.bf16.mxu0 %v2046
    %3630 = vmatpush1.bf16.msra.mxu0 %v2045
    %3631 = vmatprep.subr.bf16.mxu0 %v2054
    %3632 = vmatpush1.bf16.msra.mxu0 %v2053
    %3633 = vmatprep.subr.bf16.mxu0 %v2062
    %3634 = vmatpush1.bf16.msra.mxu0 %v2061
    %3635 = vmatprep.subr.bf16.mxu0 %v2070
    %3636 = vmatpush1.bf16.msra.mxu0 %v2069
    %3637 = vmatprep.subr.bf16.mxu0 %v2078
    %3638 = vmatpush1.bf16.msra.mxu0 %v2077
    %3639 = vmatprep.subr.bf16.mxu0 %v2086
    %3640 = vmatpush1.bf16.msra.mxu0 %v2085
    %3641 = vmatprep.mubr.bf16.mxu0 %v3483
    %3642 = vmatmul.mubr.bf16.gmra.mrb[0].mxu0 %v3482
    %v3643 = vpop.f32.mrb[0].mxu0
    %v3644 = vadd.f32 0.0, %v3643
    %v3645 = vpop.f32.mrb[0].mxu0
    %v3646 = vadd.f32 0.0, %v3645
    %v3647 = vpop.f32.mrb[0].mxu0
    %v3648 = vpop.f32.mrb[0].mxu0
    %3649 = vdwg.mxu0
    %v3658 = vrot.slane %v3521, 3
    %v3659 = vrot.slane %v3523, 3
    %v3660 = vrot.slane %v3562, 3
    %v3661 = vrot.slane %v3564, 3
    %v3662 = vrot.slane %v3603, 3
    %v3663 = vrot.slane %v3605, 3
    %v3664 = vrot.slane %v3644, 3
    %v3665 = vrot.slane %v3646, 3
    %v3674 = vadd.f32 %v1424, %v3658
    %v3675 = vadd.f32 %v1425, %v3659
    %v3676 = vadd.f32 %v1426, %v3660
    %v3677 = vadd.f32 %v1427, %v3661
    %v3678 = vadd.f32 %v1428, %v3662
    %v3679 = vadd.f32 %v1429, %v3663
    %v3680 = vadd.f32 %v1430, %v3664
    %v3681 = vadd.f32 %v1431, %v3665
    %v3682 = vxor.u32 %v3674, 2147483648
    %v3683 = vxor.u32 %v3675, 2147483648
    %v3684 = vxor.u32 %v3676, 2147483648
    %v3685 = vxor.u32 %v3677, 2147483648
    %v3686 = vxor.u32 %v3678, 2147483648
    %v3687 = vxor.u32 %v3679, 2147483648
    %v3688 = vmul.f32 %v3682, 1.442695
    %v3689 = vpow.pop %v3688
    %v3690 = vmul.f32 %v3683, 1.442695
    %v3691 = vpow.pop %v3690
    %v3692 = vmul.f32 %v3684, 1.442695
    %v3693 = vpow.pop %v3692
    %v3694 = vmul.f32 %v3685, 1.442695
    %v3695 = vpow.pop %v3694
    %v3696 = vmul.f32 %v3686, 1.442695
    %v3697 = vpow.pop %v3696
    %v3698 = vmul.f32 %v3687, 1.442695
    %v3699 = vpow.pop %v3698
    %v3700 = vadd.f32 %v3689, 1.0
    %v3701 = vadd.f32 %v3691, 1.0
    %v3702 = vadd.f32 %v3693, 1.0
    %v3703 = vadd.f32 %v3695, 1.0
    %v3704 = vadd.f32 %v3697, 1.0
    %v3705 = vadd.f32 %v3699, 1.0
    %v3706 = vrcp.pop %v3700
    %v3707 = vmul.f32 1.0, %v3706
    %v3708 = vrcp.pop %v3701
    %v3709 = vmul.f32 1.0, %v3708
    %v3710 = vrcp.pop %v3702
    %v3711 = vmul.f32 1.0, %v3710
    %v3712 = vrcp.pop %v3703
    %v3713 = vmul.f32 1.0, %v3712
    %v3714 = vrcp.pop %v3704
    %v3715 = vmul.f32 1.0, %v3714
    %v3716 = vrcp.pop %v3705
    %v3717 = vmul.f32 1.0, %v3716
    %v3718 = vtanh.pop %v3680
    %v3719 = vtanh.pop %v3681
    %v3722 = vrot.slane %v3472, 7
    %v3723 = vrot.slane %v3473, 7
    %v3726 = vmul.f32 %v3711, %v3722
    %v3727 = vmul.f32 %v3713, %v3723
    %v3728 = vmul.f32 %v3707, %v3718
    %v3729 = vmul.f32 %v3709, %v3719
    %v3730 = vadd.f32 %v3726, %v3728
    %v3731 = vadd.f32 %v3727, %v3729
    %v3732 = vtanh.pop %v3730
    %v3733 = vtanh.pop %v3731
    %v3734 = vmul.f32 %v3715, %v3732
    %v3735 = vmul.f32 %v3717, %v3733
    %v3736 = vpack.c.bf16 %v3734, %v3734
    %v3737 = vpack.c.bf16 %v3735, %v3735
    %v3739 = vshrl.u32 %v3736, 16
    %v3741 = vrot.slane %v3739, 2
    %v3743 = vshrl.u32 %v3737, 16
    %v3745 = vrot.slane %v3743, 2
    %3748 = vmatprep.subr.bf16.mxu0 %v1960
    %3749 = vmatpush1.bf16.msra.mxu0 %v1959
    %3750 = vmatprep.subr.bf16.mxu0 %v1968
    %3751 = vmatpush1.bf16.msra.mxu0 %v1967
    %3752 = vmatprep.subr.bf16.mxu0 %v1976
    %3753 = vmatpush1.bf16.msra.mxu0 %v1975
    %3754 = vmatprep.subr.bf16.mxu0 %v1984
    %3755 = vmatpush1.bf16.msra.mxu0 %v1983
    %3756 = vmatprep.subr.bf16.mxu0 %v1992
    %3757 = vmatpush1.bf16.msra.mxu0 %v1991
    %3758 = vmatprep.subr.bf16.mxu0 %v2000
    %3759 = vmatpush1.bf16.msra.mxu0 %v1999
    %3760 = vmatprep.subr.bf16.mxu0 %v2008
    %3761 = vmatpush1.bf16.msra.mxu0 %v2007
    %3762 = vmatprep.subr.bf16.mxu0 %v2016
    %3763 = vmatpush1.bf16.msra.mxu0 %v2015
    %3764 = vmatprep.subr.bf16.mxu0 %v2024
    %3765 = vmatpush1.bf16.msra.mxu0 %v2023
    %3766 = vmatprep.subr.bf16.mxu0 %v2032
    %3767 = vmatpush1.bf16.msra.mxu0 %v2031
    %3768 = vmatprep.subr.bf16.mxu0 %v2040
    %3769 = vmatpush1.bf16.msra.mxu0 %v2039
    %3770 = vmatprep.subr.bf16.mxu0 %v2048
    %3771 = vmatpush1.bf16.msra.mxu0 %v2047
    %3772 = vmatprep.subr.bf16.mxu0 %v2056
    %3773 = vmatpush1.bf16.msra.mxu0 %v2055
    %3774 = vmatprep.subr.bf16.mxu0 %v2064
    %3775 = vmatpush1.bf16.msra.mxu0 %v2063
    %3776 = vmatprep.subr.bf16.mxu0 %v2072
    %3777 = vmatpush1.bf16.msra.mxu0 %v2071
    %3778 = vmatprep.subr.bf16.mxu0 %v2080
    %3779 = vmatpush1.bf16.msra.mxu0 %v2079
    %3780 = vmatprep.mubr.bf16.mxu0 %v3745
    %3781 = vmatmul.mubr.bf16.gmra.mrb[0].mxu0 %v3741
    %v3782 = vpop.f32.mrb[0].mxu0
    %v3783 = vadd.f32 0.0, %v3782
    %v3784 = vpop.f32.mrb[0].mxu0
    %v3785 = vadd.f32 0.0, %v3784
    %v3786 = vpop.f32.mrb[0].mxu0
    %v3787 = vpop.f32.mrb[0].mxu0
    %3788 = vdwg.mxu0
    %3789 = vmatprep.subr.bf16.mxu0 %v1962
    %3790 = vmatpush1.bf16.msra.mxu0 %v1961
    %3791 = vmatprep.subr.bf16.mxu0 %v1970
    %3792 = vmatpush1.bf16.msra.mxu0 %v1969
    %3793 = vmatprep.subr.bf16.mxu0 %v1978
    %3794 = vmatpush1.bf16.msra.mxu0 %v1977
    %3795 = vmatprep.subr.bf16.mxu0 %v1986
    %3796 = vmatpush1.bf16.msra.mxu0 %v1985
    %3797 = vmatprep.subr.bf16.mxu0 %v1994
    %3798 = vmatpush1.bf16.msra.mxu0 %v1993
    %3799 = vmatprep.subr.bf16.mxu0 %v2002
    %3800 = vmatpush1.bf16.msra.mxu0 %v2001
    %3801 = vmatprep.subr.bf16.mxu0 %v2010
    %3802 = vmatpush1.bf16.msra.mxu0 %v2009
    %3803 = vmatprep.subr.bf16.mxu0 %v2018
    %3804 = vmatpush1.bf16.msra.mxu0 %v2017
    %3805 = vmatprep.subr.bf16.mxu0 %v2026
    %3806 = vmatpush1.bf16.msra.mxu0 %v2025
    %3807 = vmatprep.subr.bf16.mxu0 %v2034
    %3808 = vmatpush1.bf16.msra.mxu0 %v2033
    %3809 = vmatprep.subr.bf16.mxu0 %v2042
    %3810 = vmatpush1.bf16.msra.mxu0 %v2041
    %3811 = vmatprep.subr.bf16.mxu0 %v2050
    %3812 = vmatpush1.bf16.msra.mxu0 %v2049
    %3813 = vmatprep.subr.bf16.mxu0 %v2058
    %3814 = vmatpush1.bf16.msra.mxu0 %v2057
    %3815 = vmatprep.subr.bf16.mxu0 %v2066
    %3816 = vmatpush1.bf16.msra.mxu0 %v2065
    %3817 = vmatprep.subr.bf16.mxu0 %v2074
    %3818 = vmatpush1.bf16.msra.mxu0 %v2073
    %3819 = vmatprep.subr.bf16.mxu0 %v2082
    %3820 = vmatpush1.bf16.msra.mxu0 %v2081
    %3821 = vmatprep.mubr.bf16.mxu0 %v3745
    %3822 = vmatmul.mubr.bf16.gmra.mrb[0].mxu0 %v3741
    %v3823 = vpop.f32.mrb[0].mxu0
    %v3824 = vadd.f32 0.0, %v3823
    %v3825 = vpop.f32.mrb[0].mxu0
    %v3826 = vadd.f32 0.0, %v3825
    %v3827 = vpop.f32.mrb[0].mxu0
    %v3828 = vpop.f32.mrb[0].mxu0
    %3829 = vdwg.mxu0
    %3830 = vmatprep.subr.bf16.mxu0 %v1964
    %3831 = vmatpush1.bf16.msra.mxu0 %v1963
    %3832 = vmatprep.subr.bf16.mxu0 %v1972
    %3833 = vmatpush1.bf16.msra.mxu0 %v1971
    %3834 = vmatprep.subr.bf16.mxu0 %v1980
    %3835 = vmatpush1.bf16.msra.mxu0 %v1979
    %3836 = vmatprep.subr.bf16.mxu0 %v1988
    %3837 = vmatpush1.bf16.msra.mxu0 %v1987
    %3838 = vmatprep.subr.bf16.mxu0 %v1996
    %3839 = vmatpush1.bf16.msra.mxu0 %v1995
    %3840 = vmatprep.subr.bf16.mxu0 %v2004
    %3841 = vmatpush1.bf16.msra.mxu0 %v2003
    %3842 = vmatprep.subr.bf16.mxu0 %v2012
    %3843 = vmatpush1.bf16.msra.mxu0 %v2011
    %3844 = vmatprep.subr.bf16.mxu0 %v2020
    %3845 = vmatpush1.bf16.msra.mxu0 %v2019
    %3846 = vmatprep.subr.bf16.mxu0 %v2028
    %3847 = vmatpush1.bf16.msra.mxu0 %v2027
    %3848 = vmatprep.subr.bf16.mxu0 %v2036
    %3849 = vmatpush1.bf16.msra.mxu0 %v2035
    %3850 = vmatprep.subr.bf16.mxu0 %v2044
    %3851 = vmatpush1.bf16.msra.mxu0 %v2043
    %3852 = vmatprep.subr.bf16.mxu0 %v2052
    %3853 = vmatpush1.bf16.msra.mxu0 %v2051
    %3854 = vmatprep.subr.bf16.mxu0 %v2060
    %3855 = vmatpush1.bf16.msra.mxu0 %v2059
    %3856 = vmatprep.subr.bf16.mxu0 %v2068
    %3857 = vmatpush1.bf16.msra.mxu0 %v2067
    %3858 = vmatprep.subr.bf16.mxu0 %v2076
    %3859 = vmatpush1.bf16.msra.mxu0 %v2075
    %3860 = vmatprep.subr.bf16.mxu0 %v2084
    %3861 = vmatpush1.bf16.msra.mxu0 %v2083
    %3862 = vmatprep.mubr.bf16.mxu0 %v3745
    %3863 = vmatmul.mubr.bf16.gmra.mrb[0].mxu0 %v3741
    %v3864 = vpop.f32.mrb[0].mxu0
    %v3865 = vadd.f32 0.0, %v3864
    %v3866 = vpop.f32.mrb[0].mxu0
    %v3867 = vadd.f32 0.0, %v3866
    %v3868 = vpop.f32.mrb[0].mxu0
    %v3869 = vpop.f32.mrb[0].mxu0
    %3870 = vdwg.mxu0
    %3871 = vmatprep.subr.bf16.mxu0 %v1966
    %3872 = vmatpush1.bf16.msra.mxu0 %v1965
    %3873 = vmatprep.subr.bf16.mxu0 %v1974
    %3874 = vmatpush1.bf16.msra.mxu0 %v1973
    %3875 = vmatprep.subr.bf16.mxu0 %v1982
    %3876 = vmatpush1.bf16.msra.mxu0 %v1981
    %3877 = vmatprep.subr.bf16.mxu0 %v1990
    %3878 = vmatpush1.bf16.msra.mxu0 %v1989
    %3879 = vmatprep.subr.bf16.mxu0 %v1998
    %3880 = vmatpush1.bf16.msra.mxu0 %v1997
    %3881 = vmatprep.subr.bf16.mxu0 %v2006
    %3882 = vmatpush1.bf16.msra.mxu0 %v2005
    %3883 = vmatprep.subr.bf16.mxu0 %v2014
    %3884 = vmatpush1.bf16.msra.mxu0 %v2013
    %3885 = vmatprep.subr.bf16.mxu0 %v2022
    %3886 = vmatpush1.bf16.msra.mxu0 %v2021
    %3887 = vmatprep.subr.bf16.mxu0 %v2030
    %3888 = vmatpush1.bf16.msra.mxu0 %v2029
    %3889 = vmatprep.subr.bf16.mxu0 %v2038
    %3890 = vmatpush1.bf16.msra.mxu0 %v2037
    %3891 = vmatprep.subr.bf16.mxu0 %v2046
    %3892 = vmatpush1.bf16.msra.mxu0 %v2045
    %3893 = vmatprep.subr.bf16.mxu0 %v2054
    %3894 = vmatpush1.bf16.msra.mxu0 %v2053
    %3895 = vmatprep.subr.bf16.mxu0 %v2062
    %3896 = vmatpush1.bf16.msra.mxu0 %v2061
    %3897 = vmatprep.subr.bf16.mxu0 %v2070
    %3898 = vmatpush1.bf16.msra.mxu0 %v2069
    %3899 = vmatprep.subr.bf16.mxu0 %v2078
    %3900 = vmatpush1.bf16.msra.mxu0 %v2077
    %3901 = vmatprep.subr.bf16.mxu0 %v2086
    %3902 = vmatpush1.bf16.msra.mxu0 %v2085
    %3903 = vmatprep.mubr.bf16.mxu0 %v3745
    %3904 = vmatmul.mubr.bf16.gmra.mrb[0].mxu0 %v3741
    %v3905 = vpop.f32.mrb[0].mxu0
    %v3906 = vadd.f32 0.0, %v3905
    %v3907 = vpop.f32.mrb[0].mxu0
    %v3908 = vadd.f32 0.0, %v3907
    %v3909 = vpop.f32.mrb[0].mxu0
    %v3910 = vpop.f32.mrb[0].mxu0
    %3911 = vdwg.mxu0
    %v3920 = vrot.slane %v3783, 2
    %v3921 = vrot.slane %v3785, 2
    %v3922 = vrot.slane %v3824, 2
    %v3923 = vrot.slane %v3826, 2
    %v3924 = vrot.slane %v3865, 2
    %v3925 = vrot.slane %v3867, 2
    %v3926 = vrot.slane %v3906, 2
    %v3927 = vrot.slane %v3908, 2
    %v3936 = vadd.f32 %v1424, %v3920
    %v3937 = vadd.f32 %v1425, %v3921
    %v3938 = vadd.f32 %v1426, %v3922
    %v3939 = vadd.f32 %v1427, %v3923
    %v3940 = vadd.f32 %v1428, %v3924
    %v3941 = vadd.f32 %v1429, %v3925
    %v3942 = vadd.f32 %v1430, %v3926
    %v3943 = vadd.f32 %v1431, %v3927
    %v3944 = vxor.u32 %v3936, 2147483648
    %v3945 = vxor.u32 %v3937, 2147483648
    %v3946 = vxor.u32 %v3938, 2147483648
    %v3947 = vxor.u32 %v3939, 2147483648
    %v3948 = vxor.u32 %v3940, 2147483648
    %v3949 = vxor.u32 %v3941, 2147483648
    %v3950 = vmul.f32 %v3944, 1.442695
    %v3951 = vpow.pop %v3950
    %v3952 = vmul.f32 %v3945, 1.442695
    %v3953 = vpow.pop %v3952
    %v3954 = vmul.f32 %v3946, 1.442695
    %v3955 = vpow.pop %v3954
    %v3956 = vmul.f32 %v3947, 1.442695
    %v3957 = vpow.pop %v3956
    %v3958 = vmul.f32 %v3948, 1.442695
    %v3959 = vpow.pop %v3958
    %v3960 = vmul.f32 %v3949, 1.442695
    %v3961 = vpow.pop %v3960
    %v3962 = vadd.f32 %v3951, 1.0
    %v3963 = vadd.f32 %v3953, 1.0
    %v3964 = vadd.f32 %v3955, 1.0
    %v3965 = vadd.f32 %v3957, 1.0
    %v3966 = vadd.f32 %v3959, 1.0
    %v3967 = vadd.f32 %v3961, 1.0
    %v3968 = vrcp.pop %v3962
    %v3969 = vmul.f32 1.0, %v3968
    %v3970 = vrcp.pop %v3963
    %v3971 = vmul.f32 1.0, %v3970
    %v3972 = vrcp.pop %v3964
    %v3973 = vmul.f32 1.0, %v3972
    %v3974 = vrcp.pop %v3965
    %v3975 = vmul.f32 1.0, %v3974
    %v3976 = vrcp.pop %v3966
    %v3977 = vmul.f32 1.0, %v3976
    %v3978 = vrcp.pop %v3967
    %v3979 = vmul.f32 1.0, %v3978
    %v3980 = vtanh.pop %v3942
    %v3981 = vtanh.pop %v3943
    %v3984 = vrot.slane %v3730, 7
    %v3985 = vrot.slane %v3731, 7
    %v3988 = vmul.f32 %v3973, %v3984
    %v3989 = vmul.f32 %v3975, %v3985
    %v3990 = vmul.f32 %v3969, %v3980
    %v3991 = vmul.f32 %v3971, %v3981
    %v3992 = vadd.f32 %v3988, %v3990
    %v3993 = vadd.f32 %v3989, %v3991
    %v3994 = vtanh.pop %v3992
    %v3995 = vtanh.pop %v3993
    %v3996 = vmul.f32 %v3977, %v3994
    %v3997 = vmul.f32 %v3979, %v3995
    %v3998 = vpack.c.bf16 %v3996, %v3996
    %v3999 = vpack.c.bf16 %v3997, %v3997
    %v4002 = vrot.slane %v3998, 3
    %v4003 = vrot.slane %v3999, 3
    %4006 = vmatprep.subr.bf16.mxu0 %v1960
    %4007 = vmatpush1.bf16.msra.mxu0 %v1959
    %4008 = vmatprep.subr.bf16.mxu0 %v1968
    %4009 = vmatpush1.bf16.msra.mxu0 %v1967
    %4010 = vmatprep.subr.bf16.mxu0 %v1976
    %4011 = vmatpush1.bf16.msra.mxu0 %v1975
    %4012 = vmatprep.subr.bf16.mxu0 %v1984
    %4013 = vmatpush1.bf16.msra.mxu0 %v1983
    %4014 = vmatprep.subr.bf16.mxu0 %v1992
    %4015 = vmatpush1.bf16.msra.mxu0 %v1991
    %4016 = vmatprep.subr.bf16.mxu0 %v2000
    %4017 = vmatpush1.bf16.msra.mxu0 %v1999
    %4018 = vmatprep.subr.bf16.mxu0 %v2008
    %4019 = vmatpush1.bf16.msra.mxu0 %v2007
    %4020 = vmatprep.subr.bf16.mxu0 %v2016
    %4021 = vmatpush1.bf16.msra.mxu0 %v2015
    %4022 = vmatprep.subr.bf16.mxu0 %v2024
    %4023 = vmatpush1.bf16.msra.mxu0 %v2023
    %4024 = vmatprep.subr.bf16.mxu0 %v2032
    %4025 = vmatpush1.bf16.msra.mxu0 %v2031
    %4026 = vmatprep.subr.bf16.mxu0 %v2040
    %4027 = vmatpush1.bf16.msra.mxu0 %v2039
    %4028 = vmatprep.subr.bf16.mxu0 %v2048
    %4029 = vmatpush1.bf16.msra.mxu0 %v2047
    %4030 = vmatprep.subr.bf16.mxu0 %v2056
    %4031 = vmatpush1.bf16.msra.mxu0 %v2055
    %4032 = vmatprep.subr.bf16.mxu0 %v2064
    %4033 = vmatpush1.bf16.msra.mxu0 %v2063
    %4034 = vmatprep.subr.bf16.mxu0 %v2072
    %4035 = vmatpush1.bf16.msra.mxu0 %v2071
    %4036 = vmatprep.subr.bf16.mxu0 %v2080
    %4037 = vmatpush1.bf16.msra.mxu0 %v2079
    %4038 = vmatprep.mubr.bf16.mxu0 %v4003
    %4039 = vmatmul.mubr.bf16.gmra.mrb[0].mxu0 %v4002
    %v4040 = vpop.f32.mrb[0].mxu0
    %v4041 = vadd.f32 0.0, %v4040
    %v4042 = vpop.f32.mrb[0].mxu0
    %v4043 = vadd.f32 0.0, %v4042
    %v4044 = vpop.f32.mrb[0].mxu0
    %v4045 = vpop.f32.mrb[0].mxu0
    %4046 = vdwg.mxu0
    %4047 = vmatprep.subr.bf16.mxu0 %v1962
    %4048 = vmatpush1.bf16.msra.mxu0 %v1961
    %4049 = vmatprep.subr.bf16.mxu0 %v1970
    %4050 = vmatpush1.bf16.msra.mxu0 %v1969
    %4051 = vmatprep.subr.bf16.mxu0 %v1978
    %4052 = vmatpush1.bf16.msra.mxu0 %v1977
    %4053 = vmatprep.subr.bf16.mxu0 %v1986
    %4054 = vmatpush1.bf16.msra.mxu0 %v1985
    %4055 = vmatprep.subr.bf16.mxu0 %v1994
    %4056 = vmatpush1.bf16.msra.mxu0 %v1993
    %4057 = vmatprep.subr.bf16.mxu0 %v2002
    %4058 = vmatpush1.bf16.msra.mxu0 %v2001
    %4059 = vmatprep.subr.bf16.mxu0 %v2010
    %4060 = vmatpush1.bf16.msra.mxu0 %v2009
    %4061 = vmatprep.subr.bf16.mxu0 %v2018
    %4062 = vmatpush1.bf16.msra.mxu0 %v2017
    %4063 = vmatprep.subr.bf16.mxu0 %v2026
    %4064 = vmatpush1.bf16.msra.mxu0 %v2025
    %4065 = vmatprep.subr.bf16.mxu0 %v2034
    %4066 = vmatpush1.bf16.msra.mxu0 %v2033
    %4067 = vmatprep.subr.bf16.mxu0 %v2042
    %4068 = vmatpush1.bf16.msra.mxu0 %v2041
    %4069 = vmatprep.subr.bf16.mxu0 %v2050
    %4070 = vmatpush1.bf16.msra.mxu0 %v2049
    %4071 = vmatprep.subr.bf16.mxu0 %v2058
    %4072 = vmatpush1.bf16.msra.mxu0 %v2057
    %4073 = vmatprep.subr.bf16.mxu0 %v2066
    %4074 = vmatpush1.bf16.msra.mxu0 %v2065
    %4075 = vmatprep.subr.bf16.mxu0 %v2074
    %4076 = vmatpush1.bf16.msra.mxu0 %v2073
    %4077 = vmatprep.subr.bf16.mxu0 %v2082
    %4078 = vmatpush1.bf16.msra.mxu0 %v2081
    %4079 = vmatprep.mubr.bf16.mxu0 %v4003
    %4080 = vmatmul.mubr.bf16.gmra.mrb[0].mxu0 %v4002
    %v4081 = vpop.f32.mrb[0].mxu0
    %v4082 = vadd.f32 0.0, %v4081
    %v4083 = vpop.f32.mrb[0].mxu0
    %v4084 = vadd.f32 0.0, %v4083
    %v4085 = vpop.f32.mrb[0].mxu0
    %v4086 = vpop.f32.mrb[0].mxu0
    %4087 = vdwg.mxu0
    %4088 = vmatprep.subr.bf16.mxu0 %v1964
    %4089 = vmatpush1.bf16.msra.mxu0 %v1963
    %4090 = vmatprep.subr.bf16.mxu0 %v1972
    %4091 = vmatpush1.bf16.msra.mxu0 %v1971
    %4092 = vmatprep.subr.bf16.mxu0 %v1980
    %4093 = vmatpush1.bf16.msra.mxu0 %v1979
    %4094 = vmatprep.subr.bf16.mxu0 %v1988
    %4095 = vmatpush1.bf16.msra.mxu0 %v1987
    %4096 = vmatprep.subr.bf16.mxu0 %v1996
    %4097 = vmatpush1.bf16.msra.mxu0 %v1995
    %4098 = vmatprep.subr.bf16.mxu0 %v2004
    %4099 = vmatpush1.bf16.msra.mxu0 %v2003
    %4100 = vmatprep.subr.bf16.mxu0 %v2012
    %4101 = vmatpush1.bf16.msra.mxu0 %v2011
    %4102 = vmatprep.subr.bf16.mxu0 %v2020
    %4103 = vmatpush1.bf16.msra.mxu0 %v2019
    %4104 = vmatprep.subr.bf16.mxu0 %v2028
    %4105 = vmatpush1.bf16.msra.mxu0 %v2027
    %4106 = vmatprep.subr.bf16.mxu0 %v2036
    %4107 = vmatpush1.bf16.msra.mxu0 %v2035
    %4108 = vmatprep.subr.bf16.mxu0 %v2044
    %4109 = vmatpush1.bf16.msra.mxu0 %v2043
    %4110 = vmatprep.subr.bf16.mxu0 %v2052
    %4111 = vmatpush1.bf16.msra.mxu0 %v2051
    %4112 = vmatprep.subr.bf16.mxu0 %v2060
    %4113 = vmatpush1.bf16.msra.mxu0 %v2059
    %4114 = vmatprep.subr.bf16.mxu0 %v2068
    %4115 = vmatpush1.bf16.msra.mxu0 %v2067
    %4116 = vmatprep.subr.bf16.mxu0 %v2076
    %4117 = vmatpush1.bf16.msra.mxu0 %v2075
    %4118 = vmatprep.subr.bf16.mxu0 %v2084
    %4119 = vmatpush1.bf16.msra.mxu0 %v2083
    %4120 = vmatprep.mubr.bf16.mxu0 %v4003
    %4121 = vmatmul.mubr.bf16.gmra.mrb[0].mxu0 %v4002
    %v4122 = vpop.f32.mrb[0].mxu0
    %v4123 = vadd.f32 0.0, %v4122
    %v4124 = vpop.f32.mrb[0].mxu0
    %v4125 = vadd.f32 0.0, %v4124
    %v4126 = vpop.f32.mrb[0].mxu0
    %v4127 = vpop.f32.mrb[0].mxu0
    %4128 = vdwg.mxu0
    %4129 = vmatprep.subr.bf16.mxu0 %v1966
    %4130 = vmatpush1.bf16.msra.mxu0 %v1965
    %4131 = vmatprep.subr.bf16.mxu0 %v1974
    %4132 = vmatpush1.bf16.msra.mxu0 %v1973
    %4133 = vmatprep.subr.bf16.mxu0 %v1982
    %4134 = vmatpush1.bf16.msra.mxu0 %v1981
    %4135 = vmatprep.subr.bf16.mxu0 %v1990
    %4136 = vmatpush1.bf16.msra.mxu0 %v1989
    %4137 = vmatprep.subr.bf16.mxu0 %v1998
    %4138 = vmatpush1.bf16.msra.mxu0 %v1997
    %4139 = vmatprep.subr.bf16.mxu0 %v2006
    %4140 = vmatpush1.bf16.msra.mxu0 %v2005
    %4141 = vmatprep.subr.bf16.mxu0 %v2014
    %4142 = vmatpush1.bf16.msra.mxu0 %v2013
    %4143 = vmatprep.subr.bf16.mxu0 %v2022
    %4144 = vmatpush1.bf16.msra.mxu0 %v2021
    %4145 = vmatprep.subr.bf16.mxu0 %v2030
    %4146 = vmatpush1.bf16.msra.mxu0 %v2029
    %4147 = vmatprep.subr.bf16.mxu0 %v2038
    %4148 = vmatpush1.bf16.msra.mxu0 %v2037
    %4149 = vmatprep.subr.bf16.mxu0 %v2046
    %4150 = vmatpush1.bf16.msra.mxu0 %v2045
    %4151 = vmatprep.subr.bf16.mxu0 %v2054
    %4152 = vmatpush1.bf16.msra.mxu0 %v2053
    %4153 = vmatprep.subr.bf16.mxu0 %v2062
    %4154 = vmatpush1.bf16.msra.mxu0 %v2061
    %4155 = vmatprep.subr.bf16.mxu0 %v2070
    %4156 = vmatpush1.bf16.msra.mxu0 %v2069
    %4157 = vmatprep.subr.bf16.mxu0 %v2078
    %4158 = vmatpush1.bf16.msra.mxu0 %v2077
    %4159 = vmatprep.subr.bf16.mxu0 %v2086
    %4160 = vmatpush1.bf16.msra.mxu0 %v2085
    %4161 = vmatprep.mubr.bf16.mxu0 %v4003
    %4162 = vmatmul.mubr.bf16.gmra.mrb[0].mxu0 %v4002
    %v4163 = vpop.f32.mrb[0].mxu0
    %v4164 = vadd.f32 0.0, %v4163
    %v4165 = vpop.f32.mrb[0].mxu0
    %v4166 = vadd.f32 0.0, %v4165
    %v4167 = vpop.f32.mrb[0].mxu0
    %v4168 = vpop.f32.mrb[0].mxu0
    %4169 = vdwg.mxu0
    %v4178 = vrot.slane %v4041, 1
    %v4179 = vrot.slane %v4043, 1
    %v4180 = vrot.slane %v4082, 1
    %v4181 = vrot.slane %v4084, 1
    %v4182 = vrot.slane %v4123, 1
    %v4183 = vrot.slane %v4125, 1
    %v4184 = vrot.slane %v4164, 1
    %v4185 = vrot.slane %v4166, 1
    %v4194 = vadd.f32 %v1424, %v4178
    %v4195 = vadd.f32 %v1425, %v4179
    %v4196 = vadd.f32 %v1426, %v4180
    %v4197 = vadd.f32 %v1427, %v4181
    %v4198 = vadd.f32 %v1428, %v4182
    %v4199 = vadd.f32 %v1429, %v4183
    %v4200 = vadd.f32 %v1430, %v4184
    %v4201 = vadd.f32 %v1431, %v4185
    %v4202 = vxor.u32 %v4194, 2147483648
    %v4203 = vxor.u32 %v4195, 2147483648
    %v4204 = vxor.u32 %v4196, 2147483648
    %v4205 = vxor.u32 %v4197, 2147483648
    %v4206 = vxor.u32 %v4198, 2147483648
    %v4207 = vxor.u32 %v4199, 2147483648
    %v4208 = vmul.f32 %v4202, 1.442695
    %v4209 = vpow.pop %v4208
    %v4210 = vmul.f32 %v4203, 1.442695
    %v4211 = vpow.pop %v4210
    %v4212 = vmul.f32 %v4204, 1.442695
    %v4213 = vpow.pop %v4212
    %v4214 = vmul.f32 %v4205, 1.442695
    %v4215 = vpow.pop %v4214
    %v4216 = vmul.f32 %v4206, 1.442695
    %v4217 = vpow.pop %v4216
    %v4218 = vmul.f32 %v4207, 1.442695
    %v4219 = vpow.pop %v4218
    %v4220 = vadd.f32 %v4209, 1.0
    %v4221 = vadd.f32 %v4211, 1.0
    %v4222 = vadd.f32 %v4213, 1.0
    %v4223 = vadd.f32 %v4215, 1.0
    %v4224 = vadd.f32 %v4217, 1.0
    %v4225 = vadd.f32 %v4219, 1.0
    %v4226 = vrcp.pop %v4220
    %v4227 = vmul.f32 1.0, %v4226
    %v4228 = vrcp.pop %v4221
    %v4229 = vmul.f32 1.0, %v4228
    %v4230 = vrcp.pop %v4222
    %v4231 = vmul.f32 1.0, %v4230
    %v4232 = vrcp.pop %v4223
    %v4233 = vmul.f32 1.0, %v4232
    %v4234 = vrcp.pop %v4224
    %v4235 = vmul.f32 1.0, %v4234
    %v4236 = vrcp.pop %v4225
    %v4237 = vmul.f32 1.0, %v4236
    %v4238 = vtanh.pop %v4200
    %v4239 = vtanh.pop %v4201
    %v4242 = vrot.slane %v3992, 7
    %v4243 = vrot.slane %v3993, 7
    %v4246 = vmul.f32 %v4231, %v4242
    %v4247 = vmul.f32 %v4233, %v4243
    %v4248 = vmul.f32 %v4227, %v4238
    %v4249 = vmul.f32 %v4229, %v4239
    %v4250 = vadd.f32 %v4246, %v4248
    %v4251 = vadd.f32 %v4247, %v4249
    %v4252 = vtanh.pop %v4250
    %v4253 = vtanh.pop %v4251
    %v4254 = vmul.f32 %v4235, %v4252
    %v4255 = vmul.f32 %v4237, %v4253
    %v4256 = vpack.c.bf16 %v4254, %v4254
    %v4257 = vpack.c.bf16 %v4255, %v4255
    %v4258 = vld [vmem:[%s8] sm:$0xf]
    %v4259 = vld [vmem:[%s8 + $0x4] sm:$0xf]
    %v4260 = vld [vmem:[%s8 + $0x8] sm:$0xf]
    %v4261 = vld [vmem:[%s8 + $0xc] sm:$0xf]
    %v4262 = vld [vmem:[%s8 + $0x10] sm:$0xf]
    %v4263 = vld [vmem:[%s8 + $0x14] sm:$0xf]
    %v4264 = vld [vmem:[%s8 + $0x18] sm:$0xf]
    %v4265 = vld [vmem:[%s8 + $0x1c] sm:$0xf]
    %v4266 = vld [vmem:[%s8 + $0x20] sm:$0xf]
    %v4267 = vld [vmem:[%s8 + $0x24] sm:$0xf]
    %v4268 = vld [vmem:[%s8 + $0x28] sm:$0xf]
    %v4269 = vld [vmem:[%s8 + $0x2c] sm:$0xf]
    %v4270 = vld [vmem:[%s8 + $0x30] sm:$0xf]
    %v4271 = vld [vmem:[%s8 + $0x34] sm:$0xf]
    %v4272 = vld [vmem:[%s8 + $0x38] sm:$0xf]
    %v4273 = vld [vmem:[%s8 + $0x3c] sm:$0xf]
    %v4274 = vld [vmem:[%s8 + $0x40] sm:$0xf]
    %v4275 = vld [vmem:[%s8 + $0x44] sm:$0xf]
    %v4276 = vld [vmem:[%s8 + $0x48] sm:$0xf]
    %v4277 = vld [vmem:[%s8 + $0x4c] sm:$0xf]
    %v4278 = vld [vmem:[%s8 + $0x50] sm:$0xf]
    %v4279 = vld [vmem:[%s8 + $0x54] sm:$0xf]
    %v4280 = vld [vmem:[%s8 + $0x58] sm:$0xf]
    %v4281 = vld [vmem:[%s8 + $0x5c] sm:$0xf]
    %v4282 = vld [vmem:[%s8 + $0x60] sm:$0xf]
    %v4283 = vld [vmem:[%s8 + $0x64] sm:$0xf]
    %v4284 = vld [vmem:[%s8 + $0x68] sm:$0xf]
    %v4285 = vld [vmem:[%s8 + $0x6c] sm:$0xf]
    %v4286 = vld [vmem:[%s8 + $0x70] sm:$0xf]
    %v4287 = vld [vmem:[%s8 + $0x74] sm:$0xf]
    %v4288 = vld [vmem:[%s8 + $0x78] sm:$0xf]
    %v4289 = vld [vmem:[%s8 + $0x7c] sm:$0xf]
    %v4290 = vld [vmem:[%s9] sm:$0x1]
    %v4292 = vshrl.u32 %v4256, 16
    %v4294 = vrot.slane %v4292, 3
    %v4296 = vshrl.u32 %v4257, 16
    %v4298 = vrot.slane %v4296, 3
    %v4333 = vunpack.c.l.b16 %v4258
    %v4334 = vunpack.c.l.b16 %v4259
    %v4335 = vunpack.c.l.b16 %v4260
    %v4336 = vunpack.c.l.b16 %v4261
    %v4337 = vunpack.c.l.b16 %v4262
    %v4338 = vunpack.c.l.b16 %v4263
    %v4339 = vunpack.c.l.b16 %v4264
    %v4340 = vunpack.c.l.b16 %v4265
    %v4341 = vunpack.c.l.b16 %v4266
    %v4342 = vunpack.c.l.b16 %v4267
    %v4343 = vunpack.c.l.b16 %v4268
    %v4344 = vunpack.c.l.b16 %v4269
    %v4345 = vunpack.c.l.b16 %v4270
    %v4346 = vunpack.c.l.b16 %v4271
    %v4347 = vunpack.c.l.b16 %v4272
    %v4348 = vunpack.c.l.b16 %v4273
    %v4349 = vunpack.c.l.b16 %v4274
    %v4350 = vunpack.c.l.b16 %v4275
    %v4351 = vunpack.c.l.b16 %v4276
    %v4352 = vunpack.c.l.b16 %v4277
    %v4353 = vunpack.c.l.b16 %v4278
    %v4354 = vunpack.c.l.b16 %v4279
    %v4355 = vunpack.c.l.b16 %v4280
    %v4356 = vunpack.c.l.b16 %v4281
    %v4357 = vunpack.c.l.b16 %v4282
    %v4358 = vunpack.c.l.b16 %v4283
    %v4359 = vunpack.c.l.b16 %v4284
    %v4360 = vunpack.c.l.b16 %v4285
    %v4361 = vunpack.c.l.b16 %v4286
    %v4362 = vunpack.c.l.b16 %v4287
    %v4363 = vunpack.c.l.b16 %v4288
    %v4364 = vunpack.c.l.b16 %v4289
    %v4365 = vpack.c.b16 %v4334, %v4333
    %v4366 = vpack.c.b16 %v4336, %v4335
    %v4367 = vpack.c.b16 %v4338, %v4337
    %v4368 = vpack.c.b16 %v4340, %v4339
    %v4369 = vpack.c.b16 %v4342, %v4341
    %v4370 = vpack.c.b16 %v4344, %v4343
    %v4371 = vpack.c.b16 %v4346, %v4345
    %v4372 = vpack.c.b16 %v4348, %v4347
    %v4373 = vpack.c.b16 %v4350, %v4349
    %v4374 = vpack.c.b16 %v4352, %v4351
    %v4375 = vpack.c.b16 %v4354, %v4353
    %v4376 = vpack.c.b16 %v4356, %v4355
    %v4377 = vpack.c.b16 %v4358, %v4357
    %v4378 = vpack.c.b16 %v4360, %v4359
    %v4379 = vpack.c.b16 %v4362, %v4361
    %v4380 = vpack.c.b16 %v4364, %v4363
    %4397 = vmatprep.subr.bf16.mxu0 0
    %4398 = vmatpush1.bf16.msra.mxu0 %v4365
    %4399 = vmatprep.subr.bf16.mxu0 0
    %4400 = vmatpush1.bf16.msra.mxu0 %v4366
    %4401 = vmatprep.subr.bf16.mxu0 0
    %4402 = vmatpush1.bf16.msra.mxu0 %v4367
    %4403 = vmatprep.subr.bf16.mxu0 0
    %4404 = vmatpush1.bf16.msra.mxu0 %v4368
    %4405 = vmatprep.subr.bf16.mxu0 0
    %4406 = vmatpush1.bf16.msra.mxu0 %v4369
    %4407 = vmatprep.subr.bf16.mxu0 0
    %4408 = vmatpush1.bf16.msra.mxu0 %v4370
    %4409 = vmatprep.subr.bf16.mxu0 0
    %4410 = vmatpush1.bf16.msra.mxu0 %v4371
    %4411 = vmatprep.subr.bf16.mxu0 0
    %4412 = vmatpush1.bf16.msra.mxu0 %v4372
    %4413 = vmatprep.subr.bf16.mxu0 0
    %4414 = vmatpush1.bf16.msra.mxu0 %v4373
    %4415 = vmatprep.subr.bf16.mxu0 0
    %4416 = vmatpush1.bf16.msra.mxu0 %v4374
    %4417 = vmatprep.subr.bf16.mxu0 0
    %4418 = vmatpush1.bf16.msra.mxu0 %v4375
    %4419 = vmatprep.subr.bf16.mxu0 0
    %4420 = vmatpush1.bf16.msra.mxu0 %v4376
    %4421 = vmatprep.subr.bf16.mxu0 0
    %4422 = vmatpush1.bf16.msra.mxu0 %v4377
    %4423 = vmatprep.subr.bf16.mxu0 0
    %4424 = vmatpush1.bf16.msra.mxu0 %v4378
    %4425 = vmatprep.subr.bf16.mxu0 0
    %4426 = vmatpush1.bf16.msra.mxu0 %v4379
    %4427 = vmatprep.subr.bf16.mxu0 0
    %4428 = vmatpush1.bf16.msra.mxu0 %v4380
    %4429 = vmatprep.mubr.bf16.mxu0 %v4298
    %4430 = vmatmul.mubr.bf16.gmra.mrb[0].mxu0 %v4294
    %v4431 = vpop.f32.mrb[0].mxu0
    %v4432 = vadd.f32 %v4290, %v4431
    %v4433 = vpop.f32.mrb[0].mxu0
    %v4434 = vpop.f32.mrb[0].mxu0
    %v4435 = vpop.f32.mrb[0].mxu0
    %4436 = vdwg.mxu0
    %4437 = vst [vmem:[%s10] sm:$0x1] %v4432
    %v4440 = vcombine.high %v4254, %v4255
    %v4442 = vunpack.c.l.s4 1966171168
    %v4443 = vunpack.c.0.s8 %v4442
    %v4444 = vlaneseq
    %v4445 = vshrl.u32 %v4444, 7
    %v4446 = vsub.s32 %v4443, %v4445
    %v4447 = vrot.slane %v4440, %v4446
    %v4448 = vcombine.high %v4447, %v4447
    %v4450 = vunpack.c.l.s4 1966171168
    %v4451 = vunpack.c.0.s8 %v4450
    %v4452 = vlaneseq
    %v4453 = vshrl.u32 %v4452, 7
    %v4454 = vsub.s32 %v4451, %v4453
    %v4455 = vrot.slane %v4448, %v4454
    %v4456 = vcombine.high %v4455, %v4455
    %v4458 = vlaneseq
    %vm4459 = vcmp.ge.s32.totalorder %v4458, 0
    %vm4460 = vcmp.lt.s32.totalorder %v4458, 256
    %vm4461 = vmand %vm4459, %vm4460
    %4462 = vst.msk [vmem:[#allocation8] sm:$0x3] %vm4461, %v4456
    // Predicated region
    $region54: #{dominion_forward.1} parent=1 // pred_check
      _
    $region55: #{dominion_forward.1} parent=1 // pred_check_branch
      %4464 = sbr.rel (0) target = $region57
    $region56: #{dominion_forward.1} parent=1 // pred_region
      _
    $region57: #{dominion_forward.1} parent=1 // pred_fallthru
      _
    // Predicated region
    $region58: #{dominion_forward.1} parent=1 // pred_check
      _
    $region59: #{dominion_forward.1} parent=1 // pred_check_branch
      %4466 = sbr.rel (0) target = $region61
    $region60: #{dominion_forward.1} parent=1 // pred_region
      %s4468 = ssub.s32 32, 32
      %4469 = vsyncadd [#allocation4], %s4468
      %s4471 = sshll.u32 [#allocation8], 4
      %s4472 = int_to_ptr.vmem [resolvable:$true] %s4471
      %4474 = dma.vmem_to_hbm [thread:$0]  %s4472, 32, %s11, [#allocation4]
    $region61: #{dominion_forward.1} parent=1 // pred_fallthru
      _
    // Predicated region
    $region62: #{dominion_forward.1} parent=1 // pred_check
      _
    $region63: #{dominion_forward.1} parent=1 // pred_check_branch
      %4476 = sbr.rel (0) target = $region65
    $region64: #{dominion_forward.1} parent=1 // pred_region
      _
    $region65: #{dominion_forward.1} parent=1 // pred_fallthru
      _
    // Predicated region
    $region66: #{dominion_forward.1} parent=1 // pred_check
      _
    $region67: #{dominion_forward.1} parent=1 // pred_check_branch
      %4478 = sbr.rel (0) target = $region69
    $region68: #{dominion_forward.1} parent=1 // pred_region
      %4479 = dma.done [#allocation4], 32
    $region69: #{dominion_forward.1} parent=1 // pred_fallthru
      _
    %4480 = vsyncpa [#allocation3], 1
    %4481 = vsyncpa [#allocation6], 1
    %4482 = vsyncpa [#allocation4], 1

</llo_original>
